<compile_context>
chip_gen: v7x
topology: tpu7x:2x2x1
jax: 0.10.0
libtpu: 0.0.40
codegen_flags: <defaults>
</compile_context>

<pallas_src>
import functools

import jax
import jax.numpy as jnp
import numpy as np
from jax import lax
from jax.experimental import pallas as pl
from jax.experimental.pallas import tpu as pltpu


# ------------------------------ fused kernel --------------------------------


def _lookback_kernel(x_ref, kv_ref, mask_ref,
                     wq_ref, wk_ref, wv_ref, wo_ref, w1_ref, w2_ref,
                     bc_ref, b1_ref, o_ref, *, num_heads, eps):
    T, BB, C = x_ref.shape                     # natural (T, B, C) block
    S = kv_ref.shape[0]
    H = num_heads
    D = C // H

    # flattened (row = (t, b), t-major) slabs for all row-independent math
    xf = x_ref[...].reshape(T * BB, C).astype(jnp.float32)     # (T*B, C)
    kvf = kv_ref[...].reshape(S * BB, C).astype(jnp.float32)   # (S*B, C)

    # packed bias / LayerNorm slab (f32): rows = bq*scale, bk, bv, bo,
    # ln1_g, ln1_b, b2, ln2_g, ln2_b ; fc1 bias is its own (1, F) slab.
    bc = bc_ref[...]
    bq, bk, bv, bo = bc[0:1], bc[1:2], bc[2:3], bc[3:4]
    ln1g, ln1b = bc[4:5], bc[5:6]
    b2, ln2g, ln2b = bc[6:7], bc[7:8], bc[8:9]
    b1 = b1_ref[...]                                           # (1, F)

    # --- q/k/v projections: three full-width matmuls, bf16 in / f32 acc -----
    # (scale is already folded into wq / bq on the host)
    xb = xf.astype(jnp.bfloat16)
    kvb = kvf.astype(jnp.bfloat16)
    q = jnp.dot(xb, wq_ref[...], preferred_element_type=jnp.float32) + bq
    k = jnp.dot(kvb, wk_ref[...], preferred_element_type=jnp.float32) + bk
    v = jnp.dot(kvb, wv_ref[...], preferred_element_type=jnp.float32) + bv

    # --- multi-head cross-attention, batched over (B*H) ---------------------
    qh = jnp.transpose(q.reshape(T, BB, H, D), (1, 2, 0, 3)).reshape(BB * H, T, D)
    kh = jnp.transpose(k.reshape(S, BB, H, D), (1, 2, 0, 3)).reshape(BB * H, S, D)
    vh = jnp.transpose(v.reshape(S, BB, H, D), (1, 2, 0, 3)).reshape(BB * H, S, D)

    s = jnp.einsum('bqd,bkd->bqk',
                   qh.astype(jnp.bfloat16), kh.astype(jnp.bfloat16),
                   preferred_element_type=jnp.float32)          # (B*H, T, S)

    # key-padding mask -> additive bias (built in-kernel, f32 VPU op)
    bias = mask_ref[...].astype(jnp.float32) * jnp.float32(-1e9)   # (B, S)
    s = s.reshape(BB, H, T, S) + bias[:, None, None, :]
    m = jnp.max(s, axis=-1, keepdims=True)
    p = jnp.exp(s - m)
    denom = jnp.sum(p, axis=-1, keepdims=True)
    p = p * pl.reciprocal(denom, approx=True)                   # EUP slot
    p = p.reshape(BB * H, T, S)

    o = jnp.einsum('bqk,bkd->bqd',
                   p.astype(jnp.bfloat16), vh.astype(jnp.bfloat16),
                   preferred_element_type=jnp.float32)          # (B*H, T, D)

    # merge heads back to the (t, b)-major row layout and apply out-proj
    attn = jnp.transpose(o.reshape(BB, H, T, D), (2, 0, 1, 3)).reshape(T * BB, C)
    attn = jnp.dot(attn.astype(jnp.bfloat16), wo_ref[...],
                   preferred_element_type=jnp.float32) + bo     # (T*B, C)

    # --- residual + attn LayerNorm (f32 epilogue) ----------------------------
    h1 = attn + xf
    mu = jnp.mean(h1, axis=-1, keepdims=True)
    var = jnp.mean(jnp.square(h1 - mu), axis=-1, keepdims=True)
    h1 = (h1 - mu) * lax.rsqrt(var + eps) * ln1g + ln1b

    # --- FFN: fc1 -> SiLU -> fc2, residual, ffn LayerNorm --------------------
    f = jnp.dot(h1.astype(jnp.bfloat16), w1_ref[...],
                preferred_element_type=jnp.float32) + b1
    f = f * jax.nn.sigmoid(f)                                   # SiLU (f32)
    f = jnp.dot(f.astype(jnp.bfloat16), w2_ref[...],
                preferred_element_type=jnp.float32) + b2
    h2 = f + h1
    mu2 = jnp.mean(h2, axis=-1, keepdims=True)
    var2 = jnp.mean(jnp.square(h2 - mu2), axis=-1, keepdims=True)
    h2 = (h2 - mu2) * lax.rsqrt(var2 + eps) * ln2g + ln2b

    o_ref[...] = h2.reshape(T, BB, C).astype(o_ref.dtype)


# --------------------------- LookBackModule forward --------------------------


@functools.partial(jax.jit, static_argnames=("num_heads",))
def lookback_forward(x, wav_feature, pad_mask, params, num_heads):
    """x: (T, B, C), wav_feature: (S, B, C), pad_mask: (B, S) bool (True=pad)."""
    T, B, C = x.shape
    S = wav_feature.shape[0]
    H = num_heads
    D = C // H
    Fd = params["w1"].shape[0]
    scale = float(D) ** -0.5

    # key-padding mask as f32 (True = pad), natural (B, S) layout
    mask_f = pad_mask.astype(jnp.float32)

    # host-side weight prep: standard (in, out) orientation, bf16, scale folded
    wq_t = (params["wq"].T * scale).astype(jnp.bfloat16)        # (C, C)
    wk_t = params["wk"].T.astype(jnp.bfloat16)                  # (C, C)
    wv_t = params["wv"].T.astype(jnp.bfloat16)                  # (C, C)
    wo_t = params["wo"].T.astype(jnp.bfloat16)                  # (C, C)
    w1_t = params["w1"].T.astype(jnp.bfloat16)                  # (C, F)
    w2_t = params["w2"].T.astype(jnp.bfloat16)                  # (F, C)

    # packed bias / LayerNorm slabs (2 inputs instead of 12 tiny ones)
    bias_c = jnp.stack([params["bq"] * scale, params["bk"], params["bv"],
                        params["bo"], params["ln1_g"], params["ln1_b"],
                        params["b2"], params["ln2_g"], params["ln2_b"]],
                       axis=0)                                  # (9, C)
    b1 = params["b1"].reshape(1, Fd)                            # (1, F)

    def const(shape):
        return pl.BlockSpec(shape, lambda i: (0,) * len(shape))

    kern = functools.partial(_lookback_kernel, num_heads=H, eps=1e-5)
    # Batch folded into the block: grid=(1,) -> single invocation, no per-batch
    # serial-step / DMA overhead.  (v7x: at production sizes, split the batch
    # into 2 "parallel" chunks to use both TensorCores.)
    out = pl.pallas_call(
        kern,
        out_shape=jax.ShapeDtypeStruct((T, B, C), x.dtype),
        grid=(1,),
        in_specs=[
            pl.BlockSpec((T, B, C), lambda i: (0, 0, 0)),       # x  (natural)
            pl.BlockSpec((S, B, C), lambda i: (0, 0, 0)),       # wav (natural)
            pl.BlockSpec((B, S), lambda i: (0, 0)),             # pad mask
            const((C, C)), const((C, C)), const((C, C)),        # wq, wk, wv
            const((C, C)),                                      # wo
            const((C, Fd)), const((Fd, C)),                     # w1, w2
            const((9, C)), const((1, Fd)),                      # bias slabs
        ],
        out_specs=pl.BlockSpec((T, B, C), lambda i: (0, 0, 0)),
        compiler_params=pltpu.CompilerParams(
            dimension_semantics=("arbitrary",),
            vmem_limit_bytes=32 * 1024 * 1024),
    )(x, wav_feature, mask_f,
      wq_t, wk_t, wv_t, wo_t, w1_t, w2_t, bias_c, b1)

    return out                                                  # (T, B, C)


# ------------------------------ pure-JAX reference ---------------------------


def lookback_reference(x, wav_feature, pad_mask, params, num_heads):
    T, B, C = x.shape
    S = wav_feature.shape[0]
    H = num_heads
    D = C // H
    scale = float(D) ** -0.5

    x2 = x.reshape(T * B, C)
    kv2 = wav_feature.reshape(S * B, C)
    q = x2 @ params["wq"].T + params["bq"]
    k = kv2 @ params["wk"].T + params["bk"]
    v = kv2 @ params["wv"].T + params["bv"]
    q = q.reshape(T, B, H, D).transpose(1, 2, 0, 3) * scale
    k = k.reshape(S, B, H, D).transpose(1, 2, 0, 3)
    v = v.reshape(S, B, H, D).transpose(1, 2, 0, 3)
    s = jnp.einsum("bhtd,bhsd->bhts", q, k)
    s = s + pad_mask[:, None, None, :].astype(jnp.float32) * (-1e9)
    p = jax.nn.softmax(s, axis=-1)
    attn = jnp.einsum("bhts,bhsd->bhtd", p, v)
    attn = attn.transpose(2, 0, 1, 3).reshape(T * B, C)
    attn = attn @ params["wo"].T + params["bo"]

    def ln(z, g, b, eps=1e-5):
        mu = jnp.mean(z, axis=-1, keepdims=True)
        var = jnp.mean((z - mu) ** 2, axis=-1, keepdims=True)
        return (z - mu) * jax.lax.rsqrt(var + eps) * g + b

    h = ln(attn + x2, params["ln1_g"], params["ln1_b"])
    f = h @ params["w1"].T + params["b1"]
    f = f * jax.nn.sigmoid(f)
    f = f @ params["w2"].T + params["b2"]
    h = ln(f + h, params["ln2_g"], params["ln2_b"])
    return h.reshape(T, B, C)


# ---------------------------------- main -------------------------------------


def init_params(key, embed_dim, ffn_dim):
    keys = jax.random.split(key, 16)
    s_e = 1.0 / np.sqrt(embed_dim)
    s_f = 1.0 / np.sqrt(ffn_dim)
    n = jax.random.normal
    return {
        # torch nn.Linear layout: weight (out_features, in_features)
        "wq": n(keys[0], (embed_dim, embed_dim), jnp.float32) * s_e,
        "bq": n(keys[1], (embed_dim,), jnp.float32) * 0.02,
        "wk": n(keys[2], (embed_dim, embed_dim), jnp.float32) * s_e,
        "bk": n(keys[3], (embed_dim,), jnp.float32) * 0.02,
        "wv": n(keys[4], (embed_dim, embed_dim), jnp.float32) * s_e,
        "bv": n(keys[5], (embed_dim,), jnp.float32) * 0.02,
        "wo": n(keys[6], (embed_dim, embed_dim), jnp.float32) * s_e,
        "bo": n(keys[7], (embed_dim,), jnp.float32) * 0.02,
        "w1": n(keys[8], (ffn_dim, embed_dim), jnp.float32) * s_e,
        "b1": n(keys[9], (ffn_dim,), jnp.float32) * 0.02,
        "w2": n(keys[10], (embed_dim, ffn_dim), jnp.float32) * s_f,
        "b2": n(keys[11], (embed_dim,), jnp.float32) * 0.02,
        "ln1_g": 1.0 + 0.1 * n(keys[12], (embed_dim,), jnp.float32),
        "ln1_b": 0.05 * n(keys[13], (embed_dim,), jnp.float32),
        "ln2_g": 1.0 + 0.1 * n(keys[14], (embed_dim,), jnp.float32),
        "ln2_b": 0.05 * n(keys[15], (embed_dim,), jnp.float32),
    }


if __name__ == "__main__":
    # cfg: encoder_embed_dim=32, encoder_attention_heads=4, encoder_ffn_embed_dim=64
    T, S, B, C, H, FFN = 8, 16, 2, 32, 4, 64

    key = jax.random.PRNGKey(0)
    k_x, k_w, k_p = jax.random.split(key, 3)

    x = jax.random.normal(k_x, (T, B, C), jnp.float32)        # query (shrunk units)
    wav = jax.random.normal(k_w, (S, B, C), jnp.float32)      # wav_feature
    # bf_shrink_padding_mask: True = padding (last 4 frames of batch 1 padded)
    pad_mask = jnp.zeros((B, S), jnp.bool_).at[1, S - 4:].set(True)

    params = init_params(k_p, C, FFN)

    out = lookback_forward(x, wav, pad_mask, params, num_heads=H)
    out = jax.block_until_ready(out)

    ref = lookback_reference(x, wav, pad_mask, params, num_heads=H)
    # Tolerance loosened vs. the f32 reference because MXU operands (weights +
    # activations) are cast to bf16 in the kernel (f32 accumulation kept).
    np.testing.assert_allclose(np.asarray(out), np.asarray(ref),
                               rtol=5e-2, atol=5e-2)

    print("KERNEL_OK")
</pallas_src>

<mosaic_0001>
module attributes {stable_mosaic.version = 11 : i64} {
  func.func @_lookback_kernel(%arg0: i32, %arg1: memref<8x2x32xf32, #tpu.memory_space<vmem>>, %arg2: memref<16x2x32xf32, #tpu.memory_space<vmem>>, %arg3: memref<2x16xf32, #tpu.memory_space<vmem>>, %arg4: memref<32x32xbf16, #tpu.memory_space<vmem>>, %arg5: memref<32x32xbf16, #tpu.memory_space<vmem>>, %arg6: memref<32x32xbf16, #tpu.memory_space<vmem>>, %arg7: memref<32x32xbf16, #tpu.memory_space<vmem>>, %arg8: memref<32x64xbf16, #tpu.memory_space<vmem>>, %arg9: memref<64x32xbf16, #tpu.memory_space<vmem>>, %arg10: memref<9x32xf32, #tpu.memory_space<vmem>>, %arg11: memref<1x64xf32, #tpu.memory_space<vmem>>, %arg12: memref<8x2x32xf32, #tpu.memory_space<vmem>>) attributes {dimension_semantics = [#tpu.dimension_semantics<arbitrary>], iteration_bounds = array<i64: 1>, scalar_prefetch = 0 : i64, scratch_operands = 0 : i64, tpu.core_type = #tpu.core_type<tc>, window_params = [{pipeline_mode = #tpu.pipeline_mode<synchronous>, transform_indices = @transform_0, window_bounds = array<i64: 8, 2, 32>}, {pipeline_mode = #tpu.pipeline_mode<synchronous>, transform_indices = @transform_1, window_bounds = array<i64: 16, 2, 32>}, {pipeline_mode = #tpu.pipeline_mode<synchronous>, transform_indices = @transform_2, window_bounds = array<i64: 2, 16>}, {pipeline_mode = #tpu.pipeline_mode<synchronous>, transform_indices = @transform_3, window_bounds = array<i64: 32, 32>}, {pipeline_mode = #tpu.pipeline_mode<synchronous>, transform_indices = @transform_4, window_bounds = array<i64: 32, 32>}, {pipeline_mode = #tpu.pipeline_mode<synchronous>, transform_indices = @transform_5, window_bounds = array<i64: 32, 32>}, {pipeline_mode = #tpu.pipeline_mode<synchronous>, transform_indices = @transform_6, window_bounds = array<i64: 32, 32>}, {pipeline_mode = #tpu.pipeline_mode<synchronous>, transform_indices = @transform_7, window_bounds = array<i64: 32, 64>}, {pipeline_mode = #tpu.pipeline_mode<synchronous>, transform_indices = @transform_8, window_bounds = array<i64: 64, 32>}, {pipeline_mode = #tpu.pipeline_mode<synchronous>, transform_indices = @transform_9, window_bounds = array<i64: 9, 32>}, {pipeline_mode = #tpu.pipeline_mode<synchronous>, transform_indices = @transform_10, window_bounds = array<i64: 1, 64>}, {pipeline_mode = #tpu.pipeline_mode<synchronous>, transform_indices = @transform_11, window_bounds = array<i64: 8, 2, 32>}]} {
    %c0 = arith.constant 0 : index
    %c0_0 = arith.constant 0 : index
    %c0_1 = arith.constant 0 : index
    %0 = vector.load %arg1[%c0, %c0_0, %c0_1] : memref<8x2x32xf32, #tpu.memory_space<vmem>>, vector<8x2x32xf32>
    %1 = vector.shape_cast %0 : vector<8x2x32xf32> to vector<16x32xf32>
    %c0_2 = arith.constant 0 : index
    %c0_3 = arith.constant 0 : index
    %c0_4 = arith.constant 0 : index
    %2 = vector.load %arg2[%c0_2, %c0_3, %c0_4] : memref<16x2x32xf32, #tpu.memory_space<vmem>>, vector<16x2x32xf32>
    %3 = vector.shape_cast %2 : vector<16x2x32xf32> to vector<32x32xf32>
    %c0_5 = arith.constant 0 : index
    %c0_6 = arith.constant 0 : index
    %4 = vector.load %arg10[%c0_5, %c0_6] : memref<9x32xf32, #tpu.memory_space<vmem>>, vector<9x32xf32>
    %5 = vector.extract_strided_slice %4 {offsets = [0, 0], sizes = [1, 32], strides = [1, 1]} : vector<9x32xf32> to vector<1x32xf32>
    %6 = vector.extract_strided_slice %4 {offsets = [1, 0], sizes = [1, 32], strides = [1, 1]} : vector<9x32xf32> to vector<1x32xf32>
    %7 = vector.extract_strided_slice %4 {offsets = [2, 0], sizes = [1, 32], strides = [1, 1]} : vector<9x32xf32> to vector<1x32xf32>
    %8 = vector.extract_strided_slice %4 {offsets = [3, 0], sizes = [1, 32], strides = [1, 1]} : vector<9x32xf32> to vector<1x32xf32>
    %9 = vector.extract_strided_slice %4 {offsets = [4, 0], sizes = [1, 32], strides = [1, 1]} : vector<9x32xf32> to vector<1x32xf32>
    %10 = vector.extract_strided_slice %4 {offsets = [5, 0], sizes = [1, 32], strides = [1, 1]} : vector<9x32xf32> to vector<1x32xf32>
    %11 = vector.extract_strided_slice %4 {offsets = [6, 0], sizes = [1, 32], strides = [1, 1]} : vector<9x32xf32> to vector<1x32xf32>
    %12 = vector.extract_strided_slice %4 {offsets = [7, 0], sizes = [1, 32], strides = [1, 1]} : vector<9x32xf32> to vector<1x32xf32>
    %13 = vector.extract_strided_slice %4 {offsets = [8, 0], sizes = [1, 32], strides = [1, 1]} : vector<9x32xf32> to vector<1x32xf32>
    %c0_7 = arith.constant 0 : index
    %c0_8 = arith.constant 0 : index
    %14 = vector.load %arg11[%c0_7, %c0_8] : memref<1x64xf32, #tpu.memory_space<vmem>>, vector<1x64xf32>
    %15 = arith.truncf %1 : vector<16x32xf32> to vector<16x32xbf16>
    %16 = arith.truncf %3 : vector<32x32xf32> to vector<32x32xbf16>
    %c0_9 = arith.constant 0 : index
    %c0_10 = arith.constant 0 : index
    %17 = vector.load %arg4[%c0_9, %c0_10] : memref<32x32xbf16, #tpu.memory_space<vmem>>, vector<32x32xbf16>
    %cst = arith.constant dense<0.000000e+00> : vector<16x32xf32>
    %18 = tpu.matmul %15, %17, %cst {dimension_numbers = #tpu.dot_dimension_numbers<[1], [0], [0], [1], [0, 0, 1, 1], [], []>} : vector<16x32xbf16>, vector<32x32xbf16>, vector<16x32xf32> -> vector<16x32xf32>
    %19 = vector.broadcast %5 : vector<1x32xf32> to vector<16x32xf32>
    %20 = arith.addf %18, %19 : vector<16x32xf32>
    %c0_11 = arith.constant 0 : index
    %c0_12 = arith.constant 0 : index
    %21 = vector.load %arg5[%c0_11, %c0_12] : memref<32x32xbf16, #tpu.memory_space<vmem>>, vector<32x32xbf16>
    %cst_13 = arith.constant dense<0.000000e+00> : vector<32x32xf32>
    %22 = tpu.matmul %16, %21, %cst_13 {dimension_numbers = #tpu.dot_dimension_numbers<[1], [0], [0], [1], [0, 0, 1, 1], [], []>} : vector<32x32xbf16>, vector<32x32xbf16>, vector<32x32xf32> -> vector<32x32xf32>
    %23 = vector.broadcast %6 : vector<1x32xf32> to vector<32x32xf32>
    %24 = arith.addf %22, %23 : vector<32x32xf32>
    %c0_14 = arith.constant 0 : index
    %c0_15 = arith.constant 0 : index
    %25 = vector.load %arg6[%c0_14, %c0_15] : memref<32x32xbf16, #tpu.memory_space<vmem>>, vector<32x32xbf16>
    %cst_16 = arith.constant dense<0.000000e+00> : vector<32x32xf32>
    %26 = tpu.matmul %16, %25, %cst_16 {dimension_numbers = #tpu.dot_dimension_numbers<[1], [0], [0], [1], [0, 0, 1, 1], [], []>} : vector<32x32xbf16>, vector<32x32xbf16>, vector<32x32xf32> -> vector<32x32xf32>
    %27 = vector.broadcast %7 : vector<1x32xf32> to vector<32x32xf32>
    %28 = arith.addf %26, %27 : vector<32x32xf32>
    %29 = vector.shape_cast %20 : vector<16x32xf32> to vector<8x2x4x8xf32>
    %30 = tpu.transpose %29, [1, 2, 0, 3] : vector<8x2x4x8xf32> -> vector<2x4x8x8xf32>
    %31 = vector.shape_cast %30 : vector<2x4x8x8xf32> to vector<8x8x8xf32>
    %32 = vector.shape_cast %24 : vector<32x32xf32> to vector<16x2x4x8xf32>
    %33 = tpu.transpose %32, [1, 2, 0, 3] : vector<16x2x4x8xf32> -> vector<2x4x16x8xf32>
    %34 = vector.shape_cast %33 : vector<2x4x16x8xf32> to vector<8x16x8xf32>
    %35 = vector.shape_cast %28 : vector<32x32xf32> to vector<16x2x4x8xf32>
    %36 = tpu.transpose %35, [1, 2, 0, 3] : vector<16x2x4x8xf32> -> vector<2x4x16x8xf32>
    %37 = vector.shape_cast %36 : vector<2x4x16x8xf32> to vector<8x16x8xf32>
    %38 = arith.truncf %31 : vector<8x8x8xf32> to vector<8x8x8xbf16>
    %39 = arith.truncf %34 : vector<8x16x8xf32> to vector<8x16x8xbf16>
    "tpu.trace_start"() <{level = 10 : i32, message = "bqd,bkd->bqk"}> : () -> ()
    %cst_17 = arith.constant dense<0.000000e+00> : vector<8x8x16xf32>
    %40 = tpu.matmul %38, %39, %cst_17 {dimension_numbers = #tpu.dot_dimension_numbers<[2], [2], [1], [1], [0, 0, 0, 1, 1, 1], [0], [0]>} : vector<8x8x8xbf16>, vector<8x16x8xbf16>, vector<8x8x16xf32> -> vector<8x8x16xf32>
    "tpu.trace_stop"() : () -> ()
    %c0_18 = arith.constant 0 : index
    %c0_19 = arith.constant 0 : index
    %41 = vector.load %arg3[%c0_18, %c0_19] : memref<2x16xf32, #tpu.memory_space<vmem>>, vector<2x16xf32>
    %cst_20 = arith.constant -1.000000e+09 : f32
    %42 = vector.broadcast %cst_20 : f32 to vector<2x16xf32>
    %43 = arith.mulf %41, %42 : vector<2x16xf32>
    %44 = vector.shape_cast %40 : vector<8x8x16xf32> to vector<2x4x8x16xf32>
    %45 = vector.shape_cast %43 : vector<2x16xf32> to vector<2x1x1x16xf32>
    %46 = vector.broadcast %45 : vector<2x1x1x16xf32> to vector<2x4x8x16xf32>
    %47 = arith.addf %44, %46 : vector<2x4x8x16xf32>
    %cst_21 = arith.constant dense<0xFF800000> : vector<2x4x8xf32>
    %48 = vector.multi_reduction <maximumf>, %47, %cst_21 [3] : vector<2x4x8x16xf32> to vector<2x4x8xf32>
    %49 = vector.shape_cast %48 : vector<2x4x8xf32> to vector<2x4x8x1xf32>
    %50 = vector.broadcast %49 : vector<2x4x8x1xf32> to vector<2x4x8x16xf32>
    %51 = arith.subf %47, %50 : vector<2x4x8x16xf32>
    %52 = math.exp %51 : vector<2x4x8x16xf32>
    %cst_22 = arith.constant dense<0.000000e+00> : vector<2x4x8xf32>
    %53 = vector.multi_reduction <add>, %52, %cst_22 [3] : vector<2x4x8x16xf32> to vector<2x4x8xf32>
    %54 = vector.shape_cast %53 : vector<2x4x8xf32> to vector<2x4x8x1xf32>
    %55 = tpu.reciprocal %54 {approx = true} : vector<2x4x8x1xf32> -> vector<2x4x8x1xf32>
    %56 = vector.broadcast %55 : vector<2x4x8x1xf32> to vector<2x4x8x16xf32>
    %57 = arith.mulf %52, %56 : vector<2x4x8x16xf32>
    %58 = vector.shape_cast %57 : vector<2x4x8x16xf32> to vector<8x8x16xf32>
    %59 = arith.truncf %58 : vector<8x8x16xf32> to vector<8x8x16xbf16>
    %60 = arith.truncf %37 : vector<8x16x8xf32> to vector<8x16x8xbf16>
    "tpu.trace_start"() <{level = 10 : i32, message = "bqk,bkd->bqd"}> : () -> ()
    %cst_23 = arith.constant dense<0.000000e+00> : vector<8x8x8xf32>
    %61 = tpu.matmul %59, %60, %cst_23 {dimension_numbers = #tpu.dot_dimension_numbers<[2], [1], [1], [2], [0, 0, 0, 1, 1, 2], [0], [0]>} : vector<8x8x16xbf16>, vector<8x16x8xbf16>, vector<8x8x8xf32> -> vector<8x8x8xf32>
    "tpu.trace_stop"() : () -> ()
    %62 = vector.shape_cast %61 : vector<8x8x8xf32> to vector<2x4x8x8xf32>
    %63 = tpu.transpose %62, [2, 0, 1, 3] : vector<2x4x8x8xf32> -> vector<8x2x4x8xf32>
    %64 = vector.shape_cast %63 : vector<8x2x4x8xf32> to vector<16x32xf32>
    %65 = arith.truncf %64 : vector<16x32xf32> to vector<16x32xbf16>
    %c0_24 = arith.constant 0 : index
    %c0_25 = arith.constant 0 : index
    %66 = vector.load %arg7[%c0_24, %c0_25] : memref<32x32xbf16, #tpu.memory_space<vmem>>, vector<32x32xbf16>
    %cst_26 = arith.constant dense<0.000000e+00> : vector<16x32xf32>
    %67 = tpu.matmul %65, %66, %cst_26 {dimension_numbers = #tpu.dot_dimension_numbers<[1], [0], [0], [1], [0, 0, 1, 1], [], []>} : vector<16x32xbf16>, vector<32x32xbf16>, vector<16x32xf32> -> vector<16x32xf32>
    %68 = vector.broadcast %8 : vector<1x32xf32> to vector<16x32xf32>
    %69 = arith.addf %67, %68 : vector<16x32xf32>
    %70 = arith.addf %69, %1 : vector<16x32xf32>
    %cst_27 = arith.constant dense<0.000000e+00> : vector<16xf32>
    %71 = vector.multi_reduction <add>, %70, %cst_27 [1] : vector<16x32xf32> to vector<16xf32>
    %72 = vector.shape_cast %71 : vector<16xf32> to vector<16x1xf32>
    %cst_28 = arith.constant 3.200000e+01 : f32
    %73 = vector.broadcast %cst_28 : f32 to vector<16x1xf32>
    %74 = arith.divf %72, %73 : vector<16x1xf32>
    %75 = vector.broadcast %74 : vector<16x1xf32> to vector<16x32xf32>
    %76 = arith.subf %70, %75 : vector<16x32xf32>
    %77 = arith.mulf %76, %76 : vector<16x32xf32>
    %cst_29 = arith.constant dense<0.000000e+00> : vector<16xf32>
    %78 = vector.multi_reduction <add>, %77, %cst_29 [1] : vector<16x32xf32> to vector<16xf32>
    %79 = vector.shape_cast %78 : vector<16xf32> to vector<16x1xf32>
    %cst_30 = arith.constant 3.200000e+01 : f32
    %80 = vector.broadcast %cst_30 : f32 to vector<16x1xf32>
    %81 = arith.divf %79, %80 : vector<16x1xf32>
    %82 = vector.broadcast %74 : vector<16x1xf32> to vector<16x32xf32>
    %83 = arith.subf %70, %82 : vector<16x32xf32>
    %cst_31 = arith.constant 9.99999974E-6 : f32
    %84 = vector.broadcast %cst_31 : f32 to vector<16x1xf32>
    %85 = arith.addf %81, %84 : vector<16x1xf32>
    %86 = math.rsqrt %85 : vector<16x1xf32>
    %87 = vector.broadcast %86 : vector<16x1xf32> to vector<16x32xf32>
    %88 = arith.mulf %83, %87 : vector<16x32xf32>
    %89 = vector.broadcast %9 : vector<1x32xf32> to vector<16x32xf32>
    %90 = arith.mulf %88, %89 : vector<16x32xf32>
    %91 = vector.broadcast %10 : vector<1x32xf32> to vector<16x32xf32>
    %92 = arith.addf %90, %91 : vector<16x32xf32>
    %93 = arith.truncf %92 : vector<16x32xf32> to vector<16x32xbf16>
    %c0_32 = arith.constant 0 : index
    %c0_33 = arith.constant 0 : index
    %94 = vector.load %arg8[%c0_32, %c0_33] : memref<32x64xbf16, #tpu.memory_space<vmem>>, vector<32x64xbf16>
    %cst_34 = arith.constant dense<0.000000e+00> : vector<16x64xf32>
    %95 = tpu.matmul %93, %94, %cst_34 {dimension_numbers = #tpu.dot_dimension_numbers<[1], [0], [0], [1], [0, 0, 1, 1], [], []>} : vector<16x32xbf16>, vector<32x64xbf16>, vector<16x64xf32> -> vector<16x64xf32>
    %96 = vector.broadcast %14 : vector<1x64xf32> to vector<16x64xf32>
    %97 = arith.addf %95, %96 : vector<16x64xf32>
    %98 = arith.negf %97 : vector<16x64xf32>
    %99 = math.exp %98 : vector<16x64xf32>
    %cst_35 = arith.constant 1.000000e+00 : f32
    %100 = vector.broadcast %cst_35 : f32 to vector<16x64xf32>
    %101 = arith.addf %100, %99 : vector<16x64xf32>
    %102 = arith.divf %100, %101 : vector<16x64xf32>
    %103 = arith.mulf %97, %102 : vector<16x64xf32>
    %104 = arith.truncf %103 : vector<16x64xf32> to vector<16x64xbf16>
    %c0_36 = arith.constant 0 : index
    %c0_37 = arith.constant 0 : index
    %105 = vector.load %arg9[%c0_36, %c0_37] : memref<64x32xbf16, #tpu.memory_space<vmem>>, vector<64x32xbf16>
    %cst_38 = arith.constant dense<0.000000e+00> : vector<16x32xf32>
    %106 = tpu.matmul %104, %105, %cst_38 {dimension_numbers = #tpu.dot_dimension_numbers<[1], [0], [0], [1], [0, 0, 1, 1], [], []>} : vector<16x64xbf16>, vector<64x32xbf16>, vector<16x32xf32> -> vector<16x32xf32>
    %107 = vector.broadcast %11 : vector<1x32xf32> to vector<16x32xf32>
    %108 = arith.addf %106, %107 : vector<16x32xf32>
    %109 = arith.addf %108, %92 : vector<16x32xf32>
    %cst_39 = arith.constant dense<0.000000e+00> : vector<16xf32>
    %110 = vector.multi_reduction <add>, %109, %cst_39 [1] : vector<16x32xf32> to vector<16xf32>
    %111 = vector.shape_cast %110 : vector<16xf32> to vector<16x1xf32>
    %cst_40 = arith.constant 3.200000e+01 : f32
    %112 = vector.broadcast %cst_40 : f32 to vector<16x1xf32>
    %113 = arith.divf %111, %112 : vector<16x1xf32>
    %114 = vector.broadcast %113 : vector<16x1xf32> to vector<16x32xf32>
    %115 = arith.subf %109, %114 : vector<16x32xf32>
    %116 = arith.mulf %115, %115 : vector<16x32xf32>
    %cst_41 = arith.constant dense<0.000000e+00> : vector<16xf32>
    %117 = vector.multi_reduction <add>, %116, %cst_41 [1] : vector<16x32xf32> to vector<16xf32>
    %118 = vector.shape_cast %117 : vector<16xf32> to vector<16x1xf32>
    %cst_42 = arith.constant 3.200000e+01 : f32
    %119 = vector.broadcast %cst_42 : f32 to vector<16x1xf32>
    %120 = arith.divf %118, %119 : vector<16x1xf32>
    %121 = vector.broadcast %113 : vector<16x1xf32> to vector<16x32xf32>
    %122 = arith.subf %109, %121 : vector<16x32xf32>
    %cst_43 = arith.constant 9.99999974E-6 : f32
    %123 = vector.broadcast %cst_43 : f32 to vector<16x1xf32>
    %124 = arith.addf %120, %123 : vector<16x1xf32>
    %125 = math.rsqrt %124 : vector<16x1xf32>
    %126 = vector.broadcast %125 : vector<16x1xf32> to vector<16x32xf32>
    %127 = arith.mulf %122, %126 : vector<16x32xf32>
    %128 = vector.broadcast %12 : vector<1x32xf32> to vector<16x32xf32>
    %129 = arith.mulf %127, %128 : vector<16x32xf32>
    %130 = vector.broadcast %13 : vector<1x32xf32> to vector<16x32xf32>
    %131 = arith.addf %129, %130 : vector<16x32xf32>
    %132 = vector.shape_cast %131 : vector<16x32xf32> to vector<8x2x32xf32>
    %c0_44 = arith.constant 0 : index
    %c0_45 = arith.constant 0 : index
    %c0_46 = arith.constant 0 : index
    %133 = vector.load %arg12[%c0_44, %c0_45, %c0_46] : memref<8x2x32xf32, #tpu.memory_space<vmem>>, vector<8x2x32xf32>
    tpu.vector_store %arg12[%c0_44, %c0_45, %c0_46], %132 {strides = array<i32>} : memref<8x2x32xf32, #tpu.memory_space<vmem>>, vector<8x2x32xf32>,
    return
  }
  func.func @transform_0(%arg0: i32) -> (i32, i32, i32) {
    %c0_i32 = arith.constant 0 : i32
    %c0_i32_0 = arith.constant 0 : i32
    %c0_i32_1 = arith.constant 0 : i32
    %c0_i32_2 = arith.constant 0 : i32
    return %c0_i32, %c0_i32_0, %c0_i32_1 : i32, i32, i32
  }
  func.func @transform_1(%arg0: i32) -> (i32, i32, i32) {
    %c0_i32 = arith.constant 0 : i32
    %c0_i32_0 = arith.constant 0 : i32
    %c0_i32_1 = arith.constant 0 : i32
    %c0_i32_2 = arith.constant 0 : i32
    return %c0_i32, %c0_i32_0, %c0_i32_1 : i32, i32, i32
  }
  func.func @transform_2(%arg0: i32) -> (i32, i32) {
    %c0_i32 = arith.constant 0 : i32
    %c0_i32_0 = arith.constant 0 : i32
    %c0_i32_1 = arith.constant 0 : i32
    return %c0_i32, %c0_i32_0 : i32, i32
  }
  func.func @transform_3(%arg0: i32) -> (i32, i32) {
    %c0_i32 = arith.constant 0 : i32
    %c0_i32_0 = arith.constant 0 : i32
    %c0_i32_1 = arith.constant 0 : i32
    return %c0_i32, %c0_i32_0 : i32, i32
  }
  func.func @transform_4(%arg0: i32) -> (i32, i32) {
    %c0_i32 = arith.constant 0 : i32
    %c0_i32_0 = arith.constant 0 : i32
    %c0_i32_1 = arith.constant 0 : i32
    return %c0_i32, %c0_i32_0 : i32, i32
  }
  func.func @transform_5(%arg0: i32) -> (i32, i32) {
    %c0_i32 = arith.constant 0 : i32
    %c0_i32_0 = arith.constant 0 : i32
    %c0_i32_1 = arith.constant 0 : i32
    return %c0_i32, %c0_i32_0 : i32, i32
  }
  func.func @transform_6(%arg0: i32) -> (i32, i32) {
    %c0_i32 = arith.constant 0 : i32
    %c0_i32_0 = arith.constant 0 : i32
    %c0_i32_1 = arith.constant 0 : i32
    return %c0_i32, %c0_i32_0 : i32, i32
  }
  func.func @transform_7(%arg0: i32) -> (i32, i32) {
    %c0_i32 = arith.constant 0 : i32
    %c0_i32_0 = arith.constant 0 : i32
    %c0_i32_1 = arith.constant 0 : i32
    return %c0_i32, %c0_i32_0 : i32, i32
  }
  func.func @transform_8(%arg0: i32) -> (i32, i32) {
    %c0_i32 = arith.constant 0 : i32
    %c0_i32_0 = arith.constant 0 : i32
    %c0_i32_1 = arith.constant 0 : i32
    return %c0_i32, %c0_i32_0 : i32, i32
  }
  func.func @transform_9(%arg0: i32) -> (i32, i32) {
    %c0_i32 = arith.constant 0 : i32
    %c0_i32_0 = arith.constant 0 : i32
    %c0_i32_1 = arith.constant 0 : i32
    return %c0_i32, %c0_i32_0 : i32, i32
  }
  func.func @transform_10(%arg0: i32) -> (i32, i32) {
    %c0_i32 = arith.constant 0 : i32
    %c0_i32_0 = arith.constant 0 : i32
    %c0_i32_1 = arith.constant 0 : i32
    return %c0_i32, %c0_i32_0 : i32, i32
  }
  func.func @transform_11(%arg0: i32) -> (i32, i32, i32) {
    %c0_i32 = arith.constant 0 : i32
    %c0_i32_0 = arith.constant 0 : i32
    %c0_i32_1 = arith.constant 0 : i32
    %c0_i32_2 = arith.constant 0 : i32
    return %c0_i32, %c0_i32_0, %c0_i32_1 : i32, i32, i32
  }
}

</mosaic_0001>

<llo_original>
// kernel: lookback_forward.1
$region0: #{lookback_forward.1}
  #allocation0 [shape = 'u32[]', space=smem, size = 0x4, offset = 0x4, fixed_abs, tag = 'smem constant byte address 0x4 - core index']
  #allocation1 [shape = 'u32[144,128]{1,0:T(1,128)}', space=vmem, size = 0x12000, scoped, tag = 'internal scratch']
  %s0 = inlined_call_operand.vmem [shape: f32[8,2,32], index: 0, kind: input, shape index: {}]
  %s1 = inlined_call_operand.vmem [shape: f32[16,2,32], index: 1, kind: input, shape index: {}]
  %s2 = inlined_call_operand.vmem [shape: f32[2,16], index: 2, kind: input, shape index: {}]
  %s3 = inlined_call_operand.vmem [shape: bf16[32,32], index: 3, kind: input, shape index: {}]
  %s4 = inlined_call_operand.vmem [shape: bf16[32,32], index: 4, kind: input, shape index: {}]
  %s5 = inlined_call_operand.vmem [shape: bf16[32,32], index: 5, kind: input, shape index: {}]
  %s6 = inlined_call_operand.vmem [shape: bf16[32,32], index: 6, kind: input, shape index: {}]
  %s7 = inlined_call_operand.vmem [shape: bf16[32,64], index: 7, kind: input, shape index: {}]
  %s8 = inlined_call_operand.vmem [shape: bf16[64,32], index: 8, kind: input, shape index: {}]
  %s9 = inlined_call_operand.vmem [shape: f32[9,32], index: 9, kind: input, shape index: {}]
  %s10 = inlined_call_operand.vmem [shape: f32[1,64], index: 10, kind: input, shape index: {}]
  %s11 = inlined_call_operand.hbm [shape: f32[8,2,32], index: 11, kind: output, shape index: {}]
  %s12 = sld [smem:[#allocation0]]
  $region54: #{lookback_forward.1} parent=0
    _
  %s14 = ssub.s32 1, %s12
  %s15 = scalar_select 0, %s14, %s12
  $region1: #{lookback_forward.1} parent=0
    #allocation2 [shape = 'u8[8192]{0}', space=vmem, size = 0x2000, scoped, tag = 'output window, operand 0, single buffered']
    #allocation3 [shape = 's32[1]{0}', space=sflag, size = 0x4, scoped, tag = 'scoped memory for lookback_forward.1']
    %16 = vsyncpa [#allocation3], 0
    // Predicated region
    $region2: #{lookback_forward.1} parent=1 // pred_check
      _
    $region3: #{lookback_forward.1} parent=1 // pred_check_branch
      %18 = sbr.rel (0) target = $region5
    $region4: #{lookback_forward.1} parent=1 // pred_region
      _
    $region5: #{lookback_forward.1} parent=1 // pred_fallthru
      _
    // Predicated region
    $region6: #{lookback_forward.1} parent=1 // pred_check
      _
    $region7: #{lookback_forward.1} parent=1 // pred_check_branch
      %20 = sbr.rel (0) target = $region9
    $region8: #{lookback_forward.1} parent=1 // pred_region
      _
    $region9: #{lookback_forward.1} parent=1 // pred_fallthru
      _
    // Predicated region
    $region10: #{lookback_forward.1} parent=1 // pred_check
      _
    $region11: #{lookback_forward.1} parent=1 // pred_check_branch
      %22 = sbr.rel (0) target = $region13
    $region12: #{lookback_forward.1} parent=1 // pred_region
      _
    $region13: #{lookback_forward.1} parent=1 // pred_fallthru
      _
    // Predicated region
    $region14: #{lookback_forward.1} parent=1 // pred_check
      _
    $region15: #{lookback_forward.1} parent=1 // pred_check_branch
      %24 = sbr.rel (0) target = $region17
    $region16: #{lookback_forward.1} parent=1 // pred_region
      _
    $region17: #{lookback_forward.1} parent=1 // pred_fallthru
      _
    // Predicated region
    $region18: #{lookback_forward.1} parent=1 // pred_check
      _
    $region19: #{lookback_forward.1} parent=1 // pred_check_branch
      %26 = sbr.rel (0) target = $region21
    $region20: #{lookback_forward.1} parent=1 // pred_region
      _
    $region21: #{lookback_forward.1} parent=1 // pred_fallthru
      _
    // Predicated region
    $region22: #{lookback_forward.1} parent=1 // pred_check
      _
    $region23: #{lookback_forward.1} parent=1 // pred_check_branch
      %28 = sbr.rel (0) target = $region25
    $region24: #{lookback_forward.1} parent=1 // pred_region
      _
    $region25: #{lookback_forward.1} parent=1 // pred_fallthru
      _
    // Predicated region
    $region26: #{lookback_forward.1} parent=1 // pred_check
      _
    $region27: #{lookback_forward.1} parent=1 // pred_check_branch
      %30 = sbr.rel (0) target = $region29
    $region28: #{lookback_forward.1} parent=1 // pred_region
      _
    $region29: #{lookback_forward.1} parent=1 // pred_fallthru
      _
    // Predicated region
    $region30: #{lookback_forward.1} parent=1 // pred_check
      _
    $region31: #{lookback_forward.1} parent=1 // pred_check_branch
      %32 = sbr.rel (0) target = $region33
    $region32: #{lookback_forward.1} parent=1 // pred_region
      _
    $region33: #{lookback_forward.1} parent=1 // pred_fallthru
      _
    // Predicated region
    $region34: #{lookback_forward.1} parent=1 // pred_check
      _
    $region35: #{lookback_forward.1} parent=1 // pred_check_branch
      %34 = sbr.rel (0) target = $region37
    $region36: #{lookback_forward.1} parent=1 // pred_region
      _
    $region37: #{lookback_forward.1} parent=1 // pred_fallthru
      _
    // Predicated region
    $region38: #{lookback_forward.1} parent=1 // pred_check
      _
    $region39: #{lookback_forward.1} parent=1 // pred_check_branch
      %36 = sbr.rel (0) target = $region41
    $region40: #{lookback_forward.1} parent=1 // pred_region
      _
    $region41: #{lookback_forward.1} parent=1 // pred_fallthru
      _
    // Predicated region
    $region42: #{lookback_forward.1} parent=1 // pred_check
      _
    $region43: #{lookback_forward.1} parent=1 // pred_check_branch
      %38 = sbr.rel (0) target = $region45
    $region44: #{lookback_forward.1} parent=1 // pred_region
      _
    $region45: #{lookback_forward.1} parent=1 // pred_fallthru
      _
    %v40 = vld [vmem:[%s0] sm:$0x3]
    %v41 = vld [vmem:[%s0 + $0x2] sm:$0x3]
    %v42 = vld [vmem:[%s0 + $0x4] sm:$0x3]
    %v43 = vld [vmem:[%s0 + $0x6] sm:$0x3]
    %v44 = vld [vmem:[%s0 + $0x8] sm:$0x3]
    %v45 = vld [vmem:[%s0 + $0xa] sm:$0x3]
    %v46 = vld [vmem:[%s0 + $0xc] sm:$0x3]
    %v47 = vld [vmem:[%s0 + $0xe] sm:$0x3]
    %v48 = vld [vmem:[%s1] sm:$0x3]
    %v49 = vld [vmem:[%s1 + $0x2] sm:$0x3]
    %v50 = vld [vmem:[%s1 + $0x4] sm:$0x3]
    %v51 = vld [vmem:[%s1 + $0x6] sm:$0x3]
    %v52 = vld [vmem:[%s1 + $0x8] sm:$0x3]
    %v53 = vld [vmem:[%s1 + $0xa] sm:$0x3]
    %v54 = vld [vmem:[%s1 + $0xc] sm:$0x3]
    %v55 = vld [vmem:[%s1 + $0xe] sm:$0x3]
    %v56 = vld [vmem:[%s1 + $0x10] sm:$0x3]
    %v57 = vld [vmem:[%s1 + $0x12] sm:$0x3]
    %v58 = vld [vmem:[%s1 + $0x14] sm:$0x3]
    %v59 = vld [vmem:[%s1 + $0x16] sm:$0x3]
    %v60 = vld [vmem:[%s1 + $0x18] sm:$0x3]
    %v61 = vld [vmem:[%s1 + $0x1a] sm:$0x3]
    %v62 = vld [vmem:[%s1 + $0x1c] sm:$0x3]
    %v63 = vld [vmem:[%s1 + $0x1e] sm:$0x3]
    %v64 = vld [vmem:[%s9] sm:$0xff]
    %v65 = vld [vmem:[%s9 + $0x8] sm:$0x1]
    %v66 = vld [vmem:[%s10] sm:$0x1]
    %v75 = vcombine.low %v40, %v41
    %v76 = vcombine.low %v42, %v43
    %v78 = vunpack.c.l.s4 1983009808
    %v79 = vunpack.c.0.s8 %v78
    %v80 = vlaneseq
    %v81 = vshrl.u32 %v80, 7
    %v82 = vsub.s32 %v79, %v81
    %v83 = vrot.slane %v75, %v82
    %v85 = vunpack.c.l.s4 1983009808
    %v86 = vunpack.c.0.s8 %v85
    %v87 = vlaneseq
    %v88 = vshrl.u32 %v87, 7
    %v89 = vsub.s32 %v86, %v88
    %v90 = vrot.slane %v76, %v89
    %v91 = vcombine.low %v83, %v90
    %v92 = vcombine.low %v44, %v45
    %v93 = vcombine.low %v46, %v47
    %v95 = vunpack.c.l.s4 1983009808
    %v96 = vunpack.c.0.s8 %v95
    %v97 = vlaneseq
    %v98 = vshrl.u32 %v97, 7
    %v99 = vsub.s32 %v96, %v98
    %v100 = vrot.slane %v92, %v99
    %v102 = vunpack.c.l.s4 1983009808
    %v103 = vunpack.c.0.s8 %v102
    %v104 = vlaneseq
    %v105 = vshrl.u32 %v104, 7
    %v106 = vsub.s32 %v103, %v105
    %v107 = vrot.slane %v93, %v106
    %v108 = vcombine.low %v100, %v107
    %v111 = vpack.c.bf16 %v108, %v91
    %v128 = vcombine.low %v48, %v49
    %v129 = vcombine.low %v50, %v51
    %v131 = vunpack.c.l.s4 1983009808
    %v132 = vunpack.c.0.s8 %v131
    %v133 = vlaneseq
    %v134 = vshrl.u32 %v133, 7
    %v135 = vsub.s32 %v132, %v134
    %v136 = vrot.slane %v128, %v135
    %v138 = vunpack.c.l.s4 1983009808
    %v139 = vunpack.c.0.s8 %v138
    %v140 = vlaneseq
    %v141 = vshrl.u32 %v140, 7
    %v142 = vsub.s32 %v139, %v141
    %v143 = vrot.slane %v129, %v142
    %v144 = vcombine.low %v136, %v143
    %v145 = vcombine.low %v52, %v53
    %v146 = vcombine.low %v54, %v55
    %v148 = vunpack.c.l.s4 1983009808
    %v149 = vunpack.c.0.s8 %v148
    %v150 = vlaneseq
    %v151 = vshrl.u32 %v150, 7
    %v152 = vsub.s32 %v149, %v151
    %v153 = vrot.slane %v145, %v152
    %v155 = vunpack.c.l.s4 1983009808
    %v156 = vunpack.c.0.s8 %v155
    %v157 = vlaneseq
    %v158 = vshrl.u32 %v157, 7
    %v159 = vsub.s32 %v156, %v158
    %v160 = vrot.slane %v146, %v159
    %v161 = vcombine.low %v153, %v160
    %v162 = vcombine.low %v56, %v57
    %v163 = vcombine.low %v58, %v59
    %v165 = vunpack.c.l.s4 1983009808
    %v166 = vunpack.c.0.s8 %v165
    %v167 = vlaneseq
    %v168 = vshrl.u32 %v167, 7
    %v169 = vsub.s32 %v166, %v168
    %v170 = vrot.slane %v162, %v169
    %v172 = vunpack.c.l.s4 1983009808
    %v173 = vunpack.c.0.s8 %v172
    %v174 = vlaneseq
    %v175 = vshrl.u32 %v174, 7
    %v176 = vsub.s32 %v173, %v175
    %v177 = vrot.slane %v163, %v176
    %v178 = vcombine.low %v170, %v177
    %v179 = vcombine.low %v60, %v61
    %v180 = vcombine.low %v62, %v63
    %v182 = vunpack.c.l.s4 1983009808
    %v183 = vunpack.c.0.s8 %v182
    %v184 = vlaneseq
    %v185 = vshrl.u32 %v184, 7
    %v186 = vsub.s32 %v183, %v185
    %v187 = vrot.slane %v179, %v186
    %v189 = vunpack.c.l.s4 1983009808
    %v190 = vunpack.c.0.s8 %v189
    %v191 = vlaneseq
    %v192 = vshrl.u32 %v191, 7
    %v193 = vsub.s32 %v190, %v192
    %v194 = vrot.slane %v180, %v193
    %v195 = vcombine.low %v187, %v194
    %v200 = vpack.c.bf16 %v161, %v144
    %v201 = vpack.c.bf16 %v195, %v178
    %v202 = vld [vmem:[%s3] sm:$0xf]
    %v203 = vld [vmem:[%s3 + $0x4] sm:$0xf]
    %v204 = vld [vmem:[%s3 + $0x8] sm:$0xf]
    %v205 = vld [vmem:[%s3 + $0xc] sm:$0xf]
    %v206 = vlaneseq
    %v207 = vshrl.u32 %v206, 7
    %v208 = vsub.s32 0, %v207
    %v209 = vrot.slane %v64, %v208
    %v214 = vunpack.c.l.b16 %v202
    %v215 = vunpack.c.l.b16 %v203
    %v216 = vunpack.c.l.b16 %v204
    %v217 = vunpack.c.l.b16 %v205
    %v218 = vpack.c.b16 %v215, %v214
    %v219 = vpack.c.b16 %v217, %v216
    %vm222 = vcmask 261120
    %v224 = vsel %vm222, %v111, 0
    %226 = vmatprep.subr.bf16.mxu0 0
    %227 = vmatpush1.bf16.msra.mxu0 %v218
    %228 = vmatprep.subr.bf16.mxu0 0
    %229 = vmatpush1.bf16.msra.mxu0 %v219
    %230 = vmatprep.subr.bf16.mxu0 0
    %231 = vmatpush1.bf16.msra.mxu0 0
    %232 = vmatprep.subr.bf16.mxu0 0
    %233 = vmatpush1.bf16.msra.mxu0 0
    %234 = vmatprep.subr.bf16.mxu0 0
    %235 = vmatpush1.bf16.msra.mxu0 0
    %236 = vmatprep.subr.bf16.mxu0 0
    %237 = vmatpush1.bf16.msra.mxu0 0
    %238 = vmatprep.subr.bf16.mxu0 0
    %239 = vmatpush1.bf16.msra.mxu0 0
    %240 = vmatprep.subr.bf16.mxu0 0
    %241 = vmatpush1.bf16.msra.mxu0 0
    %242 = vmatprep.subr.bf16.mxu0 0
    %243 = vmatpush1.bf16.msra.mxu0 0
    %244 = vmatprep.subr.bf16.mxu0 0
    %245 = vmatpush1.bf16.msra.mxu0 0
    %246 = vmatprep.subr.bf16.mxu0 0
    %247 = vmatpush1.bf16.msra.mxu0 0
    %248 = vmatprep.subr.bf16.mxu0 0
    %249 = vmatpush1.bf16.msra.mxu0 0
    %250 = vmatprep.subr.bf16.mxu0 0
    %251 = vmatpush1.bf16.msra.mxu0 0
    %252 = vmatprep.subr.bf16.mxu0 0
    %253 = vmatpush1.bf16.msra.mxu0 0
    %254 = vmatprep.subr.bf16.mxu0 0
    %255 = vmatpush1.bf16.msra.mxu0 0
    %256 = vmatprep.subr.bf16.mxu0 0
    %257 = vmatpush1.bf16.msra.mxu0 0
    %258 = vmatprep.mubr.bf16.mxu0 0
    %259 = vmatmul.mubr.bf16.gmra.mrb[0].mxu0 %v224
    %v260 = vpop.f32.mrb[0].mxu0
    %v261 = vadd.f32 %v209, %v260
    %v262 = vpop.f32.mrb[0].mxu0
    %v263 = vpop.f32.mrb[0].mxu0
    %v264 = vadd.f32 %v209, %v263
    %v265 = vpop.f32.mrb[0].mxu0
    %266 = vdwg.mxu0
    %v267 = vld [vmem:[%s4] sm:$0xf]
    %v268 = vld [vmem:[%s4 + $0x4] sm:$0xf]
    %v269 = vld [vmem:[%s4 + $0x8] sm:$0xf]
    %v270 = vld [vmem:[%s4 + $0xc] sm:$0xf]
    %v271 = vlaneseq
    %v272 = vshrl.u32 %v271, 7
    %v273 = vsub.s32 1, %v272
    %v274 = vrot.slane %v64, %v273
    %v279 = vunpack.c.l.b16 %v267
    %v280 = vunpack.c.l.b16 %v268
    %v281 = vunpack.c.l.b16 %v269
    %v282 = vunpack.c.l.b16 %v270
    %v283 = vpack.c.b16 %v280, %v279
    %v284 = vpack.c.b16 %v282, %v281
    %v288 = vsel %vm222, %v200, 0
    %v291 = vsel %vm222, %v201, 0
    %293 = vmatprep.subr.bf16.mxu0 0
    %294 = vmatpush1.bf16.msra.mxu0 %v283
    %295 = vmatprep.subr.bf16.mxu0 0
    %296 = vmatpush1.bf16.msra.mxu0 %v284
    %297 = vmatprep.subr.bf16.mxu0 0
    %298 = vmatpush1.bf16.msra.mxu0 0
    %299 = vmatprep.subr.bf16.mxu0 0
    %300 = vmatpush1.bf16.msra.mxu0 0
    %301 = vmatprep.subr.bf16.mxu0 0
    %302 = vmatpush1.bf16.msra.mxu0 0
    %303 = vmatprep.subr.bf16.mxu0 0
    %304 = vmatpush1.bf16.msra.mxu0 0
    %305 = vmatprep.subr.bf16.mxu0 0
    %306 = vmatpush1.bf16.msra.mxu0 0
    %307 = vmatprep.subr.bf16.mxu0 0
    %308 = vmatpush1.bf16.msra.mxu0 0
    %309 = vmatprep.subr.bf16.mxu0 0
    %310 = vmatpush1.bf16.msra.mxu0 0
    %311 = vmatprep.subr.bf16.mxu0 0
    %312 = vmatpush1.bf16.msra.mxu0 0
    %313 = vmatprep.subr.bf16.mxu0 0
    %314 = vmatpush1.bf16.msra.mxu0 0
    %315 = vmatprep.subr.bf16.mxu0 0
    %316 = vmatpush1.bf16.msra.mxu0 0
    %317 = vmatprep.subr.bf16.mxu0 0
    %318 = vmatpush1.bf16.msra.mxu0 0
    %319 = vmatprep.subr.bf16.mxu0 0
    %320 = vmatpush1.bf16.msra.mxu0 0
    %321 = vmatprep.subr.bf16.mxu0 0
    %322 = vmatpush1.bf16.msra.mxu0 0
    %323 = vmatprep.subr.bf16.mxu0 0
    %324 = vmatpush1.bf16.msra.mxu0 0
    %325 = vmatprep.mubr.bf16.mxu0 0
    %326 = vmatmul.mubr.bf16.gmra.mrb[0].mxu0 %v288
    %v327 = vpop.f32.mrb[0].mxu0
    %v328 = vadd.f32 %v274, %v327
    %v329 = vpop.f32.mrb[0].mxu0
    %v330 = vpop.f32.mrb[0].mxu0
    %v331 = vadd.f32 %v274, %v330
    %v332 = vpop.f32.mrb[0].mxu0
    %333 = vmatprep.mubr.bf16.mxu0 0
    %334 = vmatmul.mubr.bf16.gmra.mrb[0].mxu0 %v291
    %v335 = vpop.f32.mrb[0].mxu0
    %v336 = vadd.f32 %v274, %v335
    %v337 = vpop.f32.mrb[0].mxu0
    %v338 = vpop.f32.mrb[0].mxu0
    %v339 = vadd.f32 %v274, %v338
    %v340 = vpop.f32.mrb[0].mxu0
    %341 = vdwg.mxu0
    %v342 = vld [vmem:[%s5] sm:$0xf]
    %v343 = vld [vmem:[%s5 + $0x4] sm:$0xf]
    %v344 = vld [vmem:[%s5 + $0x8] sm:$0xf]
    %v345 = vld [vmem:[%s5 + $0xc] sm:$0xf]
    %v346 = vlaneseq
    %v347 = vshrl.u32 %v346, 7
    %v348 = vsub.s32 2, %v347
    %v349 = vrot.slane %v64, %v348
    %v354 = vunpack.c.l.b16 %v342
    %v355 = vunpack.c.l.b16 %v343
    %v356 = vunpack.c.l.b16 %v344
    %v357 = vunpack.c.l.b16 %v345
    %v358 = vpack.c.b16 %v355, %v354
    %v359 = vpack.c.b16 %v357, %v356
    %362 = vmatprep.subr.bf16.mxu0 0
    %363 = vmatpush1.bf16.msra.mxu0 %v358
    %364 = vmatprep.subr.bf16.mxu0 0
    %365 = vmatpush1.bf16.msra.mxu0 %v359
    %366 = vmatprep.subr.bf16.mxu0 0
    %367 = vmatpush1.bf16.msra.mxu0 0
    %368 = vmatprep.subr.bf16.mxu0 0
    %369 = vmatpush1.bf16.msra.mxu0 0
    %370 = vmatprep.subr.bf16.mxu0 0
    %371 = vmatpush1.bf16.msra.mxu0 0
    %372 = vmatprep.subr.bf16.mxu0 0
    %373 = vmatpush1.bf16.msra.mxu0 0
    %374 = vmatprep.subr.bf16.mxu0 0
    %375 = vmatpush1.bf16.msra.mxu0 0
    %376 = vmatprep.subr.bf16.mxu0 0
    %377 = vmatpush1.bf16.msra.mxu0 0
    %378 = vmatprep.subr.bf16.mxu0 0
    %379 = vmatpush1.bf16.msra.mxu0 0
    %380 = vmatprep.subr.bf16.mxu0 0
    %381 = vmatpush1.bf16.msra.mxu0 0
    %382 = vmatprep.subr.bf16.mxu0 0
    %383 = vmatpush1.bf16.msra.mxu0 0
    %384 = vmatprep.subr.bf16.mxu0 0
    %385 = vmatpush1.bf16.msra.mxu0 0
    %386 = vmatprep.subr.bf16.mxu0 0
    %387 = vmatpush1.bf16.msra.mxu0 0
    %388 = vmatprep.subr.bf16.mxu0 0
    %389 = vmatpush1.bf16.msra.mxu0 0
    %390 = vmatprep.subr.bf16.mxu0 0
    %391 = vmatpush1.bf16.msra.mxu0 0
    %392 = vmatprep.subr.bf16.mxu0 0
    %393 = vmatpush1.bf16.msra.mxu0 0
    %394 = vmatprep.mubr.bf16.mxu0 0
    %395 = vmatmul.mubr.bf16.gmra.mrb[0].mxu0 %v288
    %v396 = vpop.f32.mrb[0].mxu0
    %v397 = vadd.f32 %v349, %v396
    %v398 = vpop.f32.mrb[0].mxu0
    %v399 = vpop.f32.mrb[0].mxu0
    %v400 = vadd.f32 %v349, %v399
    %v401 = vpop.f32.mrb[0].mxu0
    %402 = vmatprep.mubr.bf16.mxu0 0
    %403 = vmatmul.mubr.bf16.gmra.mrb[0].mxu0 %v291
    %v404 = vpop.f32.mrb[0].mxu0
    %v405 = vadd.f32 %v349, %v404
    %v406 = vpop.f32.mrb[0].mxu0
    %v407 = vpop.f32.mrb[0].mxu0
    %v408 = vadd.f32 %v349, %v407
    %v409 = vpop.f32.mrb[0].mxu0
    %410 = vdwg.mxu0
    %413 = vrot.lane.b32.xlu0 %v261, 120
    %v414 = vpop.permute.xlu0 %413
    %415 = vrot.lane.b32.xlu0 %v264, 120
    %v416 = vpop.permute.xlu0 %415
    %419 = vrot.lane.b32.xlu0 %v261, 112
    %v420 = vpop.permute.xlu0 %419
    %421 = vrot.lane.b32.xlu0 %v264, 112
    %v422 = vpop.permute.xlu0 %421
    %425 = vrot.lane.b32.xlu0 %v261, 104
    %v426 = vpop.permute.xlu0 %425
    %427 = vrot.lane.b32.xlu0 %v264, 104
    %v428 = vpop.permute.xlu0 %427
    %v431 = vcombine.low %v261, %v420
    %v432 = vcombine.high %v261, %v420
    %v434 = vunpack.c.l.s4 1983009808
    %v435 = vunpack.c.0.s8 %v434
    %v436 = vlaneseq
    %v437 = vshrl.u32 %v436, 7
    %v438 = vsub.s32 %v435, %v437
    %v439 = vrot.slane %v431, %v438
    %v441 = vunpack.c.l.s4 1983009808
    %v442 = vunpack.c.0.s8 %v441
    %v443 = vlaneseq
    %v444 = vshrl.u32 %v443, 7
    %v445 = vsub.s32 %v442, %v444
    %v446 = vrot.slane %v432, %v445
    %v447 = vcombine.low %v414, %v426
    %v448 = vcombine.high %v414, %v426
    %v450 = vunpack.c.l.s4 1983009808
    %v451 = vunpack.c.0.s8 %v450
    %v452 = vlaneseq
    %v453 = vshrl.u32 %v452, 7
    %v454 = vsub.s32 %v451, %v453
    %v455 = vrot.slane %v447, %v454
    %v457 = vunpack.c.l.s4 1983009808
    %v458 = vunpack.c.0.s8 %v457
    %v459 = vlaneseq
    %v460 = vshrl.u32 %v459, 7
    %v461 = vsub.s32 %v458, %v460
    %v462 = vrot.slane %v448, %v461
    %v463 = vcombine.low %v439, %v455
    %v464 = vcombine.high %v439, %v455
    %v466 = vunpack.c.l.s4 1934713408
    %v467 = vunpack.c.0.s8 %v466
    %v468 = vlaneseq
    %v469 = vshrl.u32 %v468, 7
    %v470 = vsub.s32 %v467, %v469
    %v471 = vrot.slane %v463, %v470
    %v473 = vunpack.c.l.s4 1934713408
    %v474 = vunpack.c.0.s8 %v473
    %v475 = vlaneseq
    %v476 = vshrl.u32 %v475, 7
    %v477 = vsub.s32 %v474, %v476
    %v478 = vrot.slane %v464, %v477
    %v479 = vcombine.low %v446, %v462
    %v480 = vcombine.high %v446, %v462
    %v482 = vunpack.c.l.s4 1934713408
    %v483 = vunpack.c.0.s8 %v482
    %v484 = vlaneseq
    %v485 = vshrl.u32 %v484, 7
    %v486 = vsub.s32 %v483, %v485
    %v487 = vrot.slane %v479, %v486
    %v489 = vunpack.c.l.s4 1934713408
    %v490 = vunpack.c.0.s8 %v489
    %v491 = vlaneseq
    %v492 = vshrl.u32 %v491, 7
    %v493 = vsub.s32 %v490, %v492
    %v494 = vrot.slane %v480, %v493
    %v495 = vcombine.high %v471, 0.0
    %v496 = vcombine.high %v478, 0.0
    %v497 = vcombine.high %v487, 0.0
    %v498 = vcombine.high %v494, 0.0
    %v499 = vcombine.low %v264, %v422
    %v500 = vcombine.high %v264, %v422
    %v502 = vunpack.c.l.s4 1983009808
    %v503 = vunpack.c.0.s8 %v502
    %v504 = vlaneseq
    %v505 = vshrl.u32 %v504, 7
    %v506 = vsub.s32 %v503, %v505
    %v507 = vrot.slane %v499, %v506
    %v509 = vunpack.c.l.s4 1983009808
    %v510 = vunpack.c.0.s8 %v509
    %v511 = vlaneseq
    %v512 = vshrl.u32 %v511, 7
    %v513 = vsub.s32 %v510, %v512
    %v514 = vrot.slane %v500, %v513
    %v515 = vcombine.low %v416, %v428
    %v516 = vcombine.high %v416, %v428
    %v518 = vunpack.c.l.s4 1983009808
    %v519 = vunpack.c.0.s8 %v518
    %v520 = vlaneseq
    %v521 = vshrl.u32 %v520, 7
    %v522 = vsub.s32 %v519, %v521
    %v523 = vrot.slane %v515, %v522
    %v525 = vunpack.c.l.s4 1983009808
    %v526 = vunpack.c.0.s8 %v525
    %v527 = vlaneseq
    %v528 = vshrl.u32 %v527, 7
    %v529 = vsub.s32 %v526, %v528
    %v530 = vrot.slane %v516, %v529
    %v531 = vcombine.low %v507, %v523
    %v532 = vcombine.high %v507, %v523
    %v534 = vunpack.c.l.s4 1934713408
    %v535 = vunpack.c.0.s8 %v534
    %v536 = vlaneseq
    %v537 = vshrl.u32 %v536, 7
    %v538 = vsub.s32 %v535, %v537
    %v539 = vrot.slane %v531, %v538
    %v541 = vunpack.c.l.s4 1934713408
    %v542 = vunpack.c.0.s8 %v541
    %v543 = vlaneseq
    %v544 = vshrl.u32 %v543, 7
    %v545 = vsub.s32 %v542, %v544
    %v546 = vrot.slane %v532, %v545
    %v547 = vcombine.low %v514, %v530
    %v548 = vcombine.high %v514, %v530
    %v550 = vunpack.c.l.s4 1934713408
    %v551 = vunpack.c.0.s8 %v550
    %v552 = vlaneseq
    %v553 = vshrl.u32 %v552, 7
    %v554 = vsub.s32 %v551, %v553
    %v555 = vrot.slane %v547, %v554
    %v557 = vunpack.c.l.s4 1934713408
    %v558 = vunpack.c.0.s8 %v557
    %v559 = vlaneseq
    %v560 = vshrl.u32 %v559, 7
    %v561 = vsub.s32 %v558, %v560
    %v562 = vrot.slane %v548, %v561
    %v563 = vcombine.high %v539, 0.0
    %v564 = vcombine.high %v546, 0.0
    %v565 = vcombine.high %v555, 0.0
    %v566 = vcombine.high %v562, 0.0
    %v567 = vcombine.low %v471, %v487
    %v569 = vunpack.c.l.s4 1983009808
    %v570 = vunpack.c.0.s8 %v569
    %v571 = vlaneseq
    %v572 = vshrl.u32 %v571, 7
    %v573 = vsub.s32 %v570, %v572
    %v574 = vrot.slane %v567, %v573
    %v575 = vcombine.low %v478, %v494
    %v577 = vunpack.c.l.s4 1983009808
    %v578 = vunpack.c.0.s8 %v577
    %v579 = vlaneseq
    %v580 = vshrl.u32 %v579, 7
    %v581 = vsub.s32 %v578, %v580
    %v582 = vrot.slane %v575, %v581
    %v583 = vcombine.low %v539, %v555
    %v585 = vunpack.c.l.s4 1983009808
    %v586 = vunpack.c.0.s8 %v585
    %v587 = vlaneseq
    %v588 = vshrl.u32 %v587, 7
    %v589 = vsub.s32 %v586, %v588
    %v590 = vrot.slane %v583, %v589
    %v591 = vcombine.low %v546, %v562
    %v593 = vunpack.c.l.s4 1983009808
    %v594 = vunpack.c.0.s8 %v593
    %v595 = vlaneseq
    %v596 = vshrl.u32 %v595, 7
    %v597 = vsub.s32 %v594, %v596
    %v598 = vrot.slane %v591, %v597
    %v599 = vcombine.low %v574, %v582
    %v600 = vcombine.high %v574, %v582
    %v602 = vunpack.c.l.s4 1934713408
    %v603 = vunpack.c.0.s8 %v602
    %v604 = vlaneseq
    %v605 = vshrl.u32 %v604, 7
    %v606 = vsub.s32 %v603, %v605
    %v607 = vrot.slane %v599, %v606
    %v609 = vunpack.c.l.s4 1934713408
    %v610 = vunpack.c.0.s8 %v609
    %v611 = vlaneseq
    %v612 = vshrl.u32 %v611, 7
    %v613 = vsub.s32 %v610, %v612
    %v614 = vrot.slane %v600, %v613
    %v615 = vcombine.low %v590, %v598
    %v616 = vcombine.high %v590, %v598
    %v618 = vunpack.c.l.s4 1934713408
    %v619 = vunpack.c.0.s8 %v618
    %v620 = vlaneseq
    %v621 = vshrl.u32 %v620, 7
    %v622 = vsub.s32 %v619, %v621
    %v623 = vrot.slane %v615, %v622
    %v625 = vunpack.c.l.s4 1934713408
    %v626 = vunpack.c.0.s8 %v625
    %v627 = vlaneseq
    %v628 = vshrl.u32 %v627, 7
    %v629 = vsub.s32 %v626, %v628
    %v630 = vrot.slane %v616, %v629
    %v631 = vcombine.low %v607, %v623
    %v632 = vcombine.high %v607, %v623
    %v633 = vcombine.low %v614, %v630
    %v634 = vcombine.high %v614, %v630
    %v635 = vcombine.low %v495, %v497
    %v637 = vunpack.c.l.s4 1983009808
    %v638 = vunpack.c.0.s8 %v637
    %v639 = vlaneseq
    %v640 = vshrl.u32 %v639, 7
    %v641 = vsub.s32 %v638, %v640
    %v642 = vrot.slane %v635, %v641
    %v643 = vcombine.low %v496, %v498
    %v645 = vunpack.c.l.s4 1983009808
    %v646 = vunpack.c.0.s8 %v645
    %v647 = vlaneseq
    %v648 = vshrl.u32 %v647, 7
    %v649 = vsub.s32 %v646, %v648
    %v650 = vrot.slane %v643, %v649
    %v651 = vcombine.low %v563, %v565
    %v653 = vunpack.c.l.s4 1983009808
    %v654 = vunpack.c.0.s8 %v653
    %v655 = vlaneseq
    %v656 = vshrl.u32 %v655, 7
    %v657 = vsub.s32 %v654, %v656
    %v658 = vrot.slane %v651, %v657
    %v659 = vcombine.low %v564, %v566
    %v661 = vunpack.c.l.s4 1983009808
    %v662 = vunpack.c.0.s8 %v661
    %v663 = vlaneseq
    %v664 = vshrl.u32 %v663, 7
    %v665 = vsub.s32 %v662, %v664
    %v666 = vrot.slane %v659, %v665
    %v667 = vcombine.low %v642, %v650
    %v668 = vcombine.high %v642, %v650
    %v670 = vunpack.c.l.s4 1934713408
    %v671 = vunpack.c.0.s8 %v670
    %v672 = vlaneseq
    %v673 = vshrl.u32 %v672, 7
    %v674 = vsub.s32 %v671, %v673
    %v675 = vrot.slane %v667, %v674
    %v677 = vunpack.c.l.s4 1934713408
    %v678 = vunpack.c.0.s8 %v677
    %v679 = vlaneseq
    %v680 = vshrl.u32 %v679, 7
    %v681 = vsub.s32 %v678, %v680
    %v682 = vrot.slane %v668, %v681
    %v683 = vcombine.low %v658, %v666
    %v684 = vcombine.high %v658, %v666
    %v686 = vunpack.c.l.s4 1934713408
    %v687 = vunpack.c.0.s8 %v686
    %v688 = vlaneseq
    %v689 = vshrl.u32 %v688, 7
    %v690 = vsub.s32 %v687, %v689
    %v691 = vrot.slane %v683, %v690
    %v693 = vunpack.c.l.s4 1934713408
    %v694 = vunpack.c.0.s8 %v693
    %v695 = vlaneseq
    %v696 = vshrl.u32 %v695, 7
    %v697 = vsub.s32 %v694, %v696
    %v698 = vrot.slane %v684, %v697
    %v699 = vcombine.low %v675, %v691
    %v700 = vcombine.high %v675, %v691
    %v701 = vcombine.low %v682, %v698
    %v702 = vcombine.high %v682, %v698
    %707 = vrot.lane.b32.xlu0 %v328, 120
    %v708 = vpop.permute.xlu0 %707
    %709 = vrot.lane.b32.xlu0 %v331, 120
    %v710 = vpop.permute.xlu0 %709
    %711 = vrot.lane.b32.xlu0 %v336, 120
    %v712 = vpop.permute.xlu0 %711
    %713 = vrot.lane.b32.xlu0 %v339, 120
    %v714 = vpop.permute.xlu0 %713
    %719 = vrot.lane.b32.xlu0 %v328, 112
    %v720 = vpop.permute.xlu0 %719
    %721 = vrot.lane.b32.xlu0 %v331, 112
    %v722 = vpop.permute.xlu0 %721
    %723 = vrot.lane.b32.xlu0 %v336, 112
    %v724 = vpop.permute.xlu0 %723
    %725 = vrot.lane.b32.xlu0 %v339, 112
    %v726 = vpop.permute.xlu0 %725
    %731 = vrot.lane.b32.xlu0 %v328, 104
    %v732 = vpop.permute.xlu0 %731
    %733 = vrot.lane.b32.xlu0 %v331, 104
    %v734 = vpop.permute.xlu0 %733
    %735 = vrot.lane.b32.xlu0 %v336, 104
    %v736 = vpop.permute.xlu0 %735
    %737 = vrot.lane.b32.xlu0 %v339, 104
    %v738 = vpop.permute.xlu0 %737
    %v743 = vcombine.low %v328, %v720
    %v744 = vcombine.high %v328, %v720
    %v746 = vunpack.c.l.s4 1983009808
    %v747 = vunpack.c.0.s8 %v746
    %v748 = vlaneseq
    %v749 = vshrl.u32 %v748, 7
    %v750 = vsub.s32 %v747, %v749
    %v751 = vrot.slane %v743, %v750
    %v753 = vunpack.c.l.s4 1983009808
    %v754 = vunpack.c.0.s8 %v753
    %v755 = vlaneseq
    %v756 = vshrl.u32 %v755, 7
    %v757 = vsub.s32 %v754, %v756
    %v758 = vrot.slane %v744, %v757
    %v759 = vcombine.low %v708, %v732
    %v760 = vcombine.high %v708, %v732
    %v762 = vunpack.c.l.s4 1983009808
    %v763 = vunpack.c.0.s8 %v762
    %v764 = vlaneseq
    %v765 = vshrl.u32 %v764, 7
    %v766 = vsub.s32 %v763, %v765
    %v767 = vrot.slane %v759, %v766
    %v769 = vunpack.c.l.s4 1983009808
    %v770 = vunpack.c.0.s8 %v769
    %v771 = vlaneseq
    %v772 = vshrl.u32 %v771, 7
    %v773 = vsub.s32 %v770, %v772
    %v774 = vrot.slane %v760, %v773
    %v775 = vcombine.low %v751, %v767
    %v776 = vcombine.high %v751, %v767
    %v778 = vunpack.c.l.s4 1934713408
    %v779 = vunpack.c.0.s8 %v778
    %v780 = vlaneseq
    %v781 = vshrl.u32 %v780, 7
    %v782 = vsub.s32 %v779, %v781
    %v783 = vrot.slane %v775, %v782
    %v785 = vunpack.c.l.s4 1934713408
    %v786 = vunpack.c.0.s8 %v785
    %v787 = vlaneseq
    %v788 = vshrl.u32 %v787, 7
    %v789 = vsub.s32 %v786, %v788
    %v790 = vrot.slane %v776, %v789
    %v791 = vcombine.low %v758, %v774
    %v792 = vcombine.high %v758, %v774
    %v794 = vunpack.c.l.s4 1934713408
    %v795 = vunpack.c.0.s8 %v794
    %v796 = vlaneseq
    %v797 = vshrl.u32 %v796, 7
    %v798 = vsub.s32 %v795, %v797
    %v799 = vrot.slane %v791, %v798
    %v801 = vunpack.c.l.s4 1934713408
    %v802 = vunpack.c.0.s8 %v801
    %v803 = vlaneseq
    %v804 = vshrl.u32 %v803, 7
    %v805 = vsub.s32 %v802, %v804
    %v806 = vrot.slane %v792, %v805
    %v807 = vcombine.high %v783, 0.0
    %v808 = vcombine.high %v790, 0.0
    %v809 = vcombine.high %v799, 0.0
    %v810 = vcombine.high %v806, 0.0
    %v811 = vcombine.low %v331, %v722
    %v812 = vcombine.high %v331, %v722
    %v814 = vunpack.c.l.s4 1983009808
    %v815 = vunpack.c.0.s8 %v814
    %v816 = vlaneseq
    %v817 = vshrl.u32 %v816, 7
    %v818 = vsub.s32 %v815, %v817
    %v819 = vrot.slane %v811, %v818
    %v821 = vunpack.c.l.s4 1983009808
    %v822 = vunpack.c.0.s8 %v821
    %v823 = vlaneseq
    %v824 = vshrl.u32 %v823, 7
    %v825 = vsub.s32 %v822, %v824
    %v826 = vrot.slane %v812, %v825
    %v827 = vcombine.low %v710, %v734
    %v828 = vcombine.high %v710, %v734
    %v830 = vunpack.c.l.s4 1983009808
    %v831 = vunpack.c.0.s8 %v830
    %v832 = vlaneseq
    %v833 = vshrl.u32 %v832, 7
    %v834 = vsub.s32 %v831, %v833
    %v835 = vrot.slane %v827, %v834
    %v837 = vunpack.c.l.s4 1983009808
    %v838 = vunpack.c.0.s8 %v837
    %v839 = vlaneseq
    %v840 = vshrl.u32 %v839, 7
    %v841 = vsub.s32 %v838, %v840
    %v842 = vrot.slane %v828, %v841
    %v843 = vcombine.low %v819, %v835
    %v844 = vcombine.high %v819, %v835
    %v846 = vunpack.c.l.s4 1934713408
    %v847 = vunpack.c.0.s8 %v846
    %v848 = vlaneseq
    %v849 = vshrl.u32 %v848, 7
    %v850 = vsub.s32 %v847, %v849
    %v851 = vrot.slane %v843, %v850
    %v853 = vunpack.c.l.s4 1934713408
    %v854 = vunpack.c.0.s8 %v853
    %v855 = vlaneseq
    %v856 = vshrl.u32 %v855, 7
    %v857 = vsub.s32 %v854, %v856
    %v858 = vrot.slane %v844, %v857
    %v859 = vcombine.low %v826, %v842
    %v860 = vcombine.high %v826, %v842
    %v862 = vunpack.c.l.s4 1934713408
    %v863 = vunpack.c.0.s8 %v862
    %v864 = vlaneseq
    %v865 = vshrl.u32 %v864, 7
    %v866 = vsub.s32 %v863, %v865
    %v867 = vrot.slane %v859, %v866
    %v869 = vunpack.c.l.s4 1934713408
    %v870 = vunpack.c.0.s8 %v869
    %v871 = vlaneseq
    %v872 = vshrl.u32 %v871, 7
    %v873 = vsub.s32 %v870, %v872
    %v874 = vrot.slane %v860, %v873
    %v875 = vcombine.high %v851, 0.0
    %v876 = vcombine.high %v858, 0.0
    %v877 = vcombine.high %v867, 0.0
    %v878 = vcombine.high %v874, 0.0
    %v879 = vcombine.low %v336, %v724
    %v880 = vcombine.high %v336, %v724
    %v882 = vunpack.c.l.s4 1983009808
    %v883 = vunpack.c.0.s8 %v882
    %v884 = vlaneseq
    %v885 = vshrl.u32 %v884, 7
    %v886 = vsub.s32 %v883, %v885
    %v887 = vrot.slane %v879, %v886
    %v889 = vunpack.c.l.s4 1983009808
    %v890 = vunpack.c.0.s8 %v889
    %v891 = vlaneseq
    %v892 = vshrl.u32 %v891, 7
    %v893 = vsub.s32 %v890, %v892
    %v894 = vrot.slane %v880, %v893
    %v895 = vcombine.low %v712, %v736
    %v896 = vcombine.high %v712, %v736
    %v898 = vunpack.c.l.s4 1983009808
    %v899 = vunpack.c.0.s8 %v898
    %v900 = vlaneseq
    %v901 = vshrl.u32 %v900, 7
    %v902 = vsub.s32 %v899, %v901
    %v903 = vrot.slane %v895, %v902
    %v905 = vunpack.c.l.s4 1983009808
    %v906 = vunpack.c.0.s8 %v905
    %v907 = vlaneseq
    %v908 = vshrl.u32 %v907, 7
    %v909 = vsub.s32 %v906, %v908
    %v910 = vrot.slane %v896, %v909
    %v911 = vcombine.low %v887, %v903
    %v912 = vcombine.high %v887, %v903
    %v914 = vunpack.c.l.s4 1934713408
    %v915 = vunpack.c.0.s8 %v914
    %v916 = vlaneseq
    %v917 = vshrl.u32 %v916, 7
    %v918 = vsub.s32 %v915, %v917
    %v919 = vrot.slane %v911, %v918
    %v921 = vunpack.c.l.s4 1934713408
    %v922 = vunpack.c.0.s8 %v921
    %v923 = vlaneseq
    %v924 = vshrl.u32 %v923, 7
    %v925 = vsub.s32 %v922, %v924
    %v926 = vrot.slane %v912, %v925
    %v927 = vcombine.low %v894, %v910
    %v928 = vcombine.high %v894, %v910
    %v930 = vunpack.c.l.s4 1934713408
    %v931 = vunpack.c.0.s8 %v930
    %v932 = vlaneseq
    %v933 = vshrl.u32 %v932, 7
    %v934 = vsub.s32 %v931, %v933
    %v935 = vrot.slane %v927, %v934
    %v937 = vunpack.c.l.s4 1934713408
    %v938 = vunpack.c.0.s8 %v937
    %v939 = vlaneseq
    %v940 = vshrl.u32 %v939, 7
    %v941 = vsub.s32 %v938, %v940
    %v942 = vrot.slane %v928, %v941
    %v943 = vcombine.high %v919, 0.0
    %v944 = vcombine.high %v926, 0.0
    %v945 = vcombine.high %v935, 0.0
    %v946 = vcombine.high %v942, 0.0
    %v947 = vcombine.low %v339, %v726
    %v948 = vcombine.high %v339, %v726
    %v950 = vunpack.c.l.s4 1983009808
    %v951 = vunpack.c.0.s8 %v950
    %v952 = vlaneseq
    %v953 = vshrl.u32 %v952, 7
    %v954 = vsub.s32 %v951, %v953
    %v955 = vrot.slane %v947, %v954
    %v957 = vunpack.c.l.s4 1983009808
    %v958 = vunpack.c.0.s8 %v957
    %v959 = vlaneseq
    %v960 = vshrl.u32 %v959, 7
    %v961 = vsub.s32 %v958, %v960
    %v962 = vrot.slane %v948, %v961
    %v963 = vcombine.low %v714, %v738
    %v964 = vcombine.high %v714, %v738
    %v966 = vunpack.c.l.s4 1983009808
    %v967 = vunpack.c.0.s8 %v966
    %v968 = vlaneseq
    %v969 = vshrl.u32 %v968, 7
    %v970 = vsub.s32 %v967, %v969
    %v971 = vrot.slane %v963, %v970
    %v973 = vunpack.c.l.s4 1983009808
    %v974 = vunpack.c.0.s8 %v973
    %v975 = vlaneseq
    %v976 = vshrl.u32 %v975, 7
    %v977 = vsub.s32 %v974, %v976
    %v978 = vrot.slane %v964, %v977
    %v979 = vcombine.low %v955, %v971
    %v980 = vcombine.high %v955, %v971
    %v982 = vunpack.c.l.s4 1934713408
    %v983 = vunpack.c.0.s8 %v982
    %v984 = vlaneseq
    %v985 = vshrl.u32 %v984, 7
    %v986 = vsub.s32 %v983, %v985
    %v987 = vrot.slane %v979, %v986
    %v989 = vunpack.c.l.s4 1934713408
    %v990 = vunpack.c.0.s8 %v989
    %v991 = vlaneseq
    %v992 = vshrl.u32 %v991, 7
    %v993 = vsub.s32 %v990, %v992
    %v994 = vrot.slane %v980, %v993
    %v995 = vcombine.low %v962, %v978
    %v996 = vcombine.high %v962, %v978
    %v998 = vunpack.c.l.s4 1934713408
    %v999 = vunpack.c.0.s8 %v998
    %v1000 = vlaneseq
    %v1001 = vshrl.u32 %v1000, 7
    %v1002 = vsub.s32 %v999, %v1001
    %v1003 = vrot.slane %v995, %v1002
    %v1005 = vunpack.c.l.s4 1934713408
    %v1006 = vunpack.c.0.s8 %v1005
    %v1007 = vlaneseq
    %v1008 = vshrl.u32 %v1007, 7
    %v1009 = vsub.s32 %v1006, %v1008
    %v1010 = vrot.slane %v996, %v1009
    %v1011 = vcombine.high %v987, 0.0
    %v1012 = vcombine.high %v994, 0.0
    %v1013 = vcombine.high %v1003, 0.0
    %v1014 = vcombine.high %v1010, 0.0
    %v1015 = vcombine.low %v783, %v799
    %v1017 = vunpack.c.l.s4 1983009808
    %v1018 = vunpack.c.0.s8 %v1017
    %v1019 = vlaneseq
    %v1020 = vshrl.u32 %v1019, 7
    %v1021 = vsub.s32 %v1018, %v1020
    %v1022 = vrot.slane %v1015, %v1021
    %v1023 = vcombine.low %v790, %v806
    %v1025 = vunpack.c.l.s4 1983009808
    %v1026 = vunpack.c.0.s8 %v1025
    %v1027 = vlaneseq
    %v1028 = vshrl.u32 %v1027, 7
    %v1029 = vsub.s32 %v1026, %v1028
    %v1030 = vrot.slane %v1023, %v1029
    %v1031 = vcombine.low %v851, %v867
    %v1033 = vunpack.c.l.s4 1983009808
    %v1034 = vunpack.c.0.s8 %v1033
    %v1035 = vlaneseq
    %v1036 = vshrl.u32 %v1035, 7
    %v1037 = vsub.s32 %v1034, %v1036
    %v1038 = vrot.slane %v1031, %v1037
    %v1039 = vcombine.low %v858, %v874
    %v1041 = vunpack.c.l.s4 1983009808
    %v1042 = vunpack.c.0.s8 %v1041
    %v1043 = vlaneseq
    %v1044 = vshrl.u32 %v1043, 7
    %v1045 = vsub.s32 %v1042, %v1044
    %v1046 = vrot.slane %v1039, %v1045
    %v1047 = vcombine.low %v1022, %v1030
    %v1048 = vcombine.high %v1022, %v1030
    %v1050 = vunpack.c.l.s4 1934713408
    %v1051 = vunpack.c.0.s8 %v1050
    %v1052 = vlaneseq
    %v1053 = vshrl.u32 %v1052, 7
    %v1054 = vsub.s32 %v1051, %v1053
    %v1055 = vrot.slane %v1047, %v1054
    %v1057 = vunpack.c.l.s4 1934713408
    %v1058 = vunpack.c.0.s8 %v1057
    %v1059 = vlaneseq
    %v1060 = vshrl.u32 %v1059, 7
    %v1061 = vsub.s32 %v1058, %v1060
    %v1062 = vrot.slane %v1048, %v1061
    %v1063 = vcombine.low %v1038, %v1046
    %v1064 = vcombine.high %v1038, %v1046
    %v1066 = vunpack.c.l.s4 1934713408
    %v1067 = vunpack.c.0.s8 %v1066
    %v1068 = vlaneseq
    %v1069 = vshrl.u32 %v1068, 7
    %v1070 = vsub.s32 %v1067, %v1069
    %v1071 = vrot.slane %v1063, %v1070
    %v1073 = vunpack.c.l.s4 1934713408
    %v1074 = vunpack.c.0.s8 %v1073
    %v1075 = vlaneseq
    %v1076 = vshrl.u32 %v1075, 7
    %v1077 = vsub.s32 %v1074, %v1076
    %v1078 = vrot.slane %v1064, %v1077
    %v1079 = vcombine.low %v1055, %v1071
    %v1080 = vcombine.high %v1055, %v1071
    %v1081 = vcombine.low %v1062, %v1078
    %v1082 = vcombine.high %v1062, %v1078
    %v1083 = vcombine.low %v919, %v935
    %v1085 = vunpack.c.l.s4 1983009808
    %v1086 = vunpack.c.0.s8 %v1085
    %v1087 = vlaneseq
    %v1088 = vshrl.u32 %v1087, 7
    %v1089 = vsub.s32 %v1086, %v1088
    %v1090 = vrot.slane %v1083, %v1089
    %v1091 = vcombine.low %v926, %v942
    %v1093 = vunpack.c.l.s4 1983009808
    %v1094 = vunpack.c.0.s8 %v1093
    %v1095 = vlaneseq
    %v1096 = vshrl.u32 %v1095, 7
    %v1097 = vsub.s32 %v1094, %v1096
    %v1098 = vrot.slane %v1091, %v1097
    %v1099 = vcombine.low %v987, %v1003
    %v1101 = vunpack.c.l.s4 1983009808
    %v1102 = vunpack.c.0.s8 %v1101
    %v1103 = vlaneseq
    %v1104 = vshrl.u32 %v1103, 7
    %v1105 = vsub.s32 %v1102, %v1104
    %v1106 = vrot.slane %v1099, %v1105
    %v1107 = vcombine.low %v994, %v1010
    %v1109 = vunpack.c.l.s4 1983009808
    %v1110 = vunpack.c.0.s8 %v1109
    %v1111 = vlaneseq
    %v1112 = vshrl.u32 %v1111, 7
    %v1113 = vsub.s32 %v1110, %v1112
    %v1114 = vrot.slane %v1107, %v1113
    %v1115 = vcombine.low %v1090, %v1098
    %v1116 = vcombine.high %v1090, %v1098
    %v1118 = vunpack.c.l.s4 1934713408
    %v1119 = vunpack.c.0.s8 %v1118
    %v1120 = vlaneseq
    %v1121 = vshrl.u32 %v1120, 7
    %v1122 = vsub.s32 %v1119, %v1121
    %v1123 = vrot.slane %v1115, %v1122
    %v1125 = vunpack.c.l.s4 1934713408
    %v1126 = vunpack.c.0.s8 %v1125
    %v1127 = vlaneseq
    %v1128 = vshrl.u32 %v1127, 7
    %v1129 = vsub.s32 %v1126, %v1128
    %v1130 = vrot.slane %v1116, %v1129
    %v1131 = vcombine.low %v1106, %v1114
    %v1132 = vcombine.high %v1106, %v1114
    %v1134 = vunpack.c.l.s4 1934713408
    %v1135 = vunpack.c.0.s8 %v1134
    %v1136 = vlaneseq
    %v1137 = vshrl.u32 %v1136, 7
    %v1138 = vsub.s32 %v1135, %v1137
    %v1139 = vrot.slane %v1131, %v1138
    %v1141 = vunpack.c.l.s4 1934713408
    %v1142 = vunpack.c.0.s8 %v1141
    %v1143 = vlaneseq
    %v1144 = vshrl.u32 %v1143, 7
    %v1145 = vsub.s32 %v1142, %v1144
    %v1146 = vrot.slane %v1132, %v1145
    %v1147 = vcombine.low %v1123, %v1139
    %v1148 = vcombine.high %v1123, %v1139
    %v1149 = vcombine.low %v1130, %v1146
    %v1150 = vcombine.high %v1130, %v1146
    %v1151 = vcombine.low %v807, %v809
    %v1153 = vunpack.c.l.s4 1983009808
    %v1154 = vunpack.c.0.s8 %v1153
    %v1155 = vlaneseq
    %v1156 = vshrl.u32 %v1155, 7
    %v1157 = vsub.s32 %v1154, %v1156
    %v1158 = vrot.slane %v1151, %v1157
    %v1159 = vcombine.low %v808, %v810
    %v1161 = vunpack.c.l.s4 1983009808
    %v1162 = vunpack.c.0.s8 %v1161
    %v1163 = vlaneseq
    %v1164 = vshrl.u32 %v1163, 7
    %v1165 = vsub.s32 %v1162, %v1164
    %v1166 = vrot.slane %v1159, %v1165
    %v1167 = vcombine.low %v875, %v877
    %v1169 = vunpack.c.l.s4 1983009808
    %v1170 = vunpack.c.0.s8 %v1169
    %v1171 = vlaneseq
    %v1172 = vshrl.u32 %v1171, 7
    %v1173 = vsub.s32 %v1170, %v1172
    %v1174 = vrot.slane %v1167, %v1173
    %v1175 = vcombine.low %v876, %v878
    %v1177 = vunpack.c.l.s4 1983009808
    %v1178 = vunpack.c.0.s8 %v1177
    %v1179 = vlaneseq
    %v1180 = vshrl.u32 %v1179, 7
    %v1181 = vsub.s32 %v1178, %v1180
    %v1182 = vrot.slane %v1175, %v1181
    %v1183 = vcombine.low %v1158, %v1166
    %v1184 = vcombine.high %v1158, %v1166
    %v1186 = vunpack.c.l.s4 1934713408
    %v1187 = vunpack.c.0.s8 %v1186
    %v1188 = vlaneseq
    %v1189 = vshrl.u32 %v1188, 7
    %v1190 = vsub.s32 %v1187, %v1189
    %v1191 = vrot.slane %v1183, %v1190
    %v1193 = vunpack.c.l.s4 1934713408
    %v1194 = vunpack.c.0.s8 %v1193
    %v1195 = vlaneseq
    %v1196 = vshrl.u32 %v1195, 7
    %v1197 = vsub.s32 %v1194, %v1196
    %v1198 = vrot.slane %v1184, %v1197
    %v1199 = vcombine.low %v1174, %v1182
    %v1200 = vcombine.high %v1174, %v1182
    %v1202 = vunpack.c.l.s4 1934713408
    %v1203 = vunpack.c.0.s8 %v1202
    %v1204 = vlaneseq
    %v1205 = vshrl.u32 %v1204, 7
    %v1206 = vsub.s32 %v1203, %v1205
    %v1207 = vrot.slane %v1199, %v1206
    %v1209 = vunpack.c.l.s4 1934713408
    %v1210 = vunpack.c.0.s8 %v1209
    %v1211 = vlaneseq
    %v1212 = vshrl.u32 %v1211, 7
    %v1213 = vsub.s32 %v1210, %v1212
    %v1214 = vrot.slane %v1200, %v1213
    %v1215 = vcombine.low %v1191, %v1207
    %v1216 = vcombine.high %v1191, %v1207
    %v1217 = vcombine.low %v1198, %v1214
    %v1218 = vcombine.high %v1198, %v1214
    %v1219 = vcombine.low %v943, %v945
    %v1221 = vunpack.c.l.s4 1983009808
    %v1222 = vunpack.c.0.s8 %v1221
    %v1223 = vlaneseq
    %v1224 = vshrl.u32 %v1223, 7
    %v1225 = vsub.s32 %v1222, %v1224
    %v1226 = vrot.slane %v1219, %v1225
    %v1227 = vcombine.low %v944, %v946
    %v1229 = vunpack.c.l.s4 1983009808
    %v1230 = vunpack.c.0.s8 %v1229
    %v1231 = vlaneseq
    %v1232 = vshrl.u32 %v1231, 7
    %v1233 = vsub.s32 %v1230, %v1232
    %v1234 = vrot.slane %v1227, %v1233
    %v1235 = vcombine.low %v1011, %v1013
    %v1237 = vunpack.c.l.s4 1983009808
    %v1238 = vunpack.c.0.s8 %v1237
    %v1239 = vlaneseq
    %v1240 = vshrl.u32 %v1239, 7
    %v1241 = vsub.s32 %v1238, %v1240
    %v1242 = vrot.slane %v1235, %v1241
    %v1243 = vcombine.low %v1012, %v1014
    %v1245 = vunpack.c.l.s4 1983009808
    %v1246 = vunpack.c.0.s8 %v1245
    %v1247 = vlaneseq
    %v1248 = vshrl.u32 %v1247, 7
    %v1249 = vsub.s32 %v1246, %v1248
    %v1250 = vrot.slane %v1243, %v1249
    %v1251 = vcombine.low %v1226, %v1234
    %v1252 = vcombine.high %v1226, %v1234
    %v1254 = vunpack.c.l.s4 1934713408
    %v1255 = vunpack.c.0.s8 %v1254
    %v1256 = vlaneseq
    %v1257 = vshrl.u32 %v1256, 7
    %v1258 = vsub.s32 %v1255, %v1257
    %v1259 = vrot.slane %v1251, %v1258
    %v1261 = vunpack.c.l.s4 1934713408
    %v1262 = vunpack.c.0.s8 %v1261
    %v1263 = vlaneseq
    %v1264 = vshrl.u32 %v1263, 7
    %v1265 = vsub.s32 %v1262, %v1264
    %v1266 = vrot.slane %v1252, %v1265
    %v1267 = vcombine.low %v1242, %v1250
    %v1268 = vcombine.high %v1242, %v1250
    %v1270 = vunpack.c.l.s4 1934713408
    %v1271 = vunpack.c.0.s8 %v1270
    %v1272 = vlaneseq
    %v1273 = vshrl.u32 %v1272, 7
    %v1274 = vsub.s32 %v1271, %v1273
    %v1275 = vrot.slane %v1267, %v1274
    %v1277 = vunpack.c.l.s4 1934713408
    %v1278 = vunpack.c.0.s8 %v1277
    %v1279 = vlaneseq
    %v1280 = vshrl.u32 %v1279, 7
    %v1281 = vsub.s32 %v1278, %v1280
    %v1282 = vrot.slane %v1268, %v1281
    %v1283 = vcombine.low %v1259, %v1275
    %v1284 = vcombine.high %v1259, %v1275
    %v1285 = vcombine.low %v1266, %v1282
    %v1286 = vcombine.high %v1266, %v1282
    %1291 = vrot.lane.b32.xlu0 %v397, 120
    %v1292 = vpop.permute.xlu0 %1291
    %1293 = vrot.lane.b32.xlu0 %v400, 120
    %v1294 = vpop.permute.xlu0 %1293
    %1295 = vrot.lane.b32.xlu0 %v405, 120
    %v1296 = vpop.permute.xlu0 %1295
    %1297 = vrot.lane.b32.xlu0 %v408, 120
    %v1298 = vpop.permute.xlu0 %1297
    %1303 = vrot.lane.b32.xlu0 %v397, 112
    %v1304 = vpop.permute.xlu0 %1303
    %1305 = vrot.lane.b32.xlu0 %v400, 112
    %v1306 = vpop.permute.xlu0 %1305
    %1307 = vrot.lane.b32.xlu0 %v405, 112
    %v1308 = vpop.permute.xlu0 %1307
    %1309 = vrot.lane.b32.xlu0 %v408, 112
    %v1310 = vpop.permute.xlu0 %1309
    %1315 = vrot.lane.b32.xlu0 %v397, 104
    %v1316 = vpop.permute.xlu0 %1315
    %1317 = vrot.lane.b32.xlu0 %v400, 104
    %v1318 = vpop.permute.xlu0 %1317
    %1319 = vrot.lane.b32.xlu0 %v405, 104
    %v1320 = vpop.permute.xlu0 %1319
    %1321 = vrot.lane.b32.xlu0 %v408, 104
    %v1322 = vpop.permute.xlu0 %1321
    %v1327 = vcombine.low %v397, %v1304
    %v1328 = vcombine.high %v397, %v1304
    %v1330 = vunpack.c.l.s4 1983009808
    %v1331 = vunpack.c.0.s8 %v1330
    %v1332 = vlaneseq
    %v1333 = vshrl.u32 %v1332, 7
    %v1334 = vsub.s32 %v1331, %v1333
    %v1335 = vrot.slane %v1327, %v1334
    %v1337 = vunpack.c.l.s4 1983009808
    %v1338 = vunpack.c.0.s8 %v1337
    %v1339 = vlaneseq
    %v1340 = vshrl.u32 %v1339, 7
    %v1341 = vsub.s32 %v1338, %v1340
    %v1342 = vrot.slane %v1328, %v1341
    %v1343 = vcombine.low %v1292, %v1316
    %v1344 = vcombine.high %v1292, %v1316
    %v1346 = vunpack.c.l.s4 1983009808
    %v1347 = vunpack.c.0.s8 %v1346
    %v1348 = vlaneseq
    %v1349 = vshrl.u32 %v1348, 7
    %v1350 = vsub.s32 %v1347, %v1349
    %v1351 = vrot.slane %v1343, %v1350
    %v1353 = vunpack.c.l.s4 1983009808
    %v1354 = vunpack.c.0.s8 %v1353
    %v1355 = vlaneseq
    %v1356 = vshrl.u32 %v1355, 7
    %v1357 = vsub.s32 %v1354, %v1356
    %v1358 = vrot.slane %v1344, %v1357
    %v1359 = vcombine.low %v1335, %v1351
    %v1360 = vcombine.high %v1335, %v1351
    %v1362 = vunpack.c.l.s4 1934713408
    %v1363 = vunpack.c.0.s8 %v1362
    %v1364 = vlaneseq
    %v1365 = vshrl.u32 %v1364, 7
    %v1366 = vsub.s32 %v1363, %v1365
    %v1367 = vrot.slane %v1359, %v1366
    %v1369 = vunpack.c.l.s4 1934713408
    %v1370 = vunpack.c.0.s8 %v1369
    %v1371 = vlaneseq
    %v1372 = vshrl.u32 %v1371, 7
    %v1373 = vsub.s32 %v1370, %v1372
    %v1374 = vrot.slane %v1360, %v1373
    %v1375 = vcombine.low %v1342, %v1358
    %v1376 = vcombine.high %v1342, %v1358
    %v1378 = vunpack.c.l.s4 1934713408
    %v1379 = vunpack.c.0.s8 %v1378
    %v1380 = vlaneseq
    %v1381 = vshrl.u32 %v1380, 7
    %v1382 = vsub.s32 %v1379, %v1381
    %v1383 = vrot.slane %v1375, %v1382
    %v1385 = vunpack.c.l.s4 1934713408
    %v1386 = vunpack.c.0.s8 %v1385
    %v1387 = vlaneseq
    %v1388 = vshrl.u32 %v1387, 7
    %v1389 = vsub.s32 %v1386, %v1388
    %v1390 = vrot.slane %v1376, %v1389
    %v1391 = vcombine.high %v1367, 0.0
    %v1392 = vcombine.high %v1374, 0.0
    %v1393 = vcombine.high %v1383, 0.0
    %v1394 = vcombine.high %v1390, 0.0
    %v1395 = vcombine.low %v400, %v1306
    %v1396 = vcombine.high %v400, %v1306
    %v1398 = vunpack.c.l.s4 1983009808
    %v1399 = vunpack.c.0.s8 %v1398
    %v1400 = vlaneseq
    %v1401 = vshrl.u32 %v1400, 7
    %v1402 = vsub.s32 %v1399, %v1401
    %v1403 = vrot.slane %v1395, %v1402
    %v1405 = vunpack.c.l.s4 1983009808
    %v1406 = vunpack.c.0.s8 %v1405
    %v1407 = vlaneseq
    %v1408 = vshrl.u32 %v1407, 7
    %v1409 = vsub.s32 %v1406, %v1408
    %v1410 = vrot.slane %v1396, %v1409
    %v1411 = vcombine.low %v1294, %v1318
    %v1412 = vcombine.high %v1294, %v1318
    %v1414 = vunpack.c.l.s4 1983009808
    %v1415 = vunpack.c.0.s8 %v1414
    %v1416 = vlaneseq
    %v1417 = vshrl.u32 %v1416, 7
    %v1418 = vsub.s32 %v1415, %v1417
    %v1419 = vrot.slane %v1411, %v1418
    %v1421 = vunpack.c.l.s4 1983009808
    %v1422 = vunpack.c.0.s8 %v1421
    %v1423 = vlaneseq
    %v1424 = vshrl.u32 %v1423, 7
    %v1425 = vsub.s32 %v1422, %v1424
    %v1426 = vrot.slane %v1412, %v1425
    %v1427 = vcombine.low %v1403, %v1419
    %v1428 = vcombine.high %v1403, %v1419
    %v1430 = vunpack.c.l.s4 1934713408
    %v1431 = vunpack.c.0.s8 %v1430
    %v1432 = vlaneseq
    %v1433 = vshrl.u32 %v1432, 7
    %v1434 = vsub.s32 %v1431, %v1433
    %v1435 = vrot.slane %v1427, %v1434
    %v1437 = vunpack.c.l.s4 1934713408
    %v1438 = vunpack.c.0.s8 %v1437
    %v1439 = vlaneseq
    %v1440 = vshrl.u32 %v1439, 7
    %v1441 = vsub.s32 %v1438, %v1440
    %v1442 = vrot.slane %v1428, %v1441
    %v1443 = vcombine.low %v1410, %v1426
    %v1444 = vcombine.high %v1410, %v1426
    %v1446 = vunpack.c.l.s4 1934713408
    %v1447 = vunpack.c.0.s8 %v1446
    %v1448 = vlaneseq
    %v1449 = vshrl.u32 %v1448, 7
    %v1450 = vsub.s32 %v1447, %v1449
    %v1451 = vrot.slane %v1443, %v1450
    %v1453 = vunpack.c.l.s4 1934713408
    %v1454 = vunpack.c.0.s8 %v1453
    %v1455 = vlaneseq
    %v1456 = vshrl.u32 %v1455, 7
    %v1457 = vsub.s32 %v1454, %v1456
    %v1458 = vrot.slane %v1444, %v1457
    %v1459 = vcombine.high %v1435, 0.0
    %v1460 = vcombine.high %v1442, 0.0
    %v1461 = vcombine.high %v1451, 0.0
    %v1462 = vcombine.high %v1458, 0.0
    %v1463 = vcombine.low %v405, %v1308
    %v1464 = vcombine.high %v405, %v1308
    %v1466 = vunpack.c.l.s4 1983009808
    %v1467 = vunpack.c.0.s8 %v1466
    %v1468 = vlaneseq
    %v1469 = vshrl.u32 %v1468, 7
    %v1470 = vsub.s32 %v1467, %v1469
    %v1471 = vrot.slane %v1463, %v1470
    %v1473 = vunpack.c.l.s4 1983009808
    %v1474 = vunpack.c.0.s8 %v1473
    %v1475 = vlaneseq
    %v1476 = vshrl.u32 %v1475, 7
    %v1477 = vsub.s32 %v1474, %v1476
    %v1478 = vrot.slane %v1464, %v1477
    %v1479 = vcombine.low %v1296, %v1320
    %v1480 = vcombine.high %v1296, %v1320
    %v1482 = vunpack.c.l.s4 1983009808
    %v1483 = vunpack.c.0.s8 %v1482
    %v1484 = vlaneseq
    %v1485 = vshrl.u32 %v1484, 7
    %v1486 = vsub.s32 %v1483, %v1485
    %v1487 = vrot.slane %v1479, %v1486
    %v1489 = vunpack.c.l.s4 1983009808
    %v1490 = vunpack.c.0.s8 %v1489
    %v1491 = vlaneseq
    %v1492 = vshrl.u32 %v1491, 7
    %v1493 = vsub.s32 %v1490, %v1492
    %v1494 = vrot.slane %v1480, %v1493
    %v1495 = vcombine.low %v1471, %v1487
    %v1496 = vcombine.high %v1471, %v1487
    %v1498 = vunpack.c.l.s4 1934713408
    %v1499 = vunpack.c.0.s8 %v1498
    %v1500 = vlaneseq
    %v1501 = vshrl.u32 %v1500, 7
    %v1502 = vsub.s32 %v1499, %v1501
    %v1503 = vrot.slane %v1495, %v1502
    %v1505 = vunpack.c.l.s4 1934713408
    %v1506 = vunpack.c.0.s8 %v1505
    %v1507 = vlaneseq
    %v1508 = vshrl.u32 %v1507, 7
    %v1509 = vsub.s32 %v1506, %v1508
    %v1510 = vrot.slane %v1496, %v1509
    %v1511 = vcombine.low %v1478, %v1494
    %v1512 = vcombine.high %v1478, %v1494
    %v1514 = vunpack.c.l.s4 1934713408
    %v1515 = vunpack.c.0.s8 %v1514
    %v1516 = vlaneseq
    %v1517 = vshrl.u32 %v1516, 7
    %v1518 = vsub.s32 %v1515, %v1517
    %v1519 = vrot.slane %v1511, %v1518
    %v1521 = vunpack.c.l.s4 1934713408
    %v1522 = vunpack.c.0.s8 %v1521
    %v1523 = vlaneseq
    %v1524 = vshrl.u32 %v1523, 7
    %v1525 = vsub.s32 %v1522, %v1524
    %v1526 = vrot.slane %v1512, %v1525
    %v1527 = vcombine.high %v1503, 0.0
    %v1528 = vcombine.high %v1510, 0.0
    %v1529 = vcombine.high %v1519, 0.0
    %v1530 = vcombine.high %v1526, 0.0
    %v1531 = vcombine.low %v408, %v1310
    %v1532 = vcombine.high %v408, %v1310
    %v1534 = vunpack.c.l.s4 1983009808
    %v1535 = vunpack.c.0.s8 %v1534
    %v1536 = vlaneseq
    %v1537 = vshrl.u32 %v1536, 7
    %v1538 = vsub.s32 %v1535, %v1537
    %v1539 = vrot.slane %v1531, %v1538
    %v1541 = vunpack.c.l.s4 1983009808
    %v1542 = vunpack.c.0.s8 %v1541
    %v1543 = vlaneseq
    %v1544 = vshrl.u32 %v1543, 7
    %v1545 = vsub.s32 %v1542, %v1544
    %v1546 = vrot.slane %v1532, %v1545
    %v1547 = vcombine.low %v1298, %v1322
    %v1548 = vcombine.high %v1298, %v1322
    %v1550 = vunpack.c.l.s4 1983009808
    %v1551 = vunpack.c.0.s8 %v1550
    %v1552 = vlaneseq
    %v1553 = vshrl.u32 %v1552, 7
    %v1554 = vsub.s32 %v1551, %v1553
    %v1555 = vrot.slane %v1547, %v1554
    %v1557 = vunpack.c.l.s4 1983009808
    %v1558 = vunpack.c.0.s8 %v1557
    %v1559 = vlaneseq
    %v1560 = vshrl.u32 %v1559, 7
    %v1561 = vsub.s32 %v1558, %v1560
    %v1562 = vrot.slane %v1548, %v1561
    %v1563 = vcombine.low %v1539, %v1555
    %v1564 = vcombine.high %v1539, %v1555
    %v1566 = vunpack.c.l.s4 1934713408
    %v1567 = vunpack.c.0.s8 %v1566
    %v1568 = vlaneseq
    %v1569 = vshrl.u32 %v1568, 7
    %v1570 = vsub.s32 %v1567, %v1569
    %v1571 = vrot.slane %v1563, %v1570
    %v1573 = vunpack.c.l.s4 1934713408
    %v1574 = vunpack.c.0.s8 %v1573
    %v1575 = vlaneseq
    %v1576 = vshrl.u32 %v1575, 7
    %v1577 = vsub.s32 %v1574, %v1576
    %v1578 = vrot.slane %v1564, %v1577
    %v1579 = vcombine.low %v1546, %v1562
    %v1580 = vcombine.high %v1546, %v1562
    %v1582 = vunpack.c.l.s4 1934713408
    %v1583 = vunpack.c.0.s8 %v1582
    %v1584 = vlaneseq
    %v1585 = vshrl.u32 %v1584, 7
    %v1586 = vsub.s32 %v1583, %v1585
    %v1587 = vrot.slane %v1579, %v1586
    %v1589 = vunpack.c.l.s4 1934713408
    %v1590 = vunpack.c.0.s8 %v1589
    %v1591 = vlaneseq
    %v1592 = vshrl.u32 %v1591, 7
    %v1593 = vsub.s32 %v1590, %v1592
    %v1594 = vrot.slane %v1580, %v1593
    %v1595 = vcombine.high %v1571, 0.0
    %v1596 = vcombine.high %v1578, 0.0
    %v1597 = vcombine.high %v1587, 0.0
    %v1598 = vcombine.high %v1594, 0.0
    %v1599 = vcombine.low %v1367, %v1383
    %v1601 = vunpack.c.l.s4 1983009808
    %v1602 = vunpack.c.0.s8 %v1601
    %v1603 = vlaneseq
    %v1604 = vshrl.u32 %v1603, 7
    %v1605 = vsub.s32 %v1602, %v1604
    %v1606 = vrot.slane %v1599, %v1605
    %v1607 = vcombine.low %v1374, %v1390
    %v1609 = vunpack.c.l.s4 1983009808
    %v1610 = vunpack.c.0.s8 %v1609
    %v1611 = vlaneseq
    %v1612 = vshrl.u32 %v1611, 7
    %v1613 = vsub.s32 %v1610, %v1612
    %v1614 = vrot.slane %v1607, %v1613
    %v1615 = vcombine.low %v1435, %v1451
    %v1617 = vunpack.c.l.s4 1983009808
    %v1618 = vunpack.c.0.s8 %v1617
    %v1619 = vlaneseq
    %v1620 = vshrl.u32 %v1619, 7
    %v1621 = vsub.s32 %v1618, %v1620
    %v1622 = vrot.slane %v1615, %v1621
    %v1623 = vcombine.low %v1442, %v1458
    %v1625 = vunpack.c.l.s4 1983009808
    %v1626 = vunpack.c.0.s8 %v1625
    %v1627 = vlaneseq
    %v1628 = vshrl.u32 %v1627, 7
    %v1629 = vsub.s32 %v1626, %v1628
    %v1630 = vrot.slane %v1623, %v1629
    %v1631 = vcombine.low %v1606, %v1614
    %v1632 = vcombine.high %v1606, %v1614
    %v1634 = vunpack.c.l.s4 1934713408
    %v1635 = vunpack.c.0.s8 %v1634
    %v1636 = vlaneseq
    %v1637 = vshrl.u32 %v1636, 7
    %v1638 = vsub.s32 %v1635, %v1637
    %v1639 = vrot.slane %v1631, %v1638
    %v1641 = vunpack.c.l.s4 1934713408
    %v1642 = vunpack.c.0.s8 %v1641
    %v1643 = vlaneseq
    %v1644 = vshrl.u32 %v1643, 7
    %v1645 = vsub.s32 %v1642, %v1644
    %v1646 = vrot.slane %v1632, %v1645
    %v1647 = vcombine.low %v1622, %v1630
    %v1648 = vcombine.high %v1622, %v1630
    %v1650 = vunpack.c.l.s4 1934713408
    %v1651 = vunpack.c.0.s8 %v1650
    %v1652 = vlaneseq
    %v1653 = vshrl.u32 %v1652, 7
    %v1654 = vsub.s32 %v1651, %v1653
    %v1655 = vrot.slane %v1647, %v1654
    %v1657 = vunpack.c.l.s4 1934713408
    %v1658 = vunpack.c.0.s8 %v1657
    %v1659 = vlaneseq
    %v1660 = vshrl.u32 %v1659, 7
    %v1661 = vsub.s32 %v1658, %v1660
    %v1662 = vrot.slane %v1648, %v1661
    %v1663 = vcombine.low %v1639, %v1655
    %v1664 = vcombine.high %v1639, %v1655
    %v1665 = vcombine.low %v1646, %v1662
    %v1666 = vcombine.high %v1646, %v1662
    %v1667 = vcombine.low %v1503, %v1519
    %v1669 = vunpack.c.l.s4 1983009808
    %v1670 = vunpack.c.0.s8 %v1669
    %v1671 = vlaneseq
    %v1672 = vshrl.u32 %v1671, 7
    %v1673 = vsub.s32 %v1670, %v1672
    %v1674 = vrot.slane %v1667, %v1673
    %v1675 = vcombine.low %v1510, %v1526
    %v1677 = vunpack.c.l.s4 1983009808
    %v1678 = vunpack.c.0.s8 %v1677
    %v1679 = vlaneseq
    %v1680 = vshrl.u32 %v1679, 7
    %v1681 = vsub.s32 %v1678, %v1680
    %v1682 = vrot.slane %v1675, %v1681
    %v1683 = vcombine.low %v1571, %v1587
    %v1685 = vunpack.c.l.s4 1983009808
    %v1686 = vunpack.c.0.s8 %v1685
    %v1687 = vlaneseq
    %v1688 = vshrl.u32 %v1687, 7
    %v1689 = vsub.s32 %v1686, %v1688
    %v1690 = vrot.slane %v1683, %v1689
    %v1691 = vcombine.low %v1578, %v1594
    %v1693 = vunpack.c.l.s4 1983009808
    %v1694 = vunpack.c.0.s8 %v1693
    %v1695 = vlaneseq
    %v1696 = vshrl.u32 %v1695, 7
    %v1697 = vsub.s32 %v1694, %v1696
    %v1698 = vrot.slane %v1691, %v1697
    %v1699 = vcombine.low %v1674, %v1682
    %v1700 = vcombine.high %v1674, %v1682
    %v1702 = vunpack.c.l.s4 1934713408
    %v1703 = vunpack.c.0.s8 %v1702
    %v1704 = vlaneseq
    %v1705 = vshrl.u32 %v1704, 7
    %v1706 = vsub.s32 %v1703, %v1705
    %v1707 = vrot.slane %v1699, %v1706
    %v1709 = vunpack.c.l.s4 1934713408
    %v1710 = vunpack.c.0.s8 %v1709
    %v1711 = vlaneseq
    %v1712 = vshrl.u32 %v1711, 7
    %v1713 = vsub.s32 %v1710, %v1712
    %v1714 = vrot.slane %v1700, %v1713
    %v1715 = vcombine.low %v1690, %v1698
    %v1716 = vcombine.high %v1690, %v1698
    %v1718 = vunpack.c.l.s4 1934713408
    %v1719 = vunpack.c.0.s8 %v1718
    %v1720 = vlaneseq
    %v1721 = vshrl.u32 %v1720, 7
    %v1722 = vsub.s32 %v1719, %v1721
    %v1723 = vrot.slane %v1715, %v1722
    %v1725 = vunpack.c.l.s4 1934713408
    %v1726 = vunpack.c.0.s8 %v1725
    %v1727 = vlaneseq
    %v1728 = vshrl.u32 %v1727, 7
    %v1729 = vsub.s32 %v1726, %v1728
    %v1730 = vrot.slane %v1716, %v1729
    %v1731 = vcombine.low %v1707, %v1723
    %v1732 = vcombine.high %v1707, %v1723
    %v1733 = vcombine.low %v1714, %v1730
    %v1734 = vcombine.high %v1714, %v1730
    %v1735 = vcombine.low %v1391, %v1393
    %v1737 = vunpack.c.l.s4 1983009808
    %v1738 = vunpack.c.0.s8 %v1737
    %v1739 = vlaneseq
    %v1740 = vshrl.u32 %v1739, 7
    %v1741 = vsub.s32 %v1738, %v1740
    %v1742 = vrot.slane %v1735, %v1741
    %v1743 = vcombine.low %v1392, %v1394
    %v1745 = vunpack.c.l.s4 1983009808
    %v1746 = vunpack.c.0.s8 %v1745
    %v1747 = vlaneseq
    %v1748 = vshrl.u32 %v1747, 7
    %v1749 = vsub.s32 %v1746, %v1748
    %v1750 = vrot.slane %v1743, %v1749
    %v1751 = vcombine.low %v1459, %v1461
    %v1753 = vunpack.c.l.s4 1983009808
    %v1754 = vunpack.c.0.s8 %v1753
    %v1755 = vlaneseq
    %v1756 = vshrl.u32 %v1755, 7
    %v1757 = vsub.s32 %v1754, %v1756
    %v1758 = vrot.slane %v1751, %v1757
    %v1759 = vcombine.low %v1460, %v1462
    %v1761 = vunpack.c.l.s4 1983009808
    %v1762 = vunpack.c.0.s8 %v1761
    %v1763 = vlaneseq
    %v1764 = vshrl.u32 %v1763, 7
    %v1765 = vsub.s32 %v1762, %v1764
    %v1766 = vrot.slane %v1759, %v1765
    %v1767 = vcombine.low %v1742, %v1750
    %v1768 = vcombine.high %v1742, %v1750
    %v1770 = vunpack.c.l.s4 1934713408
    %v1771 = vunpack.c.0.s8 %v1770
    %v1772 = vlaneseq
    %v1773 = vshrl.u32 %v1772, 7
    %v1774 = vsub.s32 %v1771, %v1773
    %v1775 = vrot.slane %v1767, %v1774
    %v1777 = vunpack.c.l.s4 1934713408
    %v1778 = vunpack.c.0.s8 %v1777
    %v1779 = vlaneseq
    %v1780 = vshrl.u32 %v1779, 7
    %v1781 = vsub.s32 %v1778, %v1780
    %v1782 = vrot.slane %v1768, %v1781
    %v1783 = vcombine.low %v1758, %v1766
    %v1784 = vcombine.high %v1758, %v1766
    %v1786 = vunpack.c.l.s4 1934713408
    %v1787 = vunpack.c.0.s8 %v1786
    %v1788 = vlaneseq
    %v1789 = vshrl.u32 %v1788, 7
    %v1790 = vsub.s32 %v1787, %v1789
    %v1791 = vrot.slane %v1783, %v1790
    %v1793 = vunpack.c.l.s4 1934713408
    %v1794 = vunpack.c.0.s8 %v1793
    %v1795 = vlaneseq
    %v1796 = vshrl.u32 %v1795, 7
    %v1797 = vsub.s32 %v1794, %v1796
    %v1798 = vrot.slane %v1784, %v1797
    %v1799 = vcombine.low %v1775, %v1791
    %v1800 = vcombine.high %v1775, %v1791
    %v1801 = vcombine.low %v1782, %v1798
    %v1802 = vcombine.high %v1782, %v1798
    %v1803 = vcombine.low %v1527, %v1529
    %v1805 = vunpack.c.l.s4 1983009808
    %v1806 = vunpack.c.0.s8 %v1805
    %v1807 = vlaneseq
    %v1808 = vshrl.u32 %v1807, 7
    %v1809 = vsub.s32 %v1806, %v1808
    %v1810 = vrot.slane %v1803, %v1809
    %v1811 = vcombine.low %v1528, %v1530
    %v1813 = vunpack.c.l.s4 1983009808
    %v1814 = vunpack.c.0.s8 %v1813
    %v1815 = vlaneseq
    %v1816 = vshrl.u32 %v1815, 7
    %v1817 = vsub.s32 %v1814, %v1816
    %v1818 = vrot.slane %v1811, %v1817
    %v1819 = vcombine.low %v1595, %v1597
    %v1821 = vunpack.c.l.s4 1983009808
    %v1822 = vunpack.c.0.s8 %v1821
    %v1823 = vlaneseq
    %v1824 = vshrl.u32 %v1823, 7
    %v1825 = vsub.s32 %v1822, %v1824
    %v1826 = vrot.slane %v1819, %v1825
    %v1827 = vcombine.low %v1596, %v1598
    %v1829 = vunpack.c.l.s4 1983009808
    %v1830 = vunpack.c.0.s8 %v1829
    %v1831 = vlaneseq
    %v1832 = vshrl.u32 %v1831, 7
    %v1833 = vsub.s32 %v1830, %v1832
    %v1834 = vrot.slane %v1827, %v1833
    %v1835 = vcombine.low %v1810, %v1818
    %v1836 = vcombine.high %v1810, %v1818
    %v1838 = vunpack.c.l.s4 1934713408
    %v1839 = vunpack.c.0.s8 %v1838
    %v1840 = vlaneseq
    %v1841 = vshrl.u32 %v1840, 7
    %v1842 = vsub.s32 %v1839, %v1841
    %v1843 = vrot.slane %v1835, %v1842
    %v1845 = vunpack.c.l.s4 1934713408
    %v1846 = vunpack.c.0.s8 %v1845
    %v1847 = vlaneseq
    %v1848 = vshrl.u32 %v1847, 7
    %v1849 = vsub.s32 %v1846, %v1848
    %v1850 = vrot.slane %v1836, %v1849
    %v1851 = vcombine.low %v1826, %v1834
    %v1852 = vcombine.high %v1826, %v1834
    %v1854 = vunpack.c.l.s4 1934713408
    %v1855 = vunpack.c.0.s8 %v1854
    %v1856 = vlaneseq
    %v1857 = vshrl.u32 %v1856, 7
    %v1858 = vsub.s32 %v1855, %v1857
    %v1859 = vrot.slane %v1851, %v1858
    %v1861 = vunpack.c.l.s4 1934713408
    %v1862 = vunpack.c.0.s8 %v1861
    %v1863 = vlaneseq
    %v1864 = vshrl.u32 %v1863, 7
    %v1865 = vsub.s32 %v1862, %v1864
    %v1866 = vrot.slane %v1852, %v1865
    %v1867 = vcombine.low %v1843, %v1859
    %v1868 = vcombine.high %v1843, %v1859
    %v1869 = vcombine.low %v1850, %v1866
    %v1870 = vcombine.high %v1850, %v1866
    %v1871 = vpack.c.bf16 %v631, %v631
    %v1872 = vpack.c.bf16 %v632, %v632
    %v1873 = vpack.c.bf16 %v633, %v633
    %v1874 = vpack.c.bf16 %v634, %v634
    %v1875 = vpack.c.bf16 %v699, %v699
    %v1876 = vpack.c.bf16 %v700, %v700
    %v1877 = vpack.c.bf16 %v701, %v701
    %v1878 = vpack.c.bf16 %v702, %v702
    %v1879 = vpack.c.bf16 %v1147, %v1079
    %v1880 = vpack.c.bf16 %v1148, %v1080
    %v1881 = vpack.c.bf16 %v1149, %v1081
    %v1882 = vpack.c.bf16 %v1150, %v1082
    %v1883 = vpack.c.bf16 %v1283, %v1215
    %v1884 = vpack.c.bf16 %v1284, %v1216
    %v1885 = vpack.c.bf16 %v1285, %v1217
    %v1886 = vpack.c.bf16 %v1286, %v1218
    %vm1887 = vcmask 64512
    %v1889 = vsel %vm1887, %v1871, 0
    %v1892 = vsel %vm1887, %v1879, 0
    %1894 = vmatprep.subr.bf16.mxu0 0
    %1895 = vmatpush1.bf16.xpose.msra.mxu0 %v1892
    %1896 = vmatprep.subr.bf16.mxu0 0
    %1897 = vmatpush1.bf16.xpose.msra.mxu0 0
    %1898 = vmatprep.subr.bf16.mxu0 0
    %1899 = vmatpush1.bf16.xpose.msra.mxu0 0
    %1900 = vmatprep.subr.bf16.mxu0 0
    %1901 = vmatpush1.bf16.xpose.msra.mxu0 0
    %1902 = vmatprep.subr.bf16.mxu0 0
    %1903 = vmatpush1.bf16.xpose.msra.mxu0 0
    %1904 = vmatprep.subr.bf16.mxu0 0
    %1905 = vmatpush1.bf16.xpose.msra.mxu0 0
    %1906 = vmatprep.subr.bf16.mxu0 0
    %1907 = vmatpush1.bf16.xpose.msra.mxu0 0
    %1908 = vmatprep.subr.bf16.mxu0 0
    %1909 = vmatpush1.bf16.xpose.msra.mxu0 0
    %1910 = vmatprep.subr.bf16.mxu0 0
    %1911 = vmatpush1.bf16.xpose.msra.mxu0 0
    %1912 = vmatprep.subr.bf16.mxu0 0
    %1913 = vmatpush1.bf16.xpose.msra.mxu0 0
    %1914 = vmatprep.subr.bf16.mxu0 0
    %1915 = vmatpush1.bf16.xpose.msra.mxu0 0
    %1916 = vmatprep.subr.bf16.mxu0 0
    %1917 = vmatpush1.bf16.xpose.msra.mxu0 0
    %1918 = vmatprep.subr.bf16.mxu0 0
    %1919 = vmatpush1.bf16.xpose.msra.mxu0 0
    %1920 = vmatprep.subr.bf16.mxu0 0
    %1921 = vmatpush1.bf16.xpose.msra.mxu0 0
    %1922 = vmatprep.subr.bf16.mxu0 0
    %1923 = vmatpush1.bf16.xpose.msra.mxu0 0
    %1924 = vmatprep.subr.bf16.mxu0 0
    %1925 = vmatpush1.bf16.xpose.msra.mxu0 0
    %1926 = vmatprep.mubr.bf16.mxu0 0
    %1927 = vmatmul.mubr.bf16.gmra.mrb[0].mxu0 %v1889
    %v1928 = vpop.f32.mrb[0].mxu0
    %v1929 = vadd.f32 0.0, %v1928
    %v1930 = vpop.f32.mrb[0].mxu0
    %v1931 = vpop.f32.mrb[0].mxu0
    %v1932 = vpop.f32.mrb[0].mxu0
    %1933 = vdwg.mxu0
    %v1935 = vsel %vm1887, %v1872, 0
    %v1938 = vsel %vm1887, %v1880, 0
    %1940 = vmatprep.subr.bf16.mxu0 0
    %1941 = vmatpush1.bf16.xpose.msra.mxu0 %v1938
    %1942 = vmatprep.subr.bf16.mxu0 0
    %1943 = vmatpush1.bf16.xpose.msra.mxu0 0
    %1944 = vmatprep.subr.bf16.mxu0 0
    %1945 = vmatpush1.bf16.xpose.msra.mxu0 0
    %1946 = vmatprep.subr.bf16.mxu0 0
    %1947 = vmatpush1.bf16.xpose.msra.mxu0 0
    %1948 = vmatprep.subr.bf16.mxu0 0
    %1949 = vmatpush1.bf16.xpose.msra.mxu0 0
    %1950 = vmatprep.subr.bf16.mxu0 0
    %1951 = vmatpush1.bf16.xpose.msra.mxu0 0
    %1952 = vmatprep.subr.bf16.mxu0 0
    %1953 = vmatpush1.bf16.xpose.msra.mxu0 0
    %1954 = vmatprep.subr.bf16.mxu0 0
    %1955 = vmatpush1.bf16.xpose.msra.mxu0 0
    %1956 = vmatprep.subr.bf16.mxu0 0
    %1957 = vmatpush1.bf16.xpose.msra.mxu0 0
    %1958 = vmatprep.subr.bf16.mxu0 0
    %1959 = vmatpush1.bf16.xpose.msra.mxu0 0
    %1960 = vmatprep.subr.bf16.mxu0 0
    %1961 = vmatpush1.bf16.xpose.msra.mxu0 0
    %1962 = vmatprep.subr.bf16.mxu0 0
    %1963 = vmatpush1.bf16.xpose.msra.mxu0 0
    %1964 = vmatprep.subr.bf16.mxu0 0
    %1965 = vmatpush1.bf16.xpose.msra.mxu0 0
    %1966 = vmatprep.subr.bf16.mxu0 0
    %1967 = vmatpush1.bf16.xpose.msra.mxu0 0
    %1968 = vmatprep.subr.bf16.mxu0 0
    %1969 = vmatpush1.bf16.xpose.msra.mxu0 0
    %1970 = vmatprep.subr.bf16.mxu0 0
    %1971 = vmatpush1.bf16.xpose.msra.mxu0 0
    %1972 = vmatprep.mubr.bf16.mxu0 0
    %1973 = vmatmul.mubr.bf16.gmra.mrb[0].mxu0 %v1935
    %v1974 = vpop.f32.mrb[0].mxu0
    %v1975 = vadd.f32 0.0, %v1974
    %v1976 = vpop.f32.mrb[0].mxu0
    %v1977 = vpop.f32.mrb[0].mxu0
    %v1978 = vpop.f32.mrb[0].mxu0
    %1979 = vdwg.mxu0
    %v1981 = vsel %vm1887, %v1873, 0
    %v1984 = vsel %vm1887, %v1881, 0
    %1986 = vmatprep.subr.bf16.mxu0 0
    %1987 = vmatpush1.bf16.xpose.msra.mxu0 %v1984
    %1988 = vmatprep.subr.bf16.mxu0 0
    %1989 = vmatpush1.bf16.xpose.msra.mxu0 0
    %1990 = vmatprep.subr.bf16.mxu0 0
    %1991 = vmatpush1.bf16.xpose.msra.mxu0 0
    %1992 = vmatprep.subr.bf16.mxu0 0
    %1993 = vmatpush1.bf16.xpose.msra.mxu0 0
    %1994 = vmatprep.subr.bf16.mxu0 0
    %1995 = vmatpush1.bf16.xpose.msra.mxu0 0
    %1996 = vmatprep.subr.bf16.mxu0 0
    %1997 = vmatpush1.bf16.xpose.msra.mxu0 0
    %1998 = vmatprep.subr.bf16.mxu0 0
    %1999 = vmatpush1.bf16.xpose.msra.mxu0 0
    %2000 = vmatprep.subr.bf16.mxu0 0
    %2001 = vmatpush1.bf16.xpose.msra.mxu0 0
    %2002 = vmatprep.subr.bf16.mxu0 0
    %2003 = vmatpush1.bf16.xpose.msra.mxu0 0
    %2004 = vmatprep.subr.bf16.mxu0 0
    %2005 = vmatpush1.bf16.xpose.msra.mxu0 0
    %2006 = vmatprep.subr.bf16.mxu0 0
    %2007 = vmatpush1.bf16.xpose.msra.mxu0 0
    %2008 = vmatprep.subr.bf16.mxu0 0
    %2009 = vmatpush1.bf16.xpose.msra.mxu0 0
    %2010 = vmatprep.subr.bf16.mxu0 0
    %2011 = vmatpush1.bf16.xpose.msra.mxu0 0
    %2012 = vmatprep.subr.bf16.mxu0 0
    %2013 = vmatpush1.bf16.xpose.msra.mxu0 0
    %2014 = vmatprep.subr.bf16.mxu0 0
    %2015 = vmatpush1.bf16.xpose.msra.mxu0 0
    %2016 = vmatprep.subr.bf16.mxu0 0
    %2017 = vmatpush1.bf16.xpose.msra.mxu0 0
    %2018 = vmatprep.mubr.bf16.mxu0 0
    %2019 = vmatmul.mubr.bf16.gmra.mrb[0].mxu0 %v1981
    %v2020 = vpop.f32.mrb[0].mxu0
    %v2021 = vadd.f32 0.0, %v2020
    %v2022 = vpop.f32.mrb[0].mxu0
    %v2023 = vpop.f32.mrb[0].mxu0
    %v2024 = vpop.f32.mrb[0].mxu0
    %2025 = vdwg.mxu0
    %v2027 = vsel %vm1887, %v1874, 0
    %v2030 = vsel %vm1887, %v1882, 0
    %2032 = vmatprep.subr.bf16.mxu0 0
    %2033 = vmatpush1.bf16.xpose.msra.mxu0 %v2030
    %2034 = vmatprep.subr.bf16.mxu0 0
    %2035 = vmatpush1.bf16.xpose.msra.mxu0 0
    %2036 = vmatprep.subr.bf16.mxu0 0
    %2037 = vmatpush1.bf16.xpose.msra.mxu0 0
    %2038 = vmatprep.subr.bf16.mxu0 0
    %2039 = vmatpush1.bf16.xpose.msra.mxu0 0
    %2040 = vmatprep.subr.bf16.mxu0 0
    %2041 = vmatpush1.bf16.xpose.msra.mxu0 0
    %2042 = vmatprep.subr.bf16.mxu0 0
    %2043 = vmatpush1.bf16.xpose.msra.mxu0 0
    %2044 = vmatprep.subr.bf16.mxu0 0
    %2045 = vmatpush1.bf16.xpose.msra.mxu0 0
    %2046 = vmatprep.subr.bf16.mxu0 0
    %2047 = vmatpush1.bf16.xpose.msra.mxu0 0
    %2048 = vmatprep.subr.bf16.mxu0 0
    %2049 = vmatpush1.bf16.xpose.msra.mxu0 0
    %2050 = vmatprep.subr.bf16.mxu0 0
    %2051 = vmatpush1.bf16.xpose.msra.mxu0 0
    %2052 = vmatprep.subr.bf16.mxu0 0
    %2053 = vmatpush1.bf16.xpose.msra.mxu0 0
    %2054 = vmatprep.subr.bf16.mxu0 0
    %2055 = vmatpush1.bf16.xpose.msra.mxu0 0
    %2056 = vmatprep.subr.bf16.mxu0 0
    %2057 = vmatpush1.bf16.xpose.msra.mxu0 0
    %2058 = vmatprep.subr.bf16.mxu0 0
    %2059 = vmatpush1.bf16.xpose.msra.mxu0 0
    %2060 = vmatprep.subr.bf16.mxu0 0
    %2061 = vmatpush1.bf16.xpose.msra.mxu0 0
    %2062 = vmatprep.subr.bf16.mxu0 0
    %2063 = vmatpush1.bf16.xpose.msra.mxu0 0
    %2064 = vmatprep.mubr.bf16.mxu0 0
    %2065 = vmatmul.mubr.bf16.gmra.mrb[0].mxu0 %v2027
    %v2066 = vpop.f32.mrb[0].mxu0
    %v2067 = vadd.f32 0.0, %v2066
    %v2068 = vpop.f32.mrb[0].mxu0
    %v2069 = vpop.f32.mrb[0].mxu0
    %v2070 = vpop.f32.mrb[0].mxu0
    %2071 = vdwg.mxu0
    %v2073 = vsel %vm1887, %v1875, 0
    %v2076 = vsel %vm1887, %v1883, 0
    %2078 = vmatprep.subr.bf16.mxu0 0
    %2079 = vmatpush1.bf16.xpose.msra.mxu0 %v2076
    %2080 = vmatprep.subr.bf16.mxu0 0
    %2081 = vmatpush1.bf16.xpose.msra.mxu0 0
    %2082 = vmatprep.subr.bf16.mxu0 0
    %2083 = vmatpush1.bf16.xpose.msra.mxu0 0
    %2084 = vmatprep.subr.bf16.mxu0 0
    %2085 = vmatpush1.bf16.xpose.msra.mxu0 0
    %2086 = vmatprep.subr.bf16.mxu0 0
    %2087 = vmatpush1.bf16.xpose.msra.mxu0 0
    %2088 = vmatprep.subr.bf16.mxu0 0
    %2089 = vmatpush1.bf16.xpose.msra.mxu0 0
    %2090 = vmatprep.subr.bf16.mxu0 0
    %2091 = vmatpush1.bf16.xpose.msra.mxu0 0
    %2092 = vmatprep.subr.bf16.mxu0 0
    %2093 = vmatpush1.bf16.xpose.msra.mxu0 0
    %2094 = vmatprep.subr.bf16.mxu0 0
    %2095 = vmatpush1.bf16.xpose.msra.mxu0 0
    %2096 = vmatprep.subr.bf16.mxu0 0
    %2097 = vmatpush1.bf16.xpose.msra.mxu0 0
    %2098 = vmatprep.subr.bf16.mxu0 0
    %2099 = vmatpush1.bf16.xpose.msra.mxu0 0
    %2100 = vmatprep.subr.bf16.mxu0 0
    %2101 = vmatpush1.bf16.xpose.msra.mxu0 0
    %2102 = vmatprep.subr.bf16.mxu0 0
    %2103 = vmatpush1.bf16.xpose.msra.mxu0 0
    %2104 = vmatprep.subr.bf16.mxu0 0
    %2105 = vmatpush1.bf16.xpose.msra.mxu0 0
    %2106 = vmatprep.subr.bf16.mxu0 0
    %2107 = vmatpush1.bf16.xpose.msra.mxu0 0
    %2108 = vmatprep.subr.bf16.mxu0 0
    %2109 = vmatpush1.bf16.xpose.msra.mxu0 0
    %2110 = vmatprep.mubr.bf16.mxu0 0
    %2111 = vmatmul.mubr.bf16.gmra.mrb[0].mxu0 %v2073
    %v2112 = vpop.f32.mrb[0].mxu0
    %v2113 = vadd.f32 0.0, %v2112
    %v2114 = vpop.f32.mrb[0].mxu0
    %v2115 = vpop.f32.mrb[0].mxu0
    %v2116 = vpop.f32.mrb[0].mxu0
    %2117 = vdwg.mxu0
    %v2119 = vsel %vm1887, %v1876, 0
    %v2122 = vsel %vm1887, %v1884, 0
    %2124 = vmatprep.subr.bf16.mxu0 0
    %2125 = vmatpush1.bf16.xpose.msra.mxu0 %v2122
    %2126 = vmatprep.subr.bf16.mxu0 0
    %2127 = vmatpush1.bf16.xpose.msra.mxu0 0
    %2128 = vmatprep.subr.bf16.mxu0 0
    %2129 = vmatpush1.bf16.xpose.msra.mxu0 0
    %2130 = vmatprep.subr.bf16.mxu0 0
    %2131 = vmatpush1.bf16.xpose.msra.mxu0 0
    %2132 = vmatprep.subr.bf16.mxu0 0
    %2133 = vmatpush1.bf16.xpose.msra.mxu0 0
    %2134 = vmatprep.subr.bf16.mxu0 0
    %2135 = vmatpush1.bf16.xpose.msra.mxu0 0
    %2136 = vmatprep.subr.bf16.mxu0 0
    %2137 = vmatpush1.bf16.xpose.msra.mxu0 0
    %2138 = vmatprep.subr.bf16.mxu0 0
    %2139 = vmatpush1.bf16.xpose.msra.mxu0 0
    %2140 = vmatprep.subr.bf16.mxu0 0
    %2141 = vmatpush1.bf16.xpose.msra.mxu0 0
    %2142 = vmatprep.subr.bf16.mxu0 0
    %2143 = vmatpush1.bf16.xpose.msra.mxu0 0
    %2144 = vmatprep.subr.bf16.mxu0 0
    %2145 = vmatpush1.bf16.xpose.msra.mxu0 0
    %2146 = vmatprep.subr.bf16.mxu0 0
    %2147 = vmatpush1.bf16.xpose.msra.mxu0 0
    %2148 = vmatprep.subr.bf16.mxu0 0
    %2149 = vmatpush1.bf16.xpose.msra.mxu0 0
    %2150 = vmatprep.subr.bf16.mxu0 0
    %2151 = vmatpush1.bf16.xpose.msra.mxu0 0
    %2152 = vmatprep.subr.bf16.mxu0 0
    %2153 = vmatpush1.bf16.xpose.msra.mxu0 0
    %2154 = vmatprep.subr.bf16.mxu0 0
    %2155 = vmatpush1.bf16.xpose.msra.mxu0 0
    %2156 = vmatprep.mubr.bf16.mxu0 0
    %2157 = vmatmul.mubr.bf16.gmra.mrb[0].mxu0 %v2119
    %v2158 = vpop.f32.mrb[0].mxu0
    %v2159 = vadd.f32 0.0, %v2158
    %v2160 = vpop.f32.mrb[0].mxu0
    %v2161 = vpop.f32.mrb[0].mxu0
    %v2162 = vpop.f32.mrb[0].mxu0
    %2163 = vdwg.mxu0
    %v2165 = vsel %vm1887, %v1877, 0
    %v2168 = vsel %vm1887, %v1885, 0
    %2170 = vmatprep.subr.bf16.mxu0 0
    %2171 = vmatpush1.bf16.xpose.msra.mxu0 %v2168
    %2172 = vmatprep.subr.bf16.mxu0 0
    %2173 = vmatpush1.bf16.xpose.msra.mxu0 0
    %2174 = vmatprep.subr.bf16.mxu0 0
    %2175 = vmatpush1.bf16.xpose.msra.mxu0 0
    %2176 = vmatprep.subr.bf16.mxu0 0
    %2177 = vmatpush1.bf16.xpose.msra.mxu0 0
    %2178 = vmatprep.subr.bf16.mxu0 0
    %2179 = vmatpush1.bf16.xpose.msra.mxu0 0
    %2180 = vmatprep.subr.bf16.mxu0 0
    %2181 = vmatpush1.bf16.xpose.msra.mxu0 0
    %2182 = vmatprep.subr.bf16.mxu0 0
    %2183 = vmatpush1.bf16.xpose.msra.mxu0 0
    %2184 = vmatprep.subr.bf16.mxu0 0
    %2185 = vmatpush1.bf16.xpose.msra.mxu0 0
    %2186 = vmatprep.subr.bf16.mxu0 0
    %2187 = vmatpush1.bf16.xpose.msra.mxu0 0
    %2188 = vmatprep.subr.bf16.mxu0 0
    %2189 = vmatpush1.bf16.xpose.msra.mxu0 0
    %2190 = vmatprep.subr.bf16.mxu0 0
    %2191 = vmatpush1.bf16.xpose.msra.mxu0 0
    %2192 = vmatprep.subr.bf16.mxu0 0
    %2193 = vmatpush1.bf16.xpose.msra.mxu0 0
    %2194 = vmatprep.subr.bf16.mxu0 0
    %2195 = vmatpush1.bf16.xpose.msra.mxu0 0
    %2196 = vmatprep.subr.bf16.mxu0 0
    %2197 = vmatpush1.bf16.xpose.msra.mxu0 0
    %2198 = vmatprep.subr.bf16.mxu0 0
    %2199 = vmatpush1.bf16.xpose.msra.mxu0 0
    %2200 = vmatprep.subr.bf16.mxu0 0
    %2201 = vmatpush1.bf16.xpose.msra.mxu0 0
    %2202 = vmatprep.mubr.bf16.mxu0 0
    %2203 = vmatmul.mubr.bf16.gmra.mrb[0].mxu0 %v2165
    %v2204 = vpop.f32.mrb[0].mxu0
    %v2205 = vadd.f32 0.0, %v2204
    %v2206 = vpop.f32.mrb[0].mxu0
    %v2207 = vpop.f32.mrb[0].mxu0
    %v2208 = vpop.f32.mrb[0].mxu0
    %2209 = vdwg.mxu0
    %v2211 = vsel %vm1887, %v1878, 0
    %v2214 = vsel %vm1887, %v1886, 0
    %2216 = vmatprep.subr.bf16.mxu0 0
    %2217 = vmatpush1.bf16.xpose.msra.mxu0 %v2214
    %2218 = vmatprep.subr.bf16.mxu0 0
    %2219 = vmatpush1.bf16.xpose.msra.mxu0 0
    %2220 = vmatprep.subr.bf16.mxu0 0
    %2221 = vmatpush1.bf16.xpose.msra.mxu0 0
    %2222 = vmatprep.subr.bf16.mxu0 0
    %2223 = vmatpush1.bf16.xpose.msra.mxu0 0
    %2224 = vmatprep.subr.bf16.mxu0 0
    %2225 = vmatpush1.bf16.xpose.msra.mxu0 0
    %2226 = vmatprep.subr.bf16.mxu0 0
    %2227 = vmatpush1.bf16.xpose.msra.mxu0 0
    %2228 = vmatprep.subr.bf16.mxu0 0
    %2229 = vmatpush1.bf16.xpose.msra.mxu0 0
    %2230 = vmatprep.subr.bf16.mxu0 0
    %2231 = vmatpush1.bf16.xpose.msra.mxu0 0
    %2232 = vmatprep.subr.bf16.mxu0 0
    %2233 = vmatpush1.bf16.xpose.msra.mxu0 0
    %2234 = vmatprep.subr.bf16.mxu0 0
    %2235 = vmatpush1.bf16.xpose.msra.mxu0 0
    %2236 = vmatprep.subr.bf16.mxu0 0
    %2237 = vmatpush1.bf16.xpose.msra.mxu0 0
    %2238 = vmatprep.subr.bf16.mxu0 0
    %2239 = vmatpush1.bf16.xpose.msra.mxu0 0
    %2240 = vmatprep.subr.bf16.mxu0 0
    %2241 = vmatpush1.bf16.xpose.msra.mxu0 0
    %2242 = vmatprep.subr.bf16.mxu0 0
    %2243 = vmatpush1.bf16.xpose.msra.mxu0 0
    %2244 = vmatprep.subr.bf16.mxu0 0
    %2245 = vmatpush1.bf16.xpose.msra.mxu0 0
    %2246 = vmatprep.subr.bf16.mxu0 0
    %2247 = vmatpush1.bf16.xpose.msra.mxu0 0
    %2248 = vmatprep.mubr.bf16.mxu0 0
    %2249 = vmatmul.mubr.bf16.gmra.mrb[0].mxu0 %v2211
    %v2250 = vpop.f32.mrb[0].mxu0
    %v2251 = vadd.f32 0.0, %v2250
    %v2252 = vpop.f32.mrb[0].mxu0
    %v2253 = vpop.f32.mrb[0].mxu0
    %v2254 = vpop.f32.mrb[0].mxu0
    %2255 = vdwg.mxu0
    %v2256 = vld [vmem:[%s2] sm:$0x3]
    %v2257 = vmul.f32 %v2256, -1e+09
    %v2260 = vunpack.c.l.s4 1966171168
    %v2261 = vunpack.c.0.s8 %v2260
    %v2262 = vlaneseq
    %v2263 = vshrl.u32 %v2262, 7
    %v2264 = vsub.s32 %v2261, %v2263
    %v2265 = vrot.slane %v2257, %v2264
    %v2266 = vcombine.high %v2265, %v2265
    %v2268 = vunpack.c.l.s4 1966171168
    %v2269 = vunpack.c.0.s8 %v2268
    %v2270 = vlaneseq
    %v2271 = vshrl.u32 %v2270, 7
    %v2272 = vsub.s32 %v2269, %v2271
    %v2273 = vrot.slane %v2265, %v2272
    %v2275 = vunpack.c.l.s4 1966171168
    %v2276 = vunpack.c.0.s8 %v2275
    %v2277 = vlaneseq
    %v2278 = vshrl.u32 %v2277, 7
    %v2279 = vsub.s32 %v2276, %v2278
    %v2280 = vrot.slane %v2266, %v2279
    %v2281 = vlaneseq
    %v2282 = vshrl.u32 %v2281, 7
    %v2283 = vsub.s32 0, %v2282
    %v2284 = vrot.slane %v2273, %v2283
    %v2285 = vlaneseq
    %v2286 = vshrl.u32 %v2285, 7
    %v2287 = vsub.s32 0, %v2286
    %v2288 = vrot.slane %v2280, %v2287
    %v2291 = vadd.f32 %v1929, %v2284
    %v2292 = vadd.f32 %v1975, %v2284
    %v2293 = vadd.f32 %v2021, %v2284
    %v2294 = vadd.f32 %v2067, %v2284
    %v2295 = vadd.f32 %v2113, %v2288
    %v2296 = vadd.f32 %v2159, %v2288
    %v2297 = vadd.f32 %v2205, %v2288
    %v2298 = vadd.f32 %v2251, %v2288
    %vm2299 = vcmask 130048
    %v2300 = vsel %vm2299, %v2291, -inf
    %2301 = vmax.xlane.f32.xlu0 %v2300
    %v2302 = vpop.xlane.xlu0 %2301
    %v2303 = vsel %vm2299, %v2292, -inf
    %2304 = vmax.xlane.f32.xlu0 %v2303
    %v2305 = vpop.xlane.xlu0 %2304
    %v2306 = vsel %vm2299, %v2293, -inf
    %2307 = vmax.xlane.f32.xlu0 %v2306
    %v2308 = vpop.xlane.xlu0 %2307
    %v2309 = vsel %vm2299, %v2294, -inf
    %2310 = vmax.xlane.f32.xlu0 %v2309
    %v2311 = vpop.xlane.xlu0 %2310
    %v2312 = vsel %vm2299, %v2295, -inf
    %2313 = vmax.xlane.f32.xlu0 %v2312
    %v2314 = vpop.xlane.xlu0 %2313
    %v2315 = vsel %vm2299, %v2296, -inf
    %2316 = vmax.xlane.f32.xlu0 %v2315
    %v2317 = vpop.xlane.xlu0 %2316
    %v2318 = vsel %vm2299, %v2297, -inf
    %2319 = vmax.xlane.f32.xlu0 %v2318
    %v2320 = vpop.xlane.xlu0 %2319
    %v2321 = vsel %vm2299, %v2298, -inf
    %2322 = vmax.xlane.f32.xlu0 %v2321
    %v2323 = vpop.xlane.xlu0 %2322
    %v2324 = vsub.f32 %v2291, %v2302
    %v2325 = vsub.f32 %v2292, %v2305
    %v2326 = vsub.f32 %v2293, %v2308
    %v2327 = vsub.f32 %v2294, %v2311
    %v2328 = vsub.f32 %v2295, %v2314
    %v2329 = vsub.f32 %v2296, %v2317
    %v2330 = vsub.f32 %v2297, %v2320
    %v2331 = vsub.f32 %v2298, %v2323
    %v2332 = vmul.f32 %v2324, 1.442695
    %v2333 = vpow.pop %v2332
    %v2334 = vmul.f32 %v2325, 1.442695
    %v2335 = vpow.pop %v2334
    %v2336 = vmul.f32 %v2326, 1.442695
    %v2337 = vpow.pop %v2336
    %v2338 = vmul.f32 %v2327, 1.442695
    %v2339 = vpow.pop %v2338
    %v2340 = vmul.f32 %v2328, 1.442695
    %v2341 = vpow.pop %v2340
    %v2342 = vmul.f32 %v2329, 1.442695
    %v2343 = vpow.pop %v2342
    %v2344 = vmul.f32 %v2330, 1.442695
    %v2345 = vpow.pop %v2344
    %v2346 = vmul.f32 %v2331, 1.442695
    %v2347 = vpow.pop %v2346
    %v2348 = vsel %vm2299, %v2333, 0.0
    %2349 = vadd.xlane.f32.xlu0 %v2348
    %v2350 = vpop.xlane.xlu0 %2349
    %v2351 = vsel %vm2299, %v2335, 0.0
    %2352 = vadd.xlane.f32.xlu0 %v2351
    %v2353 = vpop.xlane.xlu0 %2352
    %v2354 = vsel %vm2299, %v2337, 0.0
    %2355 = vadd.xlane.f32.xlu0 %v2354
    %v2356 = vpop.xlane.xlu0 %2355
    %v2357 = vsel %vm2299, %v2339, 0.0
    %2358 = vadd.xlane.f32.xlu0 %v2357
    %v2359 = vpop.xlane.xlu0 %2358
    %v2360 = vsel %vm2299, %v2341, 0.0
    %2361 = vadd.xlane.f32.xlu0 %v2360
    %v2362 = vpop.xlane.xlu0 %2361
    %v2363 = vsel %vm2299, %v2343, 0.0
    %2364 = vadd.xlane.f32.xlu0 %v2363
    %v2365 = vpop.xlane.xlu0 %2364
    %v2366 = vsel %vm2299, %v2345, 0.0
    %2367 = vadd.xlane.f32.xlu0 %v2366
    %v2368 = vpop.xlane.xlu0 %2367
    %v2369 = vsel %vm2299, %v2347, 0.0
    %2370 = vadd.xlane.f32.xlu0 %v2369
    %v2371 = vpop.xlane.xlu0 %2370
    %v2372 = vrcp.pop %v2350
    %v2373 = vrcp.pop %v2353
    %v2374 = vrcp.pop %v2356
    %v2375 = vrcp.pop %v2359
    %v2376 = vrcp.pop %v2362
    %v2377 = vrcp.pop %v2365
    %v2378 = vrcp.pop %v2368
    %v2379 = vrcp.pop %v2371
    %v2380 = vmul.f32 %v2333, %v2372
    %v2381 = vmul.f32 %v2335, %v2373
    %v2382 = vmul.f32 %v2337, %v2374
    %v2383 = vmul.f32 %v2339, %v2375
    %v2384 = vmul.f32 %v2341, %v2376
    %v2385 = vmul.f32 %v2343, %v2377
    %v2386 = vmul.f32 %v2345, %v2378
    %v2387 = vmul.f32 %v2347, %v2379
    %v2388 = vpack.c.bf16 %v2380, %v2380
    %v2389 = vpack.c.bf16 %v2381, %v2381
    %v2390 = vpack.c.bf16 %v2382, %v2382
    %v2391 = vpack.c.bf16 %v2383, %v2383
    %v2392 = vpack.c.bf16 %v2384, %v2384
    %v2393 = vpack.c.bf16 %v2385, %v2385
    %v2394 = vpack.c.bf16 %v2386, %v2386
    %v2395 = vpack.c.bf16 %v2387, %v2387
    %v2396 = vpack.c.bf16 %v1731, %v1663
    %v2397 = vpack.c.bf16 %v1732, %v1664
    %v2398 = vpack.c.bf16 %v1733, %v1665
    %v2399 = vpack.c.bf16 %v1734, %v1666
    %v2400 = vpack.c.bf16 %v1867, %v1799
    %v2401 = vpack.c.bf16 %v1868, %v1800
    %v2402 = vpack.c.bf16 %v1869, %v1801
    %v2403 = vpack.c.bf16 %v1870, %v1802
    %v2405 = vsel %vm2299, %v2388, 0
    %2407 = vmatprep.subr.bf16.mxu0 0
    %2408 = vmatpush1.bf16.msra.mxu0 %v2396
    %2409 = vmatprep.subr.bf16.mxu0 0
    %2410 = vmatpush1.bf16.msra.mxu0 0
    %2411 = vmatprep.subr.bf16.mxu0 0
    %2412 = vmatpush1.bf16.msra.mxu0 0
    %2413 = vmatprep.subr.bf16.mxu0 0
    %2414 = vmatpush1.bf16.msra.mxu0 0
    %2415 = vmatprep.subr.bf16.mxu0 0
    %2416 = vmatpush1.bf16.msra.mxu0 0
    %2417 = vmatprep.subr.bf16.mxu0 0
    %2418 = vmatpush1.bf16.msra.mxu0 0
    %2419 = vmatprep.subr.bf16.mxu0 0
    %2420 = vmatpush1.bf16.msra.mxu0 0
    %2421 = vmatprep.subr.bf16.mxu0 0
    %2422 = vmatpush1.bf16.msra.mxu0 0
    %2423 = vmatprep.subr.bf16.mxu0 0
    %2424 = vmatpush1.bf16.msra.mxu0 0
    %2425 = vmatprep.subr.bf16.mxu0 0
    %2426 = vmatpush1.bf16.msra.mxu0 0
    %2427 = vmatprep.subr.bf16.mxu0 0
    %2428 = vmatpush1.bf16.msra.mxu0 0
    %2429 = vmatprep.subr.bf16.mxu0 0
    %2430 = vmatpush1.bf16.msra.mxu0 0
    %2431 = vmatprep.subr.bf16.mxu0 0
    %2432 = vmatpush1.bf16.msra.mxu0 0
    %2433 = vmatprep.subr.bf16.mxu0 0
    %2434 = vmatpush1.bf16.msra.mxu0 0
    %2435 = vmatprep.subr.bf16.mxu0 0
    %2436 = vmatpush1.bf16.msra.mxu0 0
    %2437 = vmatprep.subr.bf16.mxu0 0
    %2438 = vmatpush1.bf16.msra.mxu0 0
    %2439 = vmatprep.mubr.bf16.mxu0 0
    %2440 = vmatmul.mubr.bf16.gmra.mrb[0].mxu0 %v2405
    %v2441 = vpop.f32.mrb[0].mxu0
    %v2442 = vadd.f32 0.0, %v2441
    %v2443 = vpop.f32.mrb[0].mxu0
    %v2444 = vpop.f32.mrb[0].mxu0
    %v2445 = vpop.f32.mrb[0].mxu0
    %2446 = vdwg.mxu0
    %v2448 = vsel %vm2299, %v2389, 0
    %2450 = vmatprep.subr.bf16.mxu0 0
    %2451 = vmatpush1.bf16.msra.mxu0 %v2397
    %2452 = vmatprep.subr.bf16.mxu0 0
    %2453 = vmatpush1.bf16.msra.mxu0 0
    %2454 = vmatprep.subr.bf16.mxu0 0
    %2455 = vmatpush1.bf16.msra.mxu0 0
    %2456 = vmatprep.subr.bf16.mxu0 0
    %2457 = vmatpush1.bf16.msra.mxu0 0
    %2458 = vmatprep.subr.bf16.mxu0 0
    %2459 = vmatpush1.bf16.msra.mxu0 0
    %2460 = vmatprep.subr.bf16.mxu0 0
    %2461 = vmatpush1.bf16.msra.mxu0 0
    %2462 = vmatprep.subr.bf16.mxu0 0
    %2463 = vmatpush1.bf16.msra.mxu0 0
    %2464 = vmatprep.subr.bf16.mxu0 0
    %2465 = vmatpush1.bf16.msra.mxu0 0
    %2466 = vmatprep.subr.bf16.mxu0 0
    %2467 = vmatpush1.bf16.msra.mxu0 0
    %2468 = vmatprep.subr.bf16.mxu0 0
    %2469 = vmatpush1.bf16.msra.mxu0 0
    %2470 = vmatprep.subr.bf16.mxu0 0
    %2471 = vmatpush1.bf16.msra.mxu0 0
    %2472 = vmatprep.subr.bf16.mxu0 0
    %2473 = vmatpush1.bf16.msra.mxu0 0
    %2474 = vmatprep.subr.bf16.mxu0 0
    %2475 = vmatpush1.bf16.msra.mxu0 0
    %2476 = vmatprep.subr.bf16.mxu0 0
    %2477 = vmatpush1.bf16.msra.mxu0 0
    %2478 = vmatprep.subr.bf16.mxu0 0
    %2479 = vmatpush1.bf16.msra.mxu0 0
    %2480 = vmatprep.subr.bf16.mxu0 0
    %2481 = vmatpush1.bf16.msra.mxu0 0
    %2482 = vmatprep.mubr.bf16.mxu0 0
    %2483 = vmatmul.mubr.bf16.gmra.mrb[0].mxu0 %v2448
    %v2484 = vpop.f32.mrb[0].mxu0
    %v2485 = vadd.f32 0.0, %v2484
    %v2486 = vpop.f32.mrb[0].mxu0
    %v2487 = vpop.f32.mrb[0].mxu0
    %v2488 = vpop.f32.mrb[0].mxu0
    %2489 = vdwg.mxu0
    %v2491 = vsel %vm2299, %v2390, 0
    %2493 = vmatprep.subr.bf16.mxu0 0
    %2494 = vmatpush1.bf16.msra.mxu0 %v2398
    %2495 = vmatprep.subr.bf16.mxu0 0
    %2496 = vmatpush1.bf16.msra.mxu0 0
    %2497 = vmatprep.subr.bf16.mxu0 0
    %2498 = vmatpush1.bf16.msra.mxu0 0
    %2499 = vmatprep.subr.bf16.mxu0 0
    %2500 = vmatpush1.bf16.msra.mxu0 0
    %2501 = vmatprep.subr.bf16.mxu0 0
    %2502 = vmatpush1.bf16.msra.mxu0 0
    %2503 = vmatprep.subr.bf16.mxu0 0
    %2504 = vmatpush1.bf16.msra.mxu0 0
    %2505 = vmatprep.subr.bf16.mxu0 0
    %2506 = vmatpush1.bf16.msra.mxu0 0
    %2507 = vmatprep.subr.bf16.mxu0 0
    %2508 = vmatpush1.bf16.msra.mxu0 0
    %2509 = vmatprep.subr.bf16.mxu0 0
    %2510 = vmatpush1.bf16.msra.mxu0 0
    %2511 = vmatprep.subr.bf16.mxu0 0
    %2512 = vmatpush1.bf16.msra.mxu0 0
    %2513 = vmatprep.subr.bf16.mxu0 0
    %2514 = vmatpush1.bf16.msra.mxu0 0
    %2515 = vmatprep.subr.bf16.mxu0 0
    %2516 = vmatpush1.bf16.msra.mxu0 0
    %2517 = vmatprep.subr.bf16.mxu0 0
    %2518 = vmatpush1.bf16.msra.mxu0 0
    %2519 = vmatprep.subr.bf16.mxu0 0
    %2520 = vmatpush1.bf16.msra.mxu0 0
    %2521 = vmatprep.subr.bf16.mxu0 0
    %2522 = vmatpush1.bf16.msra.mxu0 0
    %2523 = vmatprep.subr.bf16.mxu0 0
    %2524 = vmatpush1.bf16.msra.mxu0 0
    %2525 = vmatprep.mubr.bf16.mxu0 0
    %2526 = vmatmul.mubr.bf16.gmra.mrb[0].mxu0 %v2491
    %v2527 = vpop.f32.mrb[0].mxu0
    %v2528 = vadd.f32 0.0, %v2527
    %v2529 = vpop.f32.mrb[0].mxu0
    %v2530 = vpop.f32.mrb[0].mxu0
    %v2531 = vpop.f32.mrb[0].mxu0
    %2532 = vdwg.mxu0
    %v2534 = vsel %vm2299, %v2391, 0
    %2536 = vmatprep.subr.bf16.mxu0 0
    %2537 = vmatpush1.bf16.msra.mxu0 %v2399
    %2538 = vmatprep.subr.bf16.mxu0 0
    %2539 = vmatpush1.bf16.msra.mxu0 0
    %2540 = vmatprep.subr.bf16.mxu0 0
    %2541 = vmatpush1.bf16.msra.mxu0 0
    %2542 = vmatprep.subr.bf16.mxu0 0
    %2543 = vmatpush1.bf16.msra.mxu0 0
    %2544 = vmatprep.subr.bf16.mxu0 0
    %2545 = vmatpush1.bf16.msra.mxu0 0
    %2546 = vmatprep.subr.bf16.mxu0 0
    %2547 = vmatpush1.bf16.msra.mxu0 0
    %2548 = vmatprep.subr.bf16.mxu0 0
    %2549 = vmatpush1.bf16.msra.mxu0 0
    %2550 = vmatprep.subr.bf16.mxu0 0
    %2551 = vmatpush1.bf16.msra.mxu0 0
    %2552 = vmatprep.subr.bf16.mxu0 0
    %2553 = vmatpush1.bf16.msra.mxu0 0
    %2554 = vmatprep.subr.bf16.mxu0 0
    %2555 = vmatpush1.bf16.msra.mxu0 0
    %2556 = vmatprep.subr.bf16.mxu0 0
    %2557 = vmatpush1.bf16.msra.mxu0 0
    %2558 = vmatprep.subr.bf16.mxu0 0
    %2559 = vmatpush1.bf16.msra.mxu0 0
    %2560 = vmatprep.subr.bf16.mxu0 0
    %2561 = vmatpush1.bf16.msra.mxu0 0
    %2562 = vmatprep.subr.bf16.mxu0 0
    %2563 = vmatpush1.bf16.msra.mxu0 0
    %2564 = vmatprep.subr.bf16.mxu0 0
    %2565 = vmatpush1.bf16.msra.mxu0 0
    %2566 = vmatprep.subr.bf16.mxu0 0
    %2567 = vmatpush1.bf16.msra.mxu0 0
    %2568 = vmatprep.mubr.bf16.mxu0 0
    %2569 = vmatmul.mubr.bf16.gmra.mrb[0].mxu0 %v2534
    %v2570 = vpop.f32.mrb[0].mxu0
    %v2571 = vadd.f32 0.0, %v2570
    %v2572 = vpop.f32.mrb[0].mxu0
    %v2573 = vpop.f32.mrb[0].mxu0
    %v2574 = vpop.f32.mrb[0].mxu0
    %2575 = vdwg.mxu0
    %v2577 = vsel %vm2299, %v2392, 0
    %2579 = vmatprep.subr.bf16.mxu0 0
    %2580 = vmatpush1.bf16.msra.mxu0 %v2400
    %2581 = vmatprep.subr.bf16.mxu0 0
    %2582 = vmatpush1.bf16.msra.mxu0 0
    %2583 = vmatprep.subr.bf16.mxu0 0
    %2584 = vmatpush1.bf16.msra.mxu0 0
    %2585 = vmatprep.subr.bf16.mxu0 0
    %2586 = vmatpush1.bf16.msra.mxu0 0
    %2587 = vmatprep.subr.bf16.mxu0 0
    %2588 = vmatpush1.bf16.msra.mxu0 0
    %2589 = vmatprep.subr.bf16.mxu0 0
    %2590 = vmatpush1.bf16.msra.mxu0 0
    %2591 = vmatprep.subr.bf16.mxu0 0
    %2592 = vmatpush1.bf16.msra.mxu0 0
    %2593 = vmatprep.subr.bf16.mxu0 0
    %2594 = vmatpush1.bf16.msra.mxu0 0
    %2595 = vmatprep.subr.bf16.mxu0 0
    %2596 = vmatpush1.bf16.msra.mxu0 0
    %2597 = vmatprep.subr.bf16.mxu0 0
    %2598 = vmatpush1.bf16.msra.mxu0 0
    %2599 = vmatprep.subr.bf16.mxu0 0
    %2600 = vmatpush1.bf16.msra.mxu0 0
    %2601 = vmatprep.subr.bf16.mxu0 0
    %2602 = vmatpush1.bf16.msra.mxu0 0
    %2603 = vmatprep.subr.bf16.mxu0 0
    %2604 = vmatpush1.bf16.msra.mxu0 0
    %2605 = vmatprep.subr.bf16.mxu0 0
    %2606 = vmatpush1.bf16.msra.mxu0 0
    %2607 = vmatprep.subr.bf16.mxu0 0
    %2608 = vmatpush1.bf16.msra.mxu0 0
    %2609 = vmatprep.subr.bf16.mxu0 0
    %2610 = vmatpush1.bf16.msra.mxu0 0
    %2611 = vmatprep.mubr.bf16.mxu0 0
    %2612 = vmatmul.mubr.bf16.gmra.mrb[0].mxu0 %v2577
    %v2613 = vpop.f32.mrb[0].mxu0
    %v2614 = vadd.f32 0.0, %v2613
    %v2615 = vpop.f32.mrb[0].mxu0
    %v2616 = vpop.f32.mrb[0].mxu0
    %v2617 = vpop.f32.mrb[0].mxu0
    %2618 = vdwg.mxu0
    %v2620 = vsel %vm2299, %v2393, 0
    %2622 = vmatprep.subr.bf16.mxu0 0
    %2623 = vmatpush1.bf16.msra.mxu0 %v2401
    %2624 = vmatprep.subr.bf16.mxu0 0
    %2625 = vmatpush1.bf16.msra.mxu0 0
    %2626 = vmatprep.subr.bf16.mxu0 0
    %2627 = vmatpush1.bf16.msra.mxu0 0
    %2628 = vmatprep.subr.bf16.mxu0 0
    %2629 = vmatpush1.bf16.msra.mxu0 0
    %2630 = vmatprep.subr.bf16.mxu0 0
    %2631 = vmatpush1.bf16.msra.mxu0 0
    %2632 = vmatprep.subr.bf16.mxu0 0
    %2633 = vmatpush1.bf16.msra.mxu0 0
    %2634 = vmatprep.subr.bf16.mxu0 0
    %2635 = vmatpush1.bf16.msra.mxu0 0
    %2636 = vmatprep.subr.bf16.mxu0 0
    %2637 = vmatpush1.bf16.msra.mxu0 0
    %2638 = vmatprep.subr.bf16.mxu0 0
    %2639 = vmatpush1.bf16.msra.mxu0 0
    %2640 = vmatprep.subr.bf16.mxu0 0
    %2641 = vmatpush1.bf16.msra.mxu0 0
    %2642 = vmatprep.subr.bf16.mxu0 0
    %2643 = vmatpush1.bf16.msra.mxu0 0
    %2644 = vmatprep.subr.bf16.mxu0 0
    %2645 = vmatpush1.bf16.msra.mxu0 0
    %2646 = vmatprep.subr.bf16.mxu0 0
    %2647 = vmatpush1.bf16.msra.mxu0 0
    %2648 = vmatprep.subr.bf16.mxu0 0
    %2649 = vmatpush1.bf16.msra.mxu0 0
    %2650 = vmatprep.subr.bf16.mxu0 0
    %2651 = vmatpush1.bf16.msra.mxu0 0
    %2652 = vmatprep.subr.bf16.mxu0 0
    %2653 = vmatpush1.bf16.msra.mxu0 0
    %2654 = vmatprep.mubr.bf16.mxu0 0
    %2655 = vmatmul.mubr.bf16.gmra.mrb[0].mxu0 %v2620
    %v2656 = vpop.f32.mrb[0].mxu0
    %v2657 = vadd.f32 0.0, %v2656
    %v2658 = vpop.f32.mrb[0].mxu0
    %v2659 = vpop.f32.mrb[0].mxu0
    %v2660 = vpop.f32.mrb[0].mxu0
    %2661 = vdwg.mxu0
    %v2663 = vsel %vm2299, %v2394, 0
    %2665 = vmatprep.subr.bf16.mxu0 0
    %2666 = vmatpush1.bf16.msra.mxu0 %v2402
    %2667 = vmatprep.subr.bf16.mxu0 0
    %2668 = vmatpush1.bf16.msra.mxu0 0
    %2669 = vmatprep.subr.bf16.mxu0 0
    %2670 = vmatpush1.bf16.msra.mxu0 0
    %2671 = vmatprep.subr.bf16.mxu0 0
    %2672 = vmatpush1.bf16.msra.mxu0 0
    %2673 = vmatprep.subr.bf16.mxu0 0
    %2674 = vmatpush1.bf16.msra.mxu0 0
    %2675 = vmatprep.subr.bf16.mxu0 0
    %2676 = vmatpush1.bf16.msra.mxu0 0
    %2677 = vmatprep.subr.bf16.mxu0 0
    %2678 = vmatpush1.bf16.msra.mxu0 0
    %2679 = vmatprep.subr.bf16.mxu0 0
    %2680 = vmatpush1.bf16.msra.mxu0 0
    %2681 = vmatprep.subr.bf16.mxu0 0
    %2682 = vmatpush1.bf16.msra.mxu0 0
    %2683 = vmatprep.subr.bf16.mxu0 0
    %2684 = vmatpush1.bf16.msra.mxu0 0
    %2685 = vmatprep.subr.bf16.mxu0 0
    %2686 = vmatpush1.bf16.msra.mxu0 0
    %2687 = vmatprep.subr.bf16.mxu0 0
    %2688 = vmatpush1.bf16.msra.mxu0 0
    %2689 = vmatprep.subr.bf16.mxu0 0
    %2690 = vmatpush1.bf16.msra.mxu0 0
    %2691 = vmatprep.subr.bf16.mxu0 0
    %2692 = vmatpush1.bf16.msra.mxu0 0
    %2693 = vmatprep.subr.bf16.mxu0 0
    %2694 = vmatpush1.bf16.msra.mxu0 0
    %2695 = vmatprep.subr.bf16.mxu0 0
    %2696 = vmatpush1.bf16.msra.mxu0 0
    %2697 = vmatprep.mubr.bf16.mxu0 0
    %2698 = vmatmul.mubr.bf16.gmra.mrb[0].mxu0 %v2663
    %v2699 = vpop.f32.mrb[0].mxu0
    %v2700 = vadd.f32 0.0, %v2699
    %v2701 = vpop.f32.mrb[0].mxu0
    %v2702 = vpop.f32.mrb[0].mxu0
    %v2703 = vpop.f32.mrb[0].mxu0
    %2704 = vdwg.mxu0
    %v2706 = vsel %vm2299, %v2395, 0
    %2708 = vmatprep.subr.bf16.mxu0 0
    %2709 = vmatpush1.bf16.msra.mxu0 %v2403
    %2710 = vmatprep.subr.bf16.mxu0 0
    %2711 = vmatpush1.bf16.msra.mxu0 0
    %2712 = vmatprep.subr.bf16.mxu0 0
    %2713 = vmatpush1.bf16.msra.mxu0 0
    %2714 = vmatprep.subr.bf16.mxu0 0
    %2715 = vmatpush1.bf16.msra.mxu0 0
    %2716 = vmatprep.subr.bf16.mxu0 0
    %2717 = vmatpush1.bf16.msra.mxu0 0
    %2718 = vmatprep.subr.bf16.mxu0 0
    %2719 = vmatpush1.bf16.msra.mxu0 0
    %2720 = vmatprep.subr.bf16.mxu0 0
    %2721 = vmatpush1.bf16.msra.mxu0 0
    %2722 = vmatprep.subr.bf16.mxu0 0
    %2723 = vmatpush1.bf16.msra.mxu0 0
    %2724 = vmatprep.subr.bf16.mxu0 0
    %2725 = vmatpush1.bf16.msra.mxu0 0
    %2726 = vmatprep.subr.bf16.mxu0 0
    %2727 = vmatpush1.bf16.msra.mxu0 0
    %2728 = vmatprep.subr.bf16.mxu0 0
    %2729 = vmatpush1.bf16.msra.mxu0 0
    %2730 = vmatprep.subr.bf16.mxu0 0
    %2731 = vmatpush1.bf16.msra.mxu0 0
    %2732 = vmatprep.subr.bf16.mxu0 0
    %2733 = vmatpush1.bf16.msra.mxu0 0
    %2734 = vmatprep.subr.bf16.mxu0 0
    %2735 = vmatpush1.bf16.msra.mxu0 0
    %2736 = vmatprep.subr.bf16.mxu0 0
    %2737 = vmatpush1.bf16.msra.mxu0 0
    %2738 = vmatprep.subr.bf16.mxu0 0
    %2739 = vmatpush1.bf16.msra.mxu0 0
    %2740 = vmatprep.mubr.bf16.mxu0 0
    %2741 = vmatmul.mubr.bf16.gmra.mrb[0].mxu0 %v2706
    %v2742 = vpop.f32.mrb[0].mxu0
    %v2743 = vadd.f32 0.0, %v2742
    %v2744 = vpop.f32.mrb[0].mxu0
    %v2745 = vpop.f32.mrb[0].mxu0
    %v2746 = vpop.f32.mrb[0].mxu0
    %2747 = vdwg.mxu0
    %v2748 = vcombine.low %v2442, %v2528
    %v2749 = vcombine.high %v2442, %v2528
    %v2751 = vunpack.c.l.s4 1983009808
    %v2752 = vunpack.c.0.s8 %v2751
    %v2753 = vlaneseq
    %v2754 = vshrl.u32 %v2753, 7
    %v2755 = vsub.s32 %v2752, %v2754
    %v2756 = vrot.slane %v2748, %v2755
    %v2758 = vunpack.c.l.s4 1983009808
    %v2759 = vunpack.c.0.s8 %v2758
    %v2760 = vlaneseq
    %v2761 = vshrl.u32 %v2760, 7
    %v2762 = vsub.s32 %v2759, %v2761
    %v2763 = vrot.slane %v2749, %v2762
    %v2764 = vcombine.low %v2485, %v2571
    %v2765 = vcombine.high %v2485, %v2571
    %v2767 = vunpack.c.l.s4 1983009808
    %v2768 = vunpack.c.0.s8 %v2767
    %v2769 = vlaneseq
    %v2770 = vshrl.u32 %v2769, 7
    %v2771 = vsub.s32 %v2768, %v2770
    %v2772 = vrot.slane %v2764, %v2771
    %v2774 = vunpack.c.l.s4 1983009808
    %v2775 = vunpack.c.0.s8 %v2774
    %v2776 = vlaneseq
    %v2777 = vshrl.u32 %v2776, 7
    %v2778 = vsub.s32 %v2775, %v2777
    %v2779 = vrot.slane %v2765, %v2778
    %v2780 = vcombine.low %v2756, %v2772
    %v2781 = vcombine.high %v2756, %v2772
    %v2783 = vunpack.c.l.s4 1934713408
    %v2784 = vunpack.c.0.s8 %v2783
    %v2785 = vlaneseq
    %v2786 = vshrl.u32 %v2785, 7
    %v2787 = vsub.s32 %v2784, %v2786
    %v2788 = vrot.slane %v2780, %v2787
    %v2790 = vunpack.c.l.s4 1934713408
    %v2791 = vunpack.c.0.s8 %v2790
    %v2792 = vlaneseq
    %v2793 = vshrl.u32 %v2792, 7
    %v2794 = vsub.s32 %v2791, %v2793
    %v2795 = vrot.slane %v2781, %v2794
    %v2796 = vcombine.low %v2763, %v2779
    %v2797 = vcombine.high %v2763, %v2779
    %v2799 = vunpack.c.l.s4 1934713408
    %v2800 = vunpack.c.0.s8 %v2799
    %v2801 = vlaneseq
    %v2802 = vshrl.u32 %v2801, 7
    %v2803 = vsub.s32 %v2800, %v2802
    %v2804 = vrot.slane %v2796, %v2803
    %v2806 = vunpack.c.l.s4 1934713408
    %v2807 = vunpack.c.0.s8 %v2806
    %v2808 = vlaneseq
    %v2809 = vshrl.u32 %v2808, 7
    %v2810 = vsub.s32 %v2807, %v2809
    %v2811 = vrot.slane %v2797, %v2810
    %v2812 = vcombine.high %v2788, 0.0
    %v2813 = vcombine.high %v2795, 0.0
    %v2814 = vcombine.high %v2804, 0.0
    %v2815 = vcombine.high %v2811, 0.0
    %v2816 = vcombine.low %v2614, %v2700
    %v2817 = vcombine.high %v2614, %v2700
    %v2819 = vunpack.c.l.s4 1983009808
    %v2820 = vunpack.c.0.s8 %v2819
    %v2821 = vlaneseq
    %v2822 = vshrl.u32 %v2821, 7
    %v2823 = vsub.s32 %v2820, %v2822
    %v2824 = vrot.slane %v2816, %v2823
    %v2826 = vunpack.c.l.s4 1983009808
    %v2827 = vunpack.c.0.s8 %v2826
    %v2828 = vlaneseq
    %v2829 = vshrl.u32 %v2828, 7
    %v2830 = vsub.s32 %v2827, %v2829
    %v2831 = vrot.slane %v2817, %v2830
    %v2832 = vcombine.low %v2657, %v2743
    %v2833 = vcombine.high %v2657, %v2743
    %v2835 = vunpack.c.l.s4 1983009808
    %v2836 = vunpack.c.0.s8 %v2835
    %v2837 = vlaneseq
    %v2838 = vshrl.u32 %v2837, 7
    %v2839 = vsub.s32 %v2836, %v2838
    %v2840 = vrot.slane %v2832, %v2839
    %v2842 = vunpack.c.l.s4 1983009808
    %v2843 = vunpack.c.0.s8 %v2842
    %v2844 = vlaneseq
    %v2845 = vshrl.u32 %v2844, 7
    %v2846 = vsub.s32 %v2843, %v2845
    %v2847 = vrot.slane %v2833, %v2846
    %v2848 = vcombine.low %v2824, %v2840
    %v2849 = vcombine.high %v2824, %v2840
    %v2851 = vunpack.c.l.s4 1934713408
    %v2852 = vunpack.c.0.s8 %v2851
    %v2853 = vlaneseq
    %v2854 = vshrl.u32 %v2853, 7
    %v2855 = vsub.s32 %v2852, %v2854
    %v2856 = vrot.slane %v2848, %v2855
    %v2858 = vunpack.c.l.s4 1934713408
    %v2859 = vunpack.c.0.s8 %v2858
    %v2860 = vlaneseq
    %v2861 = vshrl.u32 %v2860, 7
    %v2862 = vsub.s32 %v2859, %v2861
    %v2863 = vrot.slane %v2849, %v2862
    %v2864 = vcombine.low %v2831, %v2847
    %v2865 = vcombine.high %v2831, %v2847
    %v2867 = vunpack.c.l.s4 1934713408
    %v2868 = vunpack.c.0.s8 %v2867
    %v2869 = vlaneseq
    %v2870 = vshrl.u32 %v2869, 7
    %v2871 = vsub.s32 %v2868, %v2870
    %v2872 = vrot.slane %v2864, %v2871
    %v2874 = vunpack.c.l.s4 1934713408
    %v2875 = vunpack.c.0.s8 %v2874
    %v2876 = vlaneseq
    %v2877 = vshrl.u32 %v2876, 7
    %v2878 = vsub.s32 %v2875, %v2877
    %v2879 = vrot.slane %v2865, %v2878
    %v2880 = vcombine.high %v2856, 0.0
    %v2881 = vcombine.high %v2863, 0.0
    %v2882 = vcombine.high %v2872, 0.0
    %v2883 = vcombine.high %v2879, 0.0
    %v2884 = vcombine.low %v2788, %v2812
    %v2886 = vunpack.c.l.s4 1983009808
    %v2887 = vunpack.c.0.s8 %v2886
    %v2888 = vlaneseq
    %v2889 = vshrl.u32 %v2888, 7
    %v2890 = vsub.s32 %v2887, %v2889
    %v2891 = vrot.slane %v2884, %v2890
    %v2892 = vcombine.low %v2856, %v2880
    %v2894 = vunpack.c.l.s4 1983009808
    %v2895 = vunpack.c.0.s8 %v2894
    %v2896 = vlaneseq
    %v2897 = vshrl.u32 %v2896, 7
    %v2898 = vsub.s32 %v2895, %v2897
    %v2899 = vrot.slane %v2892, %v2898
    %v2900 = vcombine.low %v2795, %v2813
    %v2902 = vunpack.c.l.s4 1983009808
    %v2903 = vunpack.c.0.s8 %v2902
    %v2904 = vlaneseq
    %v2905 = vshrl.u32 %v2904, 7
    %v2906 = vsub.s32 %v2903, %v2905
    %v2907 = vrot.slane %v2900, %v2906
    %v2908 = vcombine.low %v2863, %v2881
    %v2910 = vunpack.c.l.s4 1983009808
    %v2911 = vunpack.c.0.s8 %v2910
    %v2912 = vlaneseq
    %v2913 = vshrl.u32 %v2912, 7
    %v2914 = vsub.s32 %v2911, %v2913
    %v2915 = vrot.slane %v2908, %v2914
    %v2916 = vcombine.low %v2891, %v2899
    %v2917 = vcombine.high %v2891, %v2899
    %v2919 = vunpack.c.l.s4 1934713408
    %v2920 = vunpack.c.0.s8 %v2919
    %v2921 = vlaneseq
    %v2922 = vshrl.u32 %v2921, 7
    %v2923 = vsub.s32 %v2920, %v2922
    %v2924 = vrot.slane %v2916, %v2923
    %v2926 = vunpack.c.l.s4 1934713408
    %v2927 = vunpack.c.0.s8 %v2926
    %v2928 = vlaneseq
    %v2929 = vshrl.u32 %v2928, 7
    %v2930 = vsub.s32 %v2927, %v2929
    %v2931 = vrot.slane %v2917, %v2930
    %v2932 = vcombine.low %v2907, %v2915
    %v2933 = vcombine.high %v2907, %v2915
    %v2935 = vunpack.c.l.s4 1934713408
    %v2936 = vunpack.c.0.s8 %v2935
    %v2937 = vlaneseq
    %v2938 = vshrl.u32 %v2937, 7
    %v2939 = vsub.s32 %v2936, %v2938
    %v2940 = vrot.slane %v2932, %v2939
    %v2942 = vunpack.c.l.s4 1934713408
    %v2943 = vunpack.c.0.s8 %v2942
    %v2944 = vlaneseq
    %v2945 = vshrl.u32 %v2944, 7
    %v2946 = vsub.s32 %v2943, %v2945
    %v2947 = vrot.slane %v2933, %v2946
    %v2948 = vcombine.low %v2924, %v2940
    %v2949 = vcombine.high %v2924, %v2940
    %v2950 = vcombine.low %v2931, %v2947
    %v2951 = vcombine.high %v2931, %v2947
    %v2952 = vcombine.low %v2804, %v2814
    %v2954 = vunpack.c.l.s4 1983009808
    %v2955 = vunpack.c.0.s8 %v2954
    %v2956 = vlaneseq
    %v2957 = vshrl.u32 %v2956, 7
    %v2958 = vsub.s32 %v2955, %v2957
    %v2959 = vrot.slane %v2952, %v2958
    %v2960 = vcombine.low %v2872, %v2882
    %v2962 = vunpack.c.l.s4 1983009808
    %v2963 = vunpack.c.0.s8 %v2962
    %v2964 = vlaneseq
    %v2965 = vshrl.u32 %v2964, 7
    %v2966 = vsub.s32 %v2963, %v2965
    %v2967 = vrot.slane %v2960, %v2966
    %v2968 = vcombine.low %v2811, %v2815
    %v2970 = vunpack.c.l.s4 1983009808
    %v2971 = vunpack.c.0.s8 %v2970
    %v2972 = vlaneseq
    %v2973 = vshrl.u32 %v2972, 7
    %v2974 = vsub.s32 %v2971, %v2973
    %v2975 = vrot.slane %v2968, %v2974
    %v2976 = vcombine.low %v2879, %v2883
    %v2978 = vunpack.c.l.s4 1983009808
    %v2979 = vunpack.c.0.s8 %v2978
    %v2980 = vlaneseq
    %v2981 = vshrl.u32 %v2980, 7
    %v2982 = vsub.s32 %v2979, %v2981
    %v2983 = vrot.slane %v2976, %v2982
    %v2984 = vcombine.low %v2959, %v2967
    %v2985 = vcombine.high %v2959, %v2967
    %v2987 = vunpack.c.l.s4 1934713408
    %v2988 = vunpack.c.0.s8 %v2987
    %v2989 = vlaneseq
    %v2990 = vshrl.u32 %v2989, 7
    %v2991 = vsub.s32 %v2988, %v2990
    %v2992 = vrot.slane %v2984, %v2991
    %v2994 = vunpack.c.l.s4 1934713408
    %v2995 = vunpack.c.0.s8 %v2994
    %v2996 = vlaneseq
    %v2997 = vshrl.u32 %v2996, 7
    %v2998 = vsub.s32 %v2995, %v2997
    %v2999 = vrot.slane %v2985, %v2998
    %v3000 = vcombine.low %v2975, %v2983
    %v3001 = vcombine.high %v2975, %v2983
    %v3003 = vunpack.c.l.s4 1934713408
    %v3004 = vunpack.c.0.s8 %v3003
    %v3005 = vlaneseq
    %v3006 = vshrl.u32 %v3005, 7
    %v3007 = vsub.s32 %v3004, %v3006
    %v3008 = vrot.slane %v3000, %v3007
    %v3010 = vunpack.c.l.s4 1934713408
    %v3011 = vunpack.c.0.s8 %v3010
    %v3012 = vlaneseq
    %v3013 = vshrl.u32 %v3012, 7
    %v3014 = vsub.s32 %v3011, %v3013
    %v3015 = vrot.slane %v3001, %v3014
    %v3016 = vcombine.low %v2992, %v3008
    %v3017 = vcombine.high %v2992, %v3008
    %v3018 = vcombine.low %v2999, %v3015
    %v3019 = vcombine.high %v2999, %v3015
    %3022 = vrot.lane.b32.xlu0 %v2949, 8
    %v3023 = vpop.permute.xlu0 %3022
    %3024 = vrot.lane.b32.xlu0 %v3017, 8
    %v3025 = vpop.permute.xlu0 %3024
    %3030 = vrot.lane.b32.xlu0 %v2950, 16
    %v3031 = vpop.permute.xlu0 %3030
    %3032 = vrot.lane.b32.xlu0 %v3018, 16
    %v3033 = vpop.permute.xlu0 %3032
    %3038 = vrot.lane.b32.xlu0 %v2951, 24
    %v3039 = vpop.permute.xlu0 %3038
    %3040 = vrot.lane.b32.xlu0 %v3019, 24
    %v3041 = vpop.permute.xlu0 %3040
    %v3044 = vsel %vm1887, %v2948, %v3023
    %v3045 = vsel %vm1887, %v3016, %v3025
    %v3046 = vsel %vm2299, %v3044, %v3031
    %v3047 = vsel %vm2299, %v3045, %v3033
    %vm3048 = vcmask 195584
    %v3049 = vsel %vm3048, %v3046, %v3039
    %v3050 = vsel %vm3048, %v3047, %v3041
    %v3051 = vpack.c.bf16 %v3050, %v3049
    %v3052 = vld [vmem:[%s6] sm:$0xf]
    %v3053 = vld [vmem:[%s6 + $0x4] sm:$0xf]
    %v3054 = vld [vmem:[%s6 + $0x8] sm:$0xf]
    %v3055 = vld [vmem:[%s6 + $0xc] sm:$0xf]
    %v3056 = vlaneseq
    %v3057 = vshrl.u32 %v3056, 7
    %v3058 = vsub.s32 3, %v3057
    %v3059 = vrot.slane %v64, %v3058
    %v3064 = vunpack.c.l.b16 %v3052
    %v3065 = vunpack.c.l.b16 %v3053
    %v3066 = vunpack.c.l.b16 %v3054
    %v3067 = vunpack.c.l.b16 %v3055
    %v3068 = vpack.c.b16 %v3065, %v3064
    %v3069 = vpack.c.b16 %v3067, %v3066
    %v3073 = vsel %vm222, %v3051, 0
    %3075 = vmatprep.subr.bf16.mxu0 0
    %3076 = vmatpush1.bf16.msra.mxu0 %v3068
    %3077 = vmatprep.subr.bf16.mxu0 0
    %3078 = vmatpush1.bf16.msra.mxu0 %v3069
    %3079 = vmatprep.subr.bf16.mxu0 0
    %3080 = vmatpush1.bf16.msra.mxu0 0
    %3081 = vmatprep.subr.bf16.mxu0 0
    %3082 = vmatpush1.bf16.msra.mxu0 0
    %3083 = vmatprep.subr.bf16.mxu0 0
    %3084 = vmatpush1.bf16.msra.mxu0 0
    %3085 = vmatprep.subr.bf16.mxu0 0
    %3086 = vmatpush1.bf16.msra.mxu0 0
    %3087 = vmatprep.subr.bf16.mxu0 0
    %3088 = vmatpush1.bf16.msra.mxu0 0
    %3089 = vmatprep.subr.bf16.mxu0 0
    %3090 = vmatpush1.bf16.msra.mxu0 0
    %3091 = vmatprep.subr.bf16.mxu0 0
    %3092 = vmatpush1.bf16.msra.mxu0 0
    %3093 = vmatprep.subr.bf16.mxu0 0
    %3094 = vmatpush1.bf16.msra.mxu0 0
    %3095 = vmatprep.subr.bf16.mxu0 0
    %3096 = vmatpush1.bf16.msra.mxu0 0
    %3097 = vmatprep.subr.bf16.mxu0 0
    %3098 = vmatpush1.bf16.msra.mxu0 0
    %3099 = vmatprep.subr.bf16.mxu0 0
    %3100 = vmatpush1.bf16.msra.mxu0 0
    %3101 = vmatprep.subr.bf16.mxu0 0
    %3102 = vmatpush1.bf16.msra.mxu0 0
    %3103 = vmatprep.subr.bf16.mxu0 0
    %3104 = vmatpush1.bf16.msra.mxu0 0
    %3105 = vmatprep.subr.bf16.mxu0 0
    %3106 = vmatpush1.bf16.msra.mxu0 0
    %3107 = vmatprep.mubr.bf16.mxu0 0
    %3108 = vmatmul.mubr.bf16.gmra.mrb[0].mxu0 %v3073
    %v3109 = vpop.f32.mrb[0].mxu0
    %v3110 = vadd.f32 %v3059, %v3109
    %v3111 = vpop.f32.mrb[0].mxu0
    %v3112 = vpop.f32.mrb[0].mxu0
    %v3113 = vadd.f32 %v3059, %v3112
    %v3114 = vpop.f32.mrb[0].mxu0
    %3115 = vdwg.mxu0
    %v3116 = vadd.f32 %v3110, %v91
    %v3117 = vadd.f32 %v3113, %v108
    %v3118 = vsel %vm222, %v3116, 0.0
    %3119 = vadd.xlane.f32.xlu0 %v3118
    %v3120 = vpop.xlane.xlu0 %3119
    %v3121 = vsel %vm222, %v3117, 0.0
    %3122 = vadd.xlane.f32.xlu0 %v3121
    %v3123 = vpop.xlane.xlu0 %3122
    %v3124 = vrcp.pop 32.0
    %v3125 = vmul.f32 %v3120, %v3124
    %v3126 = vmul.f32 %v3123, %v3124
    %v3127 = vsub.f32 %v3116, %v3125
    %v3128 = vsub.f32 %v3117, %v3126
    %v3129 = vmul.f32 %v3127, %v3127
    %v3130 = vmul.f32 %v3128, %v3128
    %v3131 = vsel %vm222, %v3129, 0.0
    %3132 = vadd.xlane.f32.xlu0 %v3131
    %v3133 = vpop.xlane.xlu0 %3132
    %v3134 = vsel %vm222, %v3130, 0.0
    %3135 = vadd.xlane.f32.xlu0 %v3134
    %v3136 = vpop.xlane.xlu0 %3135
    %v3137 = vmul.f32 %v3133, %v3124
    %v3138 = vmul.f32 %v3136, %v3124
    %v3139 = vadd.f32 %v3137, 1e-05
    %v3140 = vadd.f32 %v3138, 1e-05
    %v3141 = vrsqrt.pop %v3139
    %v3142 = vrsqrt.pop %v3140
    %v3143 = vmul.f32 %v3127, %v3141
    %v3144 = vmul.f32 %v3128, %v3142
    %v3145 = vlaneseq
    %v3146 = vshrl.u32 %v3145, 7
    %v3147 = vsub.s32 4, %v3146
    %v3148 = vrot.slane %v64, %v3147
    %v3149 = vmul.f32 %v3143, %v3148
    %v3150 = vmul.f32 %v3144, %v3148
    %v3151 = vlaneseq
    %v3152 = vshrl.u32 %v3151, 7
    %v3153 = vsub.s32 5, %v3152
    %v3154 = vrot.slane %v64, %v3153
    %v3155 = vadd.f32 %v3149, %v3154
    %v3156 = vadd.f32 %v3150, %v3154
    %v3157 = vpack.c.bf16 %v3156, %v3155
    %v3158 = vld [vmem:[%s7] sm:$0xf]
    %v3159 = vld [vmem:[%s7 + $0x4] sm:$0xf]
    %v3160 = vld [vmem:[%s7 + $0x8] sm:$0xf]
    %v3161 = vld [vmem:[%s7 + $0xc] sm:$0xf]
    %v3163 = vlaneseq
    %v3164 = vshrl.u32 %v3163, 7
    %v3165 = vsub.s32 0, %v3164
    %v3166 = vrot.slane %v66, %v3165
    %v3172 = vunpack.c.l.b16 %v3158
    %v3173 = vunpack.c.l.b16 %v3159
    %v3174 = vunpack.c.l.b16 %v3160
    %v3175 = vunpack.c.l.b16 %v3161
    %v3176 = vpack.c.b16 %v3173, %v3172
    %v3177 = vpack.c.b16 %v3175, %v3174
    %v3181 = vsel %vm222, %v3157, 0
    %3183 = vmatprep.subr.bf16.mxu0 0
    %3184 = vmatpush1.bf16.msra.mxu0 %v3176
    %3185 = vmatprep.subr.bf16.mxu0 0
    %3186 = vmatpush1.bf16.msra.mxu0 %v3177
    %3187 = vmatprep.subr.bf16.mxu0 0
    %3188 = vmatpush1.bf16.msra.mxu0 0
    %3189 = vmatprep.subr.bf16.mxu0 0
    %3190 = vmatpush1.bf16.msra.mxu0 0
    %3191 = vmatprep.subr.bf16.mxu0 0
    %3192 = vmatpush1.bf16.msra.mxu0 0
    %3193 = vmatprep.subr.bf16.mxu0 0
    %3194 = vmatpush1.bf16.msra.mxu0 0
    %3195 = vmatprep.subr.bf16.mxu0 0
    %3196 = vmatpush1.bf16.msra.mxu0 0
    %3197 = vmatprep.subr.bf16.mxu0 0
    %3198 = vmatpush1.bf16.msra.mxu0 0
    %3199 = vmatprep.subr.bf16.mxu0 0
    %3200 = vmatpush1.bf16.msra.mxu0 0
    %3201 = vmatprep.subr.bf16.mxu0 0
    %3202 = vmatpush1.bf16.msra.mxu0 0
    %3203 = vmatprep.subr.bf16.mxu0 0
    %3204 = vmatpush1.bf16.msra.mxu0 0
    %3205 = vmatprep.subr.bf16.mxu0 0
    %3206 = vmatpush1.bf16.msra.mxu0 0
    %3207 = vmatprep.subr.bf16.mxu0 0
    %3208 = vmatpush1.bf16.msra.mxu0 0
    %3209 = vmatprep.subr.bf16.mxu0 0
    %3210 = vmatpush1.bf16.msra.mxu0 0
    %3211 = vmatprep.subr.bf16.mxu0 0
    %3212 = vmatpush1.bf16.msra.mxu0 0
    %3213 = vmatprep.subr.bf16.mxu0 0
    %3214 = vmatpush1.bf16.msra.mxu0 0
    %3215 = vmatprep.mubr.bf16.mxu0 0
    %3216 = vmatmul.mubr.bf16.gmra.mrb[0].mxu0 %v3181
    %v3217 = vpop.f32.mrb[0].mxu0
    %v3218 = vadd.f32 %v3166, %v3217
    %v3219 = vpop.f32.mrb[0].mxu0
    %v3220 = vpop.f32.mrb[0].mxu0
    %v3221 = vadd.f32 %v3166, %v3220
    %v3222 = vpop.f32.mrb[0].mxu0
    %3223 = vdwg.mxu0
    %v3224 = vxor.u32 %v3218, 2147483648
    %v3225 = vxor.u32 %v3221, 2147483648
    %v3226 = vmul.f32 %v3224, 1.442695
    %v3227 = vpow.pop %v3226
    %v3228 = vmul.f32 %v3225, 1.442695
    %v3229 = vpow.pop %v3228
    %v3230 = vadd.f32 %v3227, 1.0
    %v3231 = vadd.f32 %v3229, 1.0
    %v3232 = vrcp.pop %v3230
    %v3233 = vmul.f32 1.0, %v3232
    %v3234 = vrcp.pop %v3231
    %v3235 = vmul.f32 1.0, %v3234
    %v3236 = vmul.f32 %v3218, %v3233
    %v3237 = vmul.f32 %v3221, %v3235
    %v3238 = vpack.c.bf16 %v3237, %v3236
    %v3239 = vld [vmem:[%s8] sm:$0xf]
    %v3240 = vld [vmem:[%s8 + $0x4] sm:$0xf]
    %v3241 = vld [vmem:[%s8 + $0x8] sm:$0xf]
    %v3242 = vld [vmem:[%s8 + $0xc] sm:$0xf]
    %v3243 = vld [vmem:[%s8 + $0x10] sm:$0xf]
    %v3244 = vld [vmem:[%s8 + $0x14] sm:$0xf]
    %v3245 = vld [vmem:[%s8 + $0x18] sm:$0xf]
    %v3246 = vld [vmem:[%s8 + $0x1c] sm:$0xf]
    %v3247 = vlaneseq
    %v3248 = vshrl.u32 %v3247, 7
    %v3249 = vsub.s32 6, %v3248
    %v3250 = vrot.slane %v64, %v3249
    %v3259 = vunpack.c.l.b16 %v3239
    %v3260 = vunpack.c.l.b16 %v3240
    %v3261 = vunpack.c.l.b16 %v3241
    %v3262 = vunpack.c.l.b16 %v3242
    %v3263 = vunpack.c.l.b16 %v3243
    %v3264 = vunpack.c.l.b16 %v3244
    %v3265 = vunpack.c.l.b16 %v3245
    %v3266 = vunpack.c.l.b16 %v3246
    %v3267 = vpack.c.b16 %v3260, %v3259
    %v3268 = vpack.c.b16 %v3262, %v3261
    %v3269 = vpack.c.b16 %v3264, %v3263
    %v3270 = vpack.c.b16 %v3266, %v3265
    %vm3275 = vcmask 523264
    %v3277 = vsel %vm3275, %v3238, 0
    %3279 = vmatprep.subr.bf16.mxu0 0
    %3280 = vmatpush1.bf16.msra.mxu0 %v3267
    %3281 = vmatprep.subr.bf16.mxu0 0
    %3282 = vmatpush1.bf16.msra.mxu0 %v3268
    %3283 = vmatprep.subr.bf16.mxu0 0
    %3284 = vmatpush1.bf16.msra.mxu0 %v3269
    %3285 = vmatprep.subr.bf16.mxu0 0
    %3286 = vmatpush1.bf16.msra.mxu0 %v3270
    %3287 = vmatprep.subr.bf16.mxu0 0
    %3288 = vmatpush1.bf16.msra.mxu0 0
    %3289 = vmatprep.subr.bf16.mxu0 0
    %3290 = vmatpush1.bf16.msra.mxu0 0
    %3291 = vmatprep.subr.bf16.mxu0 0
    %3292 = vmatpush1.bf16.msra.mxu0 0
    %3293 = vmatprep.subr.bf16.mxu0 0
    %3294 = vmatpush1.bf16.msra.mxu0 0
    %3295 = vmatprep.subr.bf16.mxu0 0
    %3296 = vmatpush1.bf16.msra.mxu0 0
    %3297 = vmatprep.subr.bf16.mxu0 0
    %3298 = vmatpush1.bf16.msra.mxu0 0
    %3299 = vmatprep.subr.bf16.mxu0 0
    %3300 = vmatpush1.bf16.msra.mxu0 0
    %3301 = vmatprep.subr.bf16.mxu0 0
    %3302 = vmatpush1.bf16.msra.mxu0 0
    %3303 = vmatprep.subr.bf16.mxu0 0
    %3304 = vmatpush1.bf16.msra.mxu0 0
    %3305 = vmatprep.subr.bf16.mxu0 0
    %3306 = vmatpush1.bf16.msra.mxu0 0
    %3307 = vmatprep.subr.bf16.mxu0 0
    %3308 = vmatpush1.bf16.msra.mxu0 0
    %3309 = vmatprep.subr.bf16.mxu0 0
    %3310 = vmatpush1.bf16.msra.mxu0 0
    %3311 = vmatprep.mubr.bf16.mxu0 0
    %3312 = vmatmul.mubr.bf16.gmra.mrb[0].mxu0 %v3277
    %v3313 = vpop.f32.mrb[0].mxu0
    %v3314 = vadd.f32 %v3250, %v3313
    %v3315 = vpop.f32.mrb[0].mxu0
    %v3316 = vpop.f32.mrb[0].mxu0
    %v3317 = vadd.f32 %v3250, %v3316
    %v3318 = vpop.f32.mrb[0].mxu0
    %3319 = vdwg.mxu0
    %v3320 = vadd.f32 %v3314, %v3155
    %v3321 = vadd.f32 %v3317, %v3156
    %v3322 = vsel %vm222, %v3320, 0.0
    %3323 = vadd.xlane.f32.xlu0 %v3322
    %v3324 = vpop.xlane.xlu0 %3323
    %v3325 = vsel %vm222, %v3321, 0.0
    %3326 = vadd.xlane.f32.xlu0 %v3325
    %v3327 = vpop.xlane.xlu0 %3326
    %v3328 = vmul.f32 %v3324, %v3124
    %v3329 = vmul.f32 %v3327, %v3124
    %v3330 = vsub.f32 %v3320, %v3328
    %v3331 = vsub.f32 %v3321, %v3329
    %v3332 = vmul.f32 %v3330, %v3330
    %v3333 = vmul.f32 %v3331, %v3331
    %v3334 = vsel %vm222, %v3332, 0.0
    %3335 = vadd.xlane.f32.xlu0 %v3334
    %v3336 = vpop.xlane.xlu0 %3335
    %v3337 = vsel %vm222, %v3333, 0.0
    %3338 = vadd.xlane.f32.xlu0 %v3337
    %v3339 = vpop.xlane.xlu0 %3338
    %v3340 = vmul.f32 %v3336, %v3124
    %v3341 = vmul.f32 %v3339, %v3124
    %v3342 = vadd.f32 %v3340, 1e-05
    %v3343 = vadd.f32 %v3341, 1e-05
    %v3344 = vrsqrt.pop %v3342
    %v3345 = vrsqrt.pop %v3343
    %v3346 = vmul.f32 %v3330, %v3344
    %v3347 = vmul.f32 %v3331, %v3345
    %v3348 = vlaneseq
    %v3349 = vshrl.u32 %v3348, 7
    %v3350 = vsub.s32 7, %v3349
    %v3351 = vrot.slane %v64, %v3350
    %v3352 = vmul.f32 %v3346, %v3351
    %v3353 = vmul.f32 %v3347, %v3351
    %v3354 = vlaneseq
    %v3355 = vshrl.u32 %v3354, 7
    %v3356 = vsub.s32 0, %v3355
    %v3357 = vrot.slane %v65, %v3356
    %v3358 = vadd.f32 %v3352, %v3357
    %v3359 = vadd.f32 %v3353, %v3357
    %v3362 = vcombine.high %v3358, %v3358
    %v3364 = vunpack.c.l.s4 1983009808
    %v3365 = vunpack.c.0.s8 %v3364
    %v3366 = vlaneseq
    %v3367 = vshrl.u32 %v3366, 7
    %v3368 = vsub.s32 %v3365, %v3367
    %v3369 = vrot.slane %v3358, %v3368
    %v3371 = vunpack.c.l.s4 1983009808
    %v3372 = vunpack.c.0.s8 %v3371
    %v3373 = vlaneseq
    %v3374 = vshrl.u32 %v3373, 7
    %v3375 = vsub.s32 %v3372, %v3374
    %v3376 = vrot.slane %v3362, %v3375
    %v3377 = vcombine.high %v3369, %v3369
    %v3378 = vcombine.high %v3376, %v3376
    %v3379 = vcombine.high %v3359, %v3359
    %v3381 = vunpack.c.l.s4 1983009808
    %v3382 = vunpack.c.0.s8 %v3381
    %v3383 = vlaneseq
    %v3384 = vshrl.u32 %v3383, 7
    %v3385 = vsub.s32 %v3382, %v3384
    %v3386 = vrot.slane %v3359, %v3385
    %v3388 = vunpack.c.l.s4 1983009808
    %v3389 = vunpack.c.0.s8 %v3388
    %v3390 = vlaneseq
    %v3391 = vshrl.u32 %v3390, 7
    %v3392 = vsub.s32 %v3389, %v3391
    %v3393 = vrot.slane %v3379, %v3392
    %v3394 = vcombine.high %v3386, %v3386
    %v3395 = vcombine.high %v3393, %v3393
    %vm3404 = vcmask 254976
    %3405 = vst.msk [vmem:[#allocation2] sm:$0x3] %vm3404, %v3369
    %3406 = vst.msk [vmem:[#allocation2 + $0x2] sm:$0x3] %vm3404, %v3377
    %3407 = vst.msk [vmem:[#allocation2 + $0x4] sm:$0x3] %vm3404, %v3376
    %3408 = vst.msk [vmem:[#allocation2 + $0x6] sm:$0x3] %vm3404, %v3378
    %3409 = vst.msk [vmem:[#allocation2 + $0x8] sm:$0x3] %vm3404, %v3386
    %3410 = vst.msk [vmem:[#allocation2 + $0xa] sm:$0x3] %vm3404, %v3394
    %3411 = vst.msk [vmem:[#allocation2 + $0xc] sm:$0x3] %vm3404, %v3393
    %3412 = vst.msk [vmem:[#allocation2 + $0xe] sm:$0x3] %vm3404, %v3395
    // Predicated region
    $region46: #{lookback_forward.1} parent=1 // pred_check
      _
    $region47: #{lookback_forward.1} parent=1 // pred_check_branch
      %3414 = sbr.rel (0) target = $region49
    $region48: #{lookback_forward.1} parent=1 // pred_region
      %s3416 = ssub.s32 256, 256
      %3417 = vsyncadd [#allocation3], %s3416
      %s3418 = sshll.u32 [#allocation2], 4
      %s3419 = int_to_ptr.vmem [resolvable:$true] %s3418
      %3424 = dma.vmem_to_hbm [thread:$0]  %s3419, 256, %s11, [#allocation3], 32, 32, 2
    $region49: #{lookback_forward.1} parent=1 // pred_fallthru
      _
    // Predicated region
    $region50: #{lookback_forward.1} parent=1 // pred_check
      _
    $region51: #{lookback_forward.1} parent=1 // pred_check_branch
      %3426 = sbr.rel (0) target = $region53
    $region52: #{lookback_forward.1} parent=1 // pred_region
      %3427 = dma.done [#allocation3], 256
    $region53: #{lookback_forward.1} parent=1 // pred_fallthru
      _
    %3428 = vsyncpa [#allocation3], 1

</llo_original>
